<compile_context>
chip_gen: v5e
topology: v5e:2x2
jax: 0.10.0
libtpu: 0.0.40
codegen_flags: <defaults>
</compile_context>

<pallas_src>
import functools

import jax
import jax.numpy as jnp
from jax import lax
from jax.experimental import pallas as pl
from jax.experimental.pallas import tpu as pltpu


# ---------------------------------------------------------------------------
# Fused bidirectional LSTM layer: both directions in one kernel body.
# ---------------------------------------------------------------------------
def _bilstm_layer_kernel(x_ref, wih_ref, whh_f_ref, whh_b_ref, b_ref,
                         out_ref, pre_ref, *, hidden_dim, seq_len, batch_pad):
    # x_ref:     (T*Bp, D_in)  bf16  (time-major, batch padded, flattened)
    # wih_ref:   (D_in, 8H)    bf16  [W_ih_fwd | W_ih_bwd], gates (i,f,o,g)
    # whh_*_ref: (H, 4H)       bf16  per-direction W_hh, gates (i,f,o,g)
    # b_ref:     (1, 8H)       f32   [b_fwd | b_bwd]  (b_ih + b_hh)
    # out_ref:   (T*Bp, 2H)    bf16/f32  [h_fwd | h_bwd] per timestep
    # pre_ref:   (T*Bp, 8H)    f32   VMEM scratch (hoisted input projection)
    H = hidden_dim
    T = seq_len
    Bp = batch_pad

    # (1) Hoisted input projection for BOTH directions: one big MXU matmul.
    pre_ref[...] = (
        jnp.dot(x_ref[...], wih_ref[...], preferred_element_type=jnp.float32)
        + b_ref[...]
    )

    # (2) Loop-invariant loads hoisted out of the recurrence.
    whh_f = whh_f_ref[...]                                       # (H, 4H) bf16
    whh_b = whh_b_ref[...]

    def step(t, carry):
        h_f, c_f, h_b, c_b = carry                               # f32 (Bp, H)
        row_f = pl.multiple_of(t * Bp, Bp)
        row_b = pl.multiple_of((T - 1 - t) * Bp, Bp)

        # Two small independent matmuls; independent dep-chains interleave.
        gates_f = pre_ref[pl.ds(row_f, Bp), 0:4 * H] + jnp.dot(
            h_f.astype(jnp.bfloat16), whh_f, preferred_element_type=jnp.float32)
        gates_b = pre_ref[pl.ds(row_b, Bp), 4 * H:8 * H] + jnp.dot(
            h_b.astype(jnp.bfloat16), whh_b, preferred_element_type=jnp.float32)

        # Gate layout (i, f, o | g): sigmoid on 3H lanes, tanh on H lanes.
        sf = jax.nn.sigmoid(gates_f[:, :3 * H])
        gf = jnp.tanh(gates_f[:, 3 * H:])
        sb = jax.nn.sigmoid(gates_b[:, :3 * H])
        gb = jnp.tanh(gates_b[:, 3 * H:])

        i_f, f_f, o_f = sf[:, 0:H], sf[:, H:2 * H], sf[:, 2 * H:3 * H]
        i_b, f_b, o_b = sb[:, 0:H], sb[:, H:2 * H], sb[:, 2 * H:3 * H]

        c_f_new = f_f * c_f + i_f * gf
        c_b_new = f_b * c_b + i_b * gb
        h_f_new = o_f * jnp.tanh(c_f_new)
        h_b_new = o_b * jnp.tanh(c_b_new)

        # Fused [fwd | bwd] output layout written directly (no XLA concat).
        out_ref[pl.ds(row_f, Bp), 0:H] = h_f_new.astype(out_ref.dtype)
        out_ref[pl.ds(row_b, Bp), H:2 * H] = h_b_new.astype(out_ref.dtype)
        return (h_f_new, c_f_new, h_b_new, c_b_new)

    carry0 = tuple(jnp.zeros((Bp, H), jnp.float32) for _ in range(4))
    lax.fori_loop(0, T, step, carry0, unroll=min(int(T), 8))


def _bilstm_layer(x2, wih_cat, whh_f, whh_b, b_cat, *,
                  hidden_dim, seq_len, batch_pad, out_dtype):
    """One fused bidirectional layer. x2: (T*Bp, D_in) bf16 -> (T*Bp, 2H)."""
    T, Bp, H = seq_len, batch_pad, hidden_dim
    kernel = functools.partial(_bilstm_layer_kernel, hidden_dim=H,
                               seq_len=T, batch_pad=Bp)
    vmem = pl.BlockSpec(memory_space=pltpu.MemorySpace.VMEM)
    return pl.pallas_call(
        kernel,
        out_shape=jax.ShapeDtypeStruct((T * Bp, 2 * H), out_dtype),
        in_specs=[vmem] * 5,
        out_specs=vmem,
        scratch_shapes=[pltpu.VMEM((T * Bp, 8 * H), jnp.float32)],
    )(x2, wih_cat, whh_f, whh_b, b_cat)


def _permute_gates(w, H):
    """Gate columns (i, f, g, o) -> (i, f, o, g) along the last dim."""
    return jnp.concatenate(
        [w[..., 0:2 * H], w[..., 3 * H:4 * H], w[..., 2 * H:3 * H]], axis=-1)


def _prep_layer_weights(p, H):
    wih_f = _permute_gates(p["wih"][0], H)
    wih_b = _permute_gates(p["wih"][1], H)
    whh_f = _permute_gates(p["whh"][0], H)
    whh_b = _permute_gates(p["whh"][1], H)
    b_f = _permute_gates(p["b"][0], H)            # (1, 4H)
    b_b = _permute_gates(p["b"][1], H)
    wih_cat = jnp.concatenate([wih_f, wih_b], axis=-1).astype(jnp.bfloat16)
    b_cat = jnp.concatenate([b_f, b_b], axis=-1)  # (1, 8H) f32
    return (wih_cat, whh_f.astype(jnp.bfloat16), whh_b.astype(jnp.bfloat16),
            b_cat)


def bilstm(x_btd, lstm_params, hidden_dim):
    """Multi-layer bidirectional LSTM. x: (B, T, D) -> (B, T, 2H) float32."""
    B, T, _ = x_btd.shape
    H = hidden_dim
    Bp = ((B + 7) // 8) * 8                         # sublane-dense batch
    seq = jnp.transpose(x_btd, (1, 0, 2))           # (T, B, D) time-major
    if Bp != B:
        seq = jnp.pad(seq, ((0, 0), (0, Bp - B), (0, 0)))
    x2 = seq.reshape(T * Bp, seq.shape[-1]).astype(jnp.bfloat16)

    n_layers = len(lstm_params)
    out = None
    for li, p in enumerate(lstm_params):
        last = li == n_layers - 1
        wih_cat, whh_f, whh_b, b_cat = _prep_layer_weights(p, H)
        out = _bilstm_layer(
            x2, wih_cat, whh_f, whh_b, b_cat,
            hidden_dim=H, seq_len=T, batch_pad=Bp,
            # bf16 layer-to-layer (next layer's MXU operand dtype anyway);
            # f32 for the last layer feeding attention.
            out_dtype=jnp.float32 if last else jnp.bfloat16)
        x2 = out                                   # already bf16 + fused layout

    gru_out = out.reshape(T, Bp, 2 * H)
    gru_out = jnp.transpose(gru_out, (1, 0, 2))[:B]               # (B, T, 2H)
    return gru_out


# ---------------------------------------------------------------------------
# Attention + FC head, tiled over a batch grid (parallel).
# u = tanh(g @ W); att = softmax_T(u . proj); y = (g * att) @ W_fc + b_fc
# ---------------------------------------------------------------------------
def _attn_fc_kernel(g_ref, w_ref, projt_ref, fcw_ref, fcb_ref, y_ref):
    # g_ref: (T, 2H) f32  w_ref/fcw_ref: (2H, 2H) bf16
    # projt_ref: (1, 2H) f32  fcb_ref: (1, 2H) f32  y_ref: (T, 2H) f32
    g = g_ref[...]
    u = jnp.tanh(jnp.dot(g.astype(jnp.bfloat16), w_ref[...],
                         preferred_element_type=jnp.float32))
    # (T, 2H) * (1, 2H) lane reduce instead of an N=1 MXU matmul.
    att = jnp.sum(u * projt_ref[...], axis=-1, keepdims=True)        # (T, 1)
    a = att - jnp.max(att, axis=0, keepdims=True)
    e = jnp.exp(a)
    score = e * pl.reciprocal(jnp.sum(e, axis=0, keepdims=True), approx=True)
    scored = g * score
    y_ref[...] = jnp.dot(scored.astype(jnp.bfloat16), fcw_ref[...],
                         preferred_element_type=jnp.float32) + fcb_ref[...]


def attention_fc(gru_out, weight_W, weight_proj, fc_w_t, fc_b):
    B, T, H2 = gru_out.shape
    return pl.pallas_call(
        _attn_fc_kernel,
        grid=(B,),
        out_shape=jax.ShapeDtypeStruct((B, T, H2), jnp.float32),
        in_specs=[
            pl.BlockSpec((None, T, H2), lambda b: (b, 0, 0)),
            pl.BlockSpec((H2, H2), lambda b: (0, 0)),
            pl.BlockSpec((1, H2), lambda b: (0, 0)),
            pl.BlockSpec((H2, H2), lambda b: (0, 0)),
            pl.BlockSpec((1, H2), lambda b: (0, 0)),
        ],
        out_specs=pl.BlockSpec((None, T, H2), lambda b: (b, 0, 0)),
        compiler_params=pltpu.CompilerParams(
            dimension_semantics=("parallel",)),
    )(gru_out, weight_W.astype(jnp.bfloat16), weight_proj.reshape(1, H2),
      fc_w_t.astype(jnp.bfloat16), fc_b)


def bigru_attention_forward(x, params, hidden_dim):
    gru_out = bilstm(x, params["lstm"], hidden_dim)               # (B, T, 2H)
    return attention_fc(gru_out, params["weight_W"], params["weight_proj"],
                        params["fc_w_t"], params["fc_b"])         # (B, T, 2H)


# ---------------------------------------------------------------------------
# Deterministic parameter init (shapes match the PyTorch module, per-direction
# weights stacked along a leading axis of size 2: [forward, backward]).
# ---------------------------------------------------------------------------
def init_params(key, input_dim, hidden_dim, layer_dim):
    H = hidden_dim
    H2 = 2 * H
    k_lstm = 1.0 / jnp.sqrt(jnp.float32(H))
    k_fc = 1.0 / jnp.sqrt(jnp.float32(H2))

    lstm_params = []
    for l in range(layer_dim):
        d_in = input_dim if l == 0 else H2
        wih, whh, bb = [], [], []
        for _ in range(2):  # forward, backward
            key, k1, k2, k3, k4 = jax.random.split(key, 5)
            wih.append(jax.random.uniform(k1, (d_in, 4 * H), jnp.float32,
                                          -k_lstm, k_lstm))
            whh.append(jax.random.uniform(k2, (H, 4 * H), jnp.float32,
                                          -k_lstm, k_lstm))
            b_ih = jax.random.uniform(k3, (4 * H,), jnp.float32, -k_lstm, k_lstm)
            b_hh = jax.random.uniform(k4, (4 * H,), jnp.float32, -k_lstm, k_lstm)
            bb.append((b_ih + b_hh).reshape(1, 4 * H))
        lstm_params.append({
            "wih": jnp.stack(wih),        # (2, d_in, 4H)  gates (i, f, g, o)
            "whh": jnp.stack(whh),        # (2, H, 4H)
            "b": jnp.stack(bb),           # (2, 1, 4H)
        })

    key, kw, kp, kfw, kfb = jax.random.split(key, 5)
    return {
        "lstm": lstm_params,
        "weight_W": jax.random.uniform(kw, (H2, H2), jnp.float32, -0.1, 0.1),
        "weight_proj": jax.random.uniform(kp, (H2, 1), jnp.float32, -0.1, 0.1),
        # fc stored pre-transposed: (in, out); bias as (1, out)
        "fc_w_t": jax.random.uniform(kfw, (H2, H2), jnp.float32, -k_fc, k_fc),
        "fc_b": jax.random.uniform(kfb, (1, H2), jnp.float32, -k_fc, k_fc),
    }


# ---------------------------------------------------------------------------
# Pure-JAX reference (lax.scan) with matching bf16 MXU-operand casts.
# ---------------------------------------------------------------------------
def ref_forward(x, params, hidden_dim):
    H = hidden_dim
    B = x.shape[0]

    def bdot(a, b):
        return jnp.dot(a.astype(jnp.bfloat16), b.astype(jnp.bfloat16),
                       preferred_element_type=jnp.float32)

    def cell(wih, whh, b):
        def f(carry, x_t):
            h, c = carry
            gates = bdot(x_t, wih) + bdot(h, whh) + b
            i, fg, g, o = jnp.split(gates, 4, axis=-1)
            i = jax.nn.sigmoid(i)
            fg = jax.nn.sigmoid(fg)
            g = jnp.tanh(g)
            o = jax.nn.sigmoid(o)
            c = fg * c + i * g
            h = o * jnp.tanh(c)
            return (h, c), h
        return f

    seq = jnp.transpose(x, (1, 0, 2))
    for p in params["lstm"]:
        init = (jnp.zeros((B, H), jnp.float32), jnp.zeros((B, H), jnp.float32))
        _, fwd = lax.scan(cell(p["wih"][0], p["whh"][0], p["b"][0, 0]), init, seq)
        _, bwd = lax.scan(cell(p["wih"][1], p["whh"][1], p["b"][1, 0]), init,
                          jnp.flip(seq, 0))
        seq = jnp.concatenate([fwd, jnp.flip(bwd, 0)], axis=-1)
    gru_out = jnp.transpose(seq, (1, 0, 2))
    u = jnp.tanh(bdot(gru_out, params["weight_W"]))
    att = u @ params["weight_proj"]
    att = jax.nn.softmax(att, axis=1)
    scored = gru_out * att
    return bdot(scored, params["fc_w_t"]) + params["fc_b"][0]


if __name__ == "__main__":
    B, T = 2, 8
    input_dim, hidden_dim, layer_dim = 16, 32, 2

    key = jax.random.PRNGKey(0)
    key, kx = jax.random.split(key)
    x = jax.random.normal(kx, (B, T, input_dim), jnp.float32)
    params = init_params(key, input_dim, hidden_dim, layer_dim)

    fwd = jax.jit(functools.partial(bigru_attention_forward,
                                    hidden_dim=hidden_dim))
    y = jax.block_until_ready(fwd(x, params))

    y_ref = jax.block_until_ready(ref_forward(x, params, hidden_dim))
    assert y.shape == (B, T, 2 * hidden_dim)
    assert jnp.all(jnp.isfinite(y))
    assert jnp.allclose(y, y_ref, rtol=2e-2, atol=2e-2)
    print("KERNEL_OK")
</pallas_src>

<mosaic_0001>
module attributes {stable_mosaic.version = 11 : i64} {
  func.func @_bilstm_layer_kernel(%arg0: memref<64x16xbf16, #tpu.memory_space<vmem>>, %arg1: memref<16x256xbf16, #tpu.memory_space<vmem>>, %arg2: memref<32x128xbf16, #tpu.memory_space<vmem>>, %arg3: memref<32x128xbf16, #tpu.memory_space<vmem>>, %arg4: memref<1x256xf32, #tpu.memory_space<vmem>>, %arg5: memref<64x64xbf16, #tpu.memory_space<vmem>>, %arg6: memref<64x256xf32, #tpu.memory_space<vmem>>) attributes {dimension_semantics = [], scalar_prefetch = 0 : i64, scratch_operands = 1 : i64, tpu.core_type = #tpu.core_type<tc>} {
    %c0 = arith.constant 0 : index
    %c0_0 = arith.constant 0 : index
    %0 = vector.load %arg0[%c0, %c0_0] : memref<64x16xbf16, #tpu.memory_space<vmem>>, vector<64x16xbf16>
    %c0_1 = arith.constant 0 : index
    %c0_2 = arith.constant 0 : index
    %1 = vector.load %arg1[%c0_1, %c0_2] : memref<16x256xbf16, #tpu.memory_space<vmem>>, vector<16x256xbf16>
    %cst = arith.constant dense<0.000000e+00> : vector<64x256xf32>
    %2 = tpu.matmul %0, %1, %cst {dimension_numbers = #tpu.dot_dimension_numbers<[1], [0], [0], [1], [0, 0, 1, 1], [], []>} : vector<64x16xbf16>, vector<16x256xbf16>, vector<64x256xf32> -> vector<64x256xf32>
    %c0_3 = arith.constant 0 : index
    %c0_4 = arith.constant 0 : index
    %3 = vector.load %arg4[%c0_3, %c0_4] : memref<1x256xf32, #tpu.memory_space<vmem>>, vector<1x256xf32>
    %4 = vector.broadcast %3 : vector<1x256xf32> to vector<64x256xf32>
    %5 = arith.addf %2, %4 : vector<64x256xf32>
    %c0_5 = arith.constant 0 : index
    %c0_6 = arith.constant 0 : index
    %6 = vector.load %arg6[%c0_5, %c0_6] : memref<64x256xf32, #tpu.memory_space<vmem>>, vector<64x256xf32>
    tpu.vector_store %arg6[%c0_5, %c0_6], %5 {strides = array<i32>} : memref<64x256xf32, #tpu.memory_space<vmem>>, vector<64x256xf32>,
    %c0_7 = arith.constant 0 : index
    %c0_8 = arith.constant 0 : index
    %7 = vector.load %arg2[%c0_7, %c0_8] : memref<32x128xbf16, #tpu.memory_space<vmem>>, vector<32x128xbf16>
    %c0_9 = arith.constant 0 : index
    %c0_10 = arith.constant 0 : index
    %8 = vector.load %arg3[%c0_9, %c0_10] : memref<32x128xbf16, #tpu.memory_space<vmem>>, vector<32x128xbf16>
    %cst_11 = arith.constant 0.000000e+00 : f32
    %9 = vector.broadcast %cst_11 : f32 to vector<8x32xf32>
    %cst_12 = arith.constant 0.000000e+00 : f32
    %10 = vector.broadcast %cst_12 : f32 to vector<8x32xf32>
    %cst_13 = arith.constant 0.000000e+00 : f32
    %11 = vector.broadcast %cst_13 : f32 to vector<8x32xf32>
    %cst_14 = arith.constant 0.000000e+00 : f32
    %12 = vector.broadcast %cst_14 : f32 to vector<8x32xf32>
    %c0_i32 = arith.constant 0 : i32
    %c8_i32 = arith.constant 8 : i32
    %13 = arith.muli %c0_i32, %c8_i32 : i32
    %14 = tpu.assume_multiple %13, 8 : i32
    %c7_i32 = arith.constant 7 : i32
    %15 = arith.subi %c7_i32, %c0_i32 : i32
    %c8_i32_15 = arith.constant 8 : i32
    %16 = arith.muli %15, %c8_i32_15 : i32
    %17 = tpu.assume_multiple %16, 8 : i32
    %18 = arith.index_cast %14 : i32 to index
    %c0_16 = arith.constant 0 : index
    %19 = vector.load %arg6[%18, %c0_16] : memref<64x256xf32, #tpu.memory_space<vmem>>, vector<8x128xf32>
    %20 = arith.truncf %9 : vector<8x32xf32> to vector<8x32xbf16>
    %cst_17 = arith.constant dense<0.000000e+00> : vector<8x128xf32>
    %21 = tpu.matmul %20, %7, %cst_17 {dimension_numbers = #tpu.dot_dimension_numbers<[1], [0], [0], [1], [0, 0, 1, 1], [], []>} : vector<8x32xbf16>, vector<32x128xbf16>, vector<8x128xf32> -> vector<8x128xf32>
    %22 = arith.addf %19, %21 : vector<8x128xf32>
    %23 = arith.index_cast %17 : i32 to index
    %c128 = arith.constant 128 : index
    %24 = vector.load %arg6[%23, %c128] : memref<64x256xf32, #tpu.memory_space<vmem>>, vector<8x128xf32>
    %25 = arith.truncf %11 : vector<8x32xf32> to vector<8x32xbf16>
    %cst_18 = arith.constant dense<0.000000e+00> : vector<8x128xf32>
    %26 = tpu.matmul %25, %8, %cst_18 {dimension_numbers = #tpu.dot_dimension_numbers<[1], [0], [0], [1], [0, 0, 1, 1], [], []>} : vector<8x32xbf16>, vector<32x128xbf16>, vector<8x128xf32> -> vector<8x128xf32>
    %27 = arith.addf %24, %26 : vector<8x128xf32>
    %28 = vector.extract_strided_slice %22 {offsets = [0, 0], sizes = [8, 96], strides = [1, 1]} : vector<8x128xf32> to vector<8x96xf32>
    %29 = arith.negf %28 : vector<8x96xf32>
    %30 = math.exp %29 : vector<8x96xf32>
    %cst_19 = arith.constant 1.000000e+00 : f32
    %31 = vector.broadcast %cst_19 : f32 to vector<8x96xf32>
    %32 = arith.addf %31, %30 : vector<8x96xf32>
    %33 = arith.divf %31, %32 : vector<8x96xf32>
    %34 = vector.extract_strided_slice %22 {offsets = [0, 96], sizes = [8, 32], strides = [1, 1]} : vector<8x128xf32> to vector<8x32xf32>
    %35 = math.tanh %34 : vector<8x32xf32>
    %36 = vector.extract_strided_slice %27 {offsets = [0, 0], sizes = [8, 96], strides = [1, 1]} : vector<8x128xf32> to vector<8x96xf32>
    %37 = arith.negf %36 : vector<8x96xf32>
    %38 = math.exp %37 : vector<8x96xf32>
    %cst_20 = arith.constant 1.000000e+00 : f32
    %39 = vector.broadcast %cst_20 : f32 to vector<8x96xf32>
    %40 = arith.addf %39, %38 : vector<8x96xf32>
    %41 = arith.divf %39, %40 : vector<8x96xf32>
    %42 = vector.extract_strided_slice %27 {offsets = [0, 96], sizes = [8, 32], strides = [1, 1]} : vector<8x128xf32> to vector<8x32xf32>
    %43 = math.tanh %42 : vector<8x32xf32>
    %44 = vector.extract_strided_slice %33 {offsets = [0, 0], sizes = [8, 32], strides = [1, 1]} : vector<8x96xf32> to vector<8x32xf32>
    %45 = vector.extract_strided_slice %33 {offsets = [0, 32], sizes = [8, 32], strides = [1, 1]} : vector<8x96xf32> to vector<8x32xf32>
    %46 = vector.extract_strided_slice %33 {offsets = [0, 64], sizes = [8, 32], strides = [1, 1]} : vector<8x96xf32> to vector<8x32xf32>
    %47 = vector.extract_strided_slice %41 {offsets = [0, 0], sizes = [8, 32], strides = [1, 1]} : vector<8x96xf32> to vector<8x32xf32>
    %48 = vector.extract_strided_slice %41 {offsets = [0, 32], sizes = [8, 32], strides = [1, 1]} : vector<8x96xf32> to vector<8x32xf32>
    %49 = vector.extract_strided_slice %41 {offsets = [0, 64], sizes = [8, 32], strides = [1, 1]} : vector<8x96xf32> to vector<8x32xf32>
    %50 = arith.mulf %45, %10 : vector<8x32xf32>
    %51 = arith.mulf %44, %35 : vector<8x32xf32>
    %52 = arith.addf %50, %51 : vector<8x32xf32>
    %53 = arith.mulf %48, %12 : vector<8x32xf32>
    %54 = arith.mulf %47, %43 : vector<8x32xf32>
    %55 = arith.addf %53, %54 : vector<8x32xf32>
    %56 = math.tanh %52 : vector<8x32xf32>
    %57 = arith.mulf %46, %56 : vector<8x32xf32>
    %58 = math.tanh %55 : vector<8x32xf32>
    %59 = arith.mulf %49, %58 : vector<8x32xf32>
    %60 = arith.truncf %57 : vector<8x32xf32> to vector<8x32xbf16>
    %61 = arith.index_cast %14 : i32 to index
    %c0_21 = arith.constant 0 : index
    %62 = vector.load %arg5[%61, %c0_21] : memref<64x64xbf16, #tpu.memory_space<vmem>>, vector<8x32xbf16>
    tpu.vector_store %arg5[%61, %c0_21], %60 {strides = array<i32>} : memref<64x64xbf16, #tpu.memory_space<vmem>>, vector<8x32xbf16>,
    %63 = arith.truncf %59 : vector<8x32xf32> to vector<8x32xbf16>
    %64 = arith.index_cast %17 : i32 to index
    %c32 = arith.constant 32 : index
    %65 = vector.load %arg5[%64, %c32] : memref<64x64xbf16, #tpu.memory_space<vmem>>, vector<8x32xbf16>
    tpu.vector_store %arg5[%64, %c32], %63 {strides = array<i32>} : memref<64x64xbf16, #tpu.memory_space<vmem>>, vector<8x32xbf16>,
    %c1_i32 = arith.constant 1 : i32
    %c8_i32_22 = arith.constant 8 : i32
    %66 = arith.muli %c1_i32, %c8_i32_22 : i32
    %67 = tpu.assume_multiple %66, 8 : i32
    %c7_i32_23 = arith.constant 7 : i32
    %68 = arith.subi %c7_i32_23, %c1_i32 : i32
    %c8_i32_24 = arith.constant 8 : i32
    %69 = arith.muli %68, %c8_i32_24 : i32
    %70 = tpu.assume_multiple %69, 8 : i32
    %71 = arith.index_cast %67 : i32 to index
    %c0_25 = arith.constant 0 : index
    %72 = vector.load %arg6[%71, %c0_25] : memref<64x256xf32, #tpu.memory_space<vmem>>, vector<8x128xf32>
    %73 = arith.truncf %57 : vector<8x32xf32> to vector<8x32xbf16>
    %cst_26 = arith.constant dense<0.000000e+00> : vector<8x128xf32>
    %74 = tpu.matmul %73, %7, %cst_26 {dimension_numbers = #tpu.dot_dimension_numbers<[1], [0], [0], [1], [0, 0, 1, 1], [], []>} : vector<8x32xbf16>, vector<32x128xbf16>, vector<8x128xf32> -> vector<8x128xf32>
    %75 = arith.addf %72, %74 : vector<8x128xf32>
    %76 = arith.index_cast %70 : i32 to index
    %c128_27 = arith.constant 128 : index
    %77 = vector.load %arg6[%76, %c128_27] : memref<64x256xf32, #tpu.memory_space<vmem>>, vector<8x128xf32>
    %78 = arith.truncf %59 : vector<8x32xf32> to vector<8x32xbf16>
    %cst_28 = arith.constant dense<0.000000e+00> : vector<8x128xf32>
    %79 = tpu.matmul %78, %8, %cst_28 {dimension_numbers = #tpu.dot_dimension_numbers<[1], [0], [0], [1], [0, 0, 1, 1], [], []>} : vector<8x32xbf16>, vector<32x128xbf16>, vector<8x128xf32> -> vector<8x128xf32>
    %80 = arith.addf %77, %79 : vector<8x128xf32>
    %81 = vector.extract_strided_slice %75 {offsets = [0, 0], sizes = [8, 96], strides = [1, 1]} : vector<8x128xf32> to vector<8x96xf32>
    %82 = arith.negf %81 : vector<8x96xf32>
    %83 = math.exp %82 : vector<8x96xf32>
    %cst_29 = arith.constant 1.000000e+00 : f32
    %84 = vector.broadcast %cst_29 : f32 to vector<8x96xf32>
    %85 = arith.addf %84, %83 : vector<8x96xf32>
    %86 = arith.divf %84, %85 : vector<8x96xf32>
    %87 = vector.extract_strided_slice %75 {offsets = [0, 96], sizes = [8, 32], strides = [1, 1]} : vector<8x128xf32> to vector<8x32xf32>
    %88 = math.tanh %87 : vector<8x32xf32>
    %89 = vector.extract_strided_slice %80 {offsets = [0, 0], sizes = [8, 96], strides = [1, 1]} : vector<8x128xf32> to vector<8x96xf32>
    %90 = arith.negf %89 : vector<8x96xf32>
    %91 = math.exp %90 : vector<8x96xf32>
    %cst_30 = arith.constant 1.000000e+00 : f32
    %92 = vector.broadcast %cst_30 : f32 to vector<8x96xf32>
    %93 = arith.addf %92, %91 : vector<8x96xf32>
    %94 = arith.divf %92, %93 : vector<8x96xf32>
    %95 = vector.extract_strided_slice %80 {offsets = [0, 96], sizes = [8, 32], strides = [1, 1]} : vector<8x128xf32> to vector<8x32xf32>
    %96 = math.tanh %95 : vector<8x32xf32>
    %97 = vector.extract_strided_slice %86 {offsets = [0, 0], sizes = [8, 32], strides = [1, 1]} : vector<8x96xf32> to vector<8x32xf32>
    %98 = vector.extract_strided_slice %86 {offsets = [0, 32], sizes = [8, 32], strides = [1, 1]} : vector<8x96xf32> to vector<8x32xf32>
    %99 = vector.extract_strided_slice %86 {offsets = [0, 64], sizes = [8, 32], strides = [1, 1]} : vector<8x96xf32> to vector<8x32xf32>
    %100 = vector.extract_strided_slice %94 {offsets = [0, 0], sizes = [8, 32], strides = [1, 1]} : vector<8x96xf32> to vector<8x32xf32>
    %101 = vector.extract_strided_slice %94 {offsets = [0, 32], sizes = [8, 32], strides = [1, 1]} : vector<8x96xf32> to vector<8x32xf32>
    %102 = vector.extract_strided_slice %94 {offsets = [0, 64], sizes = [8, 32], strides = [1, 1]} : vector<8x96xf32> to vector<8x32xf32>
    %103 = arith.mulf %98, %52 : vector<8x32xf32>
    %104 = arith.mulf %97, %88 : vector<8x32xf32>
    %105 = arith.addf %103, %104 : vector<8x32xf32>
    %106 = arith.mulf %101, %55 : vector<8x32xf32>
    %107 = arith.mulf %100, %96 : vector<8x32xf32>
    %108 = arith.addf %106, %107 : vector<8x32xf32>
    %109 = math.tanh %105 : vector<8x32xf32>
    %110 = arith.mulf %99, %109 : vector<8x32xf32>
    %111 = math.tanh %108 : vector<8x32xf32>
    %112 = arith.mulf %102, %111 : vector<8x32xf32>
    %113 = arith.truncf %110 : vector<8x32xf32> to vector<8x32xbf16>
    %114 = arith.index_cast %67 : i32 to index
    %c0_31 = arith.constant 0 : index
    %115 = vector.load %arg5[%114, %c0_31] : memref<64x64xbf16, #tpu.memory_space<vmem>>, vector<8x32xbf16>
    tpu.vector_store %arg5[%114, %c0_31], %113 {strides = array<i32>} : memref<64x64xbf16, #tpu.memory_space<vmem>>, vector<8x32xbf16>,
    %116 = arith.truncf %112 : vector<8x32xf32> to vector<8x32xbf16>
    %117 = arith.index_cast %70 : i32 to index
    %c32_32 = arith.constant 32 : index
    %118 = vector.load %arg5[%117, %c32_32] : memref<64x64xbf16, #tpu.memory_space<vmem>>, vector<8x32xbf16>
    tpu.vector_store %arg5[%117, %c32_32], %116 {strides = array<i32>} : memref<64x64xbf16, #tpu.memory_space<vmem>>, vector<8x32xbf16>,
    %c2_i32 = arith.constant 2 : i32
    %c8_i32_33 = arith.constant 8 : i32
    %119 = arith.muli %c2_i32, %c8_i32_33 : i32
    %120 = tpu.assume_multiple %119, 8 : i32
    %c7_i32_34 = arith.constant 7 : i32
    %121 = arith.subi %c7_i32_34, %c2_i32 : i32
    %c8_i32_35 = arith.constant 8 : i32
    %122 = arith.muli %121, %c8_i32_35 : i32
    %123 = tpu.assume_multiple %122, 8 : i32
    %124 = arith.index_cast %120 : i32 to index
    %c0_36 = arith.constant 0 : index
    %125 = vector.load %arg6[%124, %c0_36] : memref<64x256xf32, #tpu.memory_space<vmem>>, vector<8x128xf32>
    %126 = arith.truncf %110 : vector<8x32xf32> to vector<8x32xbf16>
    %cst_37 = arith.constant dense<0.000000e+00> : vector<8x128xf32>
    %127 = tpu.matmul %126, %7, %cst_37 {dimension_numbers = #tpu.dot_dimension_numbers<[1], [0], [0], [1], [0, 0, 1, 1], [], []>} : vector<8x32xbf16>, vector<32x128xbf16>, vector<8x128xf32> -> vector<8x128xf32>
    %128 = arith.addf %125, %127 : vector<8x128xf32>
    %129 = arith.index_cast %123 : i32 to index
    %c128_38 = arith.constant 128 : index
    %130 = vector.load %arg6[%129, %c128_38] : memref<64x256xf32, #tpu.memory_space<vmem>>, vector<8x128xf32>
    %131 = arith.truncf %112 : vector<8x32xf32> to vector<8x32xbf16>
    %cst_39 = arith.constant dense<0.000000e+00> : vector<8x128xf32>
    %132 = tpu.matmul %131, %8, %cst_39 {dimension_numbers = #tpu.dot_dimension_numbers<[1], [0], [0], [1], [0, 0, 1, 1], [], []>} : vector<8x32xbf16>, vector<32x128xbf16>, vector<8x128xf32> -> vector<8x128xf32>
    %133 = arith.addf %130, %132 : vector<8x128xf32>
    %134 = vector.extract_strided_slice %128 {offsets = [0, 0], sizes = [8, 96], strides = [1, 1]} : vector<8x128xf32> to vector<8x96xf32>
    %135 = arith.negf %134 : vector<8x96xf32>
    %136 = math.exp %135 : vector<8x96xf32>
    %cst_40 = arith.constant 1.000000e+00 : f32
    %137 = vector.broadcast %cst_40 : f32 to vector<8x96xf32>
    %138 = arith.addf %137, %136 : vector<8x96xf32>
    %139 = arith.divf %137, %138 : vector<8x96xf32>
    %140 = vector.extract_strided_slice %128 {offsets = [0, 96], sizes = [8, 32], strides = [1, 1]} : vector<8x128xf32> to vector<8x32xf32>
    %141 = math.tanh %140 : vector<8x32xf32>
    %142 = vector.extract_strided_slice %133 {offsets = [0, 0], sizes = [8, 96], strides = [1, 1]} : vector<8x128xf32> to vector<8x96xf32>
    %143 = arith.negf %142 : vector<8x96xf32>
    %144 = math.exp %143 : vector<8x96xf32>
    %cst_41 = arith.constant 1.000000e+00 : f32
    %145 = vector.broadcast %cst_41 : f32 to vector<8x96xf32>
    %146 = arith.addf %145, %144 : vector<8x96xf32>
    %147 = arith.divf %145, %146 : vector<8x96xf32>
    %148 = vector.extract_strided_slice %133 {offsets = [0, 96], sizes = [8, 32], strides = [1, 1]} : vector<8x128xf32> to vector<8x32xf32>
    %149 = math.tanh %148 : vector<8x32xf32>
    %150 = vector.extract_strided_slice %139 {offsets = [0, 0], sizes = [8, 32], strides = [1, 1]} : vector<8x96xf32> to vector<8x32xf32>
    %151 = vector.extract_strided_slice %139 {offsets = [0, 32], sizes = [8, 32], strides = [1, 1]} : vector<8x96xf32> to vector<8x32xf32>
    %152 = vector.extract_strided_slice %139 {offsets = [0, 64], sizes = [8, 32], strides = [1, 1]} : vector<8x96xf32> to vector<8x32xf32>
    %153 = vector.extract_strided_slice %147 {offsets = [0, 0], sizes = [8, 32], strides = [1, 1]} : vector<8x96xf32> to vector<8x32xf32>
    %154 = vector.extract_strided_slice %147 {offsets = [0, 32], sizes = [8, 32], strides = [1, 1]} : vector<8x96xf32> to vector<8x32xf32>
    %155 = vector.extract_strided_slice %147 {offsets = [0, 64], sizes = [8, 32], strides = [1, 1]} : vector<8x96xf32> to vector<8x32xf32>
    %156 = arith.mulf %151, %105 : vector<8x32xf32>
    %157 = arith.mulf %150, %141 : vector<8x32xf32>
    %158 = arith.addf %156, %157 : vector<8x32xf32>
    %159 = arith.mulf %154, %108 : vector<8x32xf32>
    %160 = arith.mulf %153, %149 : vector<8x32xf32>
    %161 = arith.addf %159, %160 : vector<8x32xf32>
    %162 = math.tanh %158 : vector<8x32xf32>
    %163 = arith.mulf %152, %162 : vector<8x32xf32>
    %164 = math.tanh %161 : vector<8x32xf32>
    %165 = arith.mulf %155, %164 : vector<8x32xf32>
    %166 = arith.truncf %163 : vector<8x32xf32> to vector<8x32xbf16>
    %167 = arith.index_cast %120 : i32 to index
    %c0_42 = arith.constant 0 : index
    %168 = vector.load %arg5[%167, %c0_42] : memref<64x64xbf16, #tpu.memory_space<vmem>>, vector<8x32xbf16>
    tpu.vector_store %arg5[%167, %c0_42], %166 {strides = array<i32>} : memref<64x64xbf16, #tpu.memory_space<vmem>>, vector<8x32xbf16>,
    %169 = arith.truncf %165 : vector<8x32xf32> to vector<8x32xbf16>
    %170 = arith.index_cast %123 : i32 to index
    %c32_43 = arith.constant 32 : index
    %171 = vector.load %arg5[%170, %c32_43] : memref<64x64xbf16, #tpu.memory_space<vmem>>, vector<8x32xbf16>
    tpu.vector_store %arg5[%170, %c32_43], %169 {strides = array<i32>} : memref<64x64xbf16, #tpu.memory_space<vmem>>, vector<8x32xbf16>,
    %c3_i32 = arith.constant 3 : i32
    %c8_i32_44 = arith.constant 8 : i32
    %172 = arith.muli %c3_i32, %c8_i32_44 : i32
    %173 = tpu.assume_multiple %172, 8 : i32
    %c7_i32_45 = arith.constant 7 : i32
    %174 = arith.subi %c7_i32_45, %c3_i32 : i32
    %c8_i32_46 = arith.constant 8 : i32
    %175 = arith.muli %174, %c8_i32_46 : i32
    %176 = tpu.assume_multiple %175, 8 : i32
    %177 = arith.index_cast %173 : i32 to index
    %c0_47 = arith.constant 0 : index
    %178 = vector.load %arg6[%177, %c0_47] : memref<64x256xf32, #tpu.memory_space<vmem>>, vector<8x128xf32>
    %179 = arith.truncf %163 : vector<8x32xf32> to vector<8x32xbf16>
    %cst_48 = arith.constant dense<0.000000e+00> : vector<8x128xf32>
    %180 = tpu.matmul %179, %7, %cst_48 {dimension_numbers = #tpu.dot_dimension_numbers<[1], [0], [0], [1], [0, 0, 1, 1], [], []>} : vector<8x32xbf16>, vector<32x128xbf16>, vector<8x128xf32> -> vector<8x128xf32>
    %181 = arith.addf %178, %180 : vector<8x128xf32>
    %182 = arith.index_cast %176 : i32 to index
    %c128_49 = arith.constant 128 : index
    %183 = vector.load %arg6[%182, %c128_49] : memref<64x256xf32, #tpu.memory_space<vmem>>, vector<8x128xf32>
    %184 = arith.truncf %165 : vector<8x32xf32> to vector<8x32xbf16>
    %cst_50 = arith.constant dense<0.000000e+00> : vector<8x128xf32>
    %185 = tpu.matmul %184, %8, %cst_50 {dimension_numbers = #tpu.dot_dimension_numbers<[1], [0], [0], [1], [0, 0, 1, 1], [], []>} : vector<8x32xbf16>, vector<32x128xbf16>, vector<8x128xf32> -> vector<8x128xf32>
    %186 = arith.addf %183, %185 : vector<8x128xf32>
    %187 = vector.extract_strided_slice %181 {offsets = [0, 0], sizes = [8, 96], strides = [1, 1]} : vector<8x128xf32> to vector<8x96xf32>
    %188 = arith.negf %187 : vector<8x96xf32>
    %189 = math.exp %188 : vector<8x96xf32>
    %cst_51 = arith.constant 1.000000e+00 : f32
    %190 = vector.broadcast %cst_51 : f32 to vector<8x96xf32>
    %191 = arith.addf %190, %189 : vector<8x96xf32>
    %192 = arith.divf %190, %191 : vector<8x96xf32>
    %193 = vector.extract_strided_slice %181 {offsets = [0, 96], sizes = [8, 32], strides = [1, 1]} : vector<8x128xf32> to vector<8x32xf32>
    %194 = math.tanh %193 : vector<8x32xf32>
    %195 = vector.extract_strided_slice %186 {offsets = [0, 0], sizes = [8, 96], strides = [1, 1]} : vector<8x128xf32> to vector<8x96xf32>
    %196 = arith.negf %195 : vector<8x96xf32>
    %197 = math.exp %196 : vector<8x96xf32>
    %cst_52 = arith.constant 1.000000e+00 : f32
    %198 = vector.broadcast %cst_52 : f32 to vector<8x96xf32>
    %199 = arith.addf %198, %197 : vector<8x96xf32>
    %200 = arith.divf %198, %199 : vector<8x96xf32>
    %201 = vector.extract_strided_slice %186 {offsets = [0, 96], sizes = [8, 32], strides = [1, 1]} : vector<8x128xf32> to vector<8x32xf32>
    %202 = math.tanh %201 : vector<8x32xf32>
    %203 = vector.extract_strided_slice %192 {offsets = [0, 0], sizes = [8, 32], strides = [1, 1]} : vector<8x96xf32> to vector<8x32xf32>
    %204 = vector.extract_strided_slice %192 {offsets = [0, 32], sizes = [8, 32], strides = [1, 1]} : vector<8x96xf32> to vector<8x32xf32>
    %205 = vector.extract_strided_slice %192 {offsets = [0, 64], sizes = [8, 32], strides = [1, 1]} : vector<8x96xf32> to vector<8x32xf32>
    %206 = vector.extract_strided_slice %200 {offsets = [0, 0], sizes = [8, 32], strides = [1, 1]} : vector<8x96xf32> to vector<8x32xf32>
    %207 = vector.extract_strided_slice %200 {offsets = [0, 32], sizes = [8, 32], strides = [1, 1]} : vector<8x96xf32> to vector<8x32xf32>
    %208 = vector.extract_strided_slice %200 {offsets = [0, 64], sizes = [8, 32], strides = [1, 1]} : vector<8x96xf32> to vector<8x32xf32>
    %209 = arith.mulf %204, %158 : vector<8x32xf32>
    %210 = arith.mulf %203, %194 : vector<8x32xf32>
    %211 = arith.addf %209, %210 : vector<8x32xf32>
    %212 = arith.mulf %207, %161 : vector<8x32xf32>
    %213 = arith.mulf %206, %202 : vector<8x32xf32>
    %214 = arith.addf %212, %213 : vector<8x32xf32>
    %215 = math.tanh %211 : vector<8x32xf32>
    %216 = arith.mulf %205, %215 : vector<8x32xf32>
    %217 = math.tanh %214 : vector<8x32xf32>
    %218 = arith.mulf %208, %217 : vector<8x32xf32>
    %219 = arith.truncf %216 : vector<8x32xf32> to vector<8x32xbf16>
    %220 = arith.index_cast %173 : i32 to index
    %c0_53 = arith.constant 0 : index
    %221 = vector.load %arg5[%220, %c0_53] : memref<64x64xbf16, #tpu.memory_space<vmem>>, vector<8x32xbf16>
    tpu.vector_store %arg5[%220, %c0_53], %219 {strides = array<i32>} : memref<64x64xbf16, #tpu.memory_space<vmem>>, vector<8x32xbf16>,
    %222 = arith.truncf %218 : vector<8x32xf32> to vector<8x32xbf16>
    %223 = arith.index_cast %176 : i32 to index
    %c32_54 = arith.constant 32 : index
    %224 = vector.load %arg5[%223, %c32_54] : memref<64x64xbf16, #tpu.memory_space<vmem>>, vector<8x32xbf16>
    tpu.vector_store %arg5[%223, %c32_54], %222 {strides = array<i32>} : memref<64x64xbf16, #tpu.memory_space<vmem>>, vector<8x32xbf16>,
    %c4_i32 = arith.constant 4 : i32
    %c8_i32_55 = arith.constant 8 : i32
    %225 = arith.muli %c4_i32, %c8_i32_55 : i32
    %226 = tpu.assume_multiple %225, 8 : i32
    %c7_i32_56 = arith.constant 7 : i32
    %227 = arith.subi %c7_i32_56, %c4_i32 : i32
    %c8_i32_57 = arith.constant 8 : i32
    %228 = arith.muli %227, %c8_i32_57 : i32
    %229 = tpu.assume_multiple %228, 8 : i32
    %230 = arith.index_cast %226 : i32 to index
    %c0_58 = arith.constant 0 : index
    %231 = vector.load %arg6[%230, %c0_58] : memref<64x256xf32, #tpu.memory_space<vmem>>, vector<8x128xf32>
    %232 = arith.truncf %216 : vector<8x32xf32> to vector<8x32xbf16>
    %cst_59 = arith.constant dense<0.000000e+00> : vector<8x128xf32>
    %233 = tpu.matmul %232, %7, %cst_59 {dimension_numbers = #tpu.dot_dimension_numbers<[1], [0], [0], [1], [0, 0, 1, 1], [], []>} : vector<8x32xbf16>, vector<32x128xbf16>, vector<8x128xf32> -> vector<8x128xf32>
    %234 = arith.addf %231, %233 : vector<8x128xf32>
    %235 = arith.index_cast %229 : i32 to index
    %c128_60 = arith.constant 128 : index
    %236 = vector.load %arg6[%235, %c128_60] : memref<64x256xf32, #tpu.memory_space<vmem>>, vector<8x128xf32>
    %237 = arith.truncf %218 : vector<8x32xf32> to vector<8x32xbf16>
    %cst_61 = arith.constant dense<0.000000e+00> : vector<8x128xf32>
    %238 = tpu.matmul %237, %8, %cst_61 {dimension_numbers = #tpu.dot_dimension_numbers<[1], [0], [0], [1], [0, 0, 1, 1], [], []>} : vector<8x32xbf16>, vector<32x128xbf16>, vector<8x128xf32> -> vector<8x128xf32>
    %239 = arith.addf %236, %238 : vector<8x128xf32>
    %240 = vector.extract_strided_slice %234 {offsets = [0, 0], sizes = [8, 96], strides = [1, 1]} : vector<8x128xf32> to vector<8x96xf32>
    %241 = arith.negf %240 : vector<8x96xf32>
    %242 = math.exp %241 : vector<8x96xf32>
    %cst_62 = arith.constant 1.000000e+00 : f32
    %243 = vector.broadcast %cst_62 : f32 to vector<8x96xf32>
    %244 = arith.addf %243, %242 : vector<8x96xf32>
    %245 = arith.divf %243, %244 : vector<8x96xf32>
    %246 = vector.extract_strided_slice %234 {offsets = [0, 96], sizes = [8, 32], strides = [1, 1]} : vector<8x128xf32> to vector<8x32xf32>
    %247 = math.tanh %246 : vector<8x32xf32>
    %248 = vector.extract_strided_slice %239 {offsets = [0, 0], sizes = [8, 96], strides = [1, 1]} : vector<8x128xf32> to vector<8x96xf32>
    %249 = arith.negf %248 : vector<8x96xf32>
    %250 = math.exp %249 : vector<8x96xf32>
    %cst_63 = arith.constant 1.000000e+00 : f32
    %251 = vector.broadcast %cst_63 : f32 to vector<8x96xf32>
    %252 = arith.addf %251, %250 : vector<8x96xf32>
    %253 = arith.divf %251, %252 : vector<8x96xf32>
    %254 = vector.extract_strided_slice %239 {offsets = [0, 96], sizes = [8, 32], strides = [1, 1]} : vector<8x128xf32> to vector<8x32xf32>
    %255 = math.tanh %254 : vector<8x32xf32>
    %256 = vector.extract_strided_slice %245 {offsets = [0, 0], sizes = [8, 32], strides = [1, 1]} : vector<8x96xf32> to vector<8x32xf32>
    %257 = vector.extract_strided_slice %245 {offsets = [0, 32], sizes = [8, 32], strides = [1, 1]} : vector<8x96xf32> to vector<8x32xf32>
    %258 = vector.extract_strided_slice %245 {offsets = [0, 64], sizes = [8, 32], strides = [1, 1]} : vector<8x96xf32> to vector<8x32xf32>
    %259 = vector.extract_strided_slice %253 {offsets = [0, 0], sizes = [8, 32], strides = [1, 1]} : vector<8x96xf32> to vector<8x32xf32>
    %260 = vector.extract_strided_slice %253 {offsets = [0, 32], sizes = [8, 32], strides = [1, 1]} : vector<8x96xf32> to vector<8x32xf32>
    %261 = vector.extract_strided_slice %253 {offsets = [0, 64], sizes = [8, 32], strides = [1, 1]} : vector<8x96xf32> to vector<8x32xf32>
    %262 = arith.mulf %257, %211 : vector<8x32xf32>
    %263 = arith.mulf %256, %247 : vector<8x32xf32>
    %264 = arith.addf %262, %263 : vector<8x32xf32>
    %265 = arith.mulf %260, %214 : vector<8x32xf32>
    %266 = arith.mulf %259, %255 : vector<8x32xf32>
    %267 = arith.addf %265, %266 : vector<8x32xf32>
    %268 = math.tanh %264 : vector<8x32xf32>
    %269 = arith.mulf %258, %268 : vector<8x32xf32>
    %270 = math.tanh %267 : vector<8x32xf32>
    %271 = arith.mulf %261, %270 : vector<8x32xf32>
    %272 = arith.truncf %269 : vector<8x32xf32> to vector<8x32xbf16>
    %273 = arith.index_cast %226 : i32 to index
    %c0_64 = arith.constant 0 : index
    %274 = vector.load %arg5[%273, %c0_64] : memref<64x64xbf16, #tpu.memory_space<vmem>>, vector<8x32xbf16>
    tpu.vector_store %arg5[%273, %c0_64], %272 {strides = array<i32>} : memref<64x64xbf16, #tpu.memory_space<vmem>>, vector<8x32xbf16>,
    %275 = arith.truncf %271 : vector<8x32xf32> to vector<8x32xbf16>
    %276 = arith.index_cast %229 : i32 to index
    %c32_65 = arith.constant 32 : index
    %277 = vector.load %arg5[%276, %c32_65] : memref<64x64xbf16, #tpu.memory_space<vmem>>, vector<8x32xbf16>
    tpu.vector_store %arg5[%276, %c32_65], %275 {strides = array<i32>} : memref<64x64xbf16, #tpu.memory_space<vmem>>, vector<8x32xbf16>,
    %c5_i32 = arith.constant 5 : i32
    %c8_i32_66 = arith.constant 8 : i32
    %278 = arith.muli %c5_i32, %c8_i32_66 : i32
    %279 = tpu.assume_multiple %278, 8 : i32
    %c7_i32_67 = arith.constant 7 : i32
    %280 = arith.subi %c7_i32_67, %c5_i32 : i32
    %c8_i32_68 = arith.constant 8 : i32
    %281 = arith.muli %280, %c8_i32_68 : i32
    %282 = tpu.assume_multiple %281, 8 : i32
    %283 = arith.index_cast %279 : i32 to index
    %c0_69 = arith.constant 0 : index
    %284 = vector.load %arg6[%283, %c0_69] : memref<64x256xf32, #tpu.memory_space<vmem>>, vector<8x128xf32>
    %285 = arith.truncf %269 : vector<8x32xf32> to vector<8x32xbf16>
    %cst_70 = arith.constant dense<0.000000e+00> : vector<8x128xf32>
    %286 = tpu.matmul %285, %7, %cst_70 {dimension_numbers = #tpu.dot_dimension_numbers<[1], [0], [0], [1], [0, 0, 1, 1], [], []>} : vector<8x32xbf16>, vector<32x128xbf16>, vector<8x128xf32> -> vector<8x128xf32>
    %287 = arith.addf %284, %286 : vector<8x128xf32>
    %288 = arith.index_cast %282 : i32 to index
    %c128_71 = arith.constant 128 : index
    %289 = vector.load %arg6[%288, %c128_71] : memref<64x256xf32, #tpu.memory_space<vmem>>, vector<8x128xf32>
    %290 = arith.truncf %271 : vector<8x32xf32> to vector<8x32xbf16>
    %cst_72 = arith.constant dense<0.000000e+00> : vector<8x128xf32>
    %291 = tpu.matmul %290, %8, %cst_72 {dimension_numbers = #tpu.dot_dimension_numbers<[1], [0], [0], [1], [0, 0, 1, 1], [], []>} : vector<8x32xbf16>, vector<32x128xbf16>, vector<8x128xf32> -> vector<8x128xf32>
    %292 = arith.addf %289, %291 : vector<8x128xf32>
    %293 = vector.extract_strided_slice %287 {offsets = [0, 0], sizes = [8, 96], strides = [1, 1]} : vector<8x128xf32> to vector<8x96xf32>
    %294 = arith.negf %293 : vector<8x96xf32>
    %295 = math.exp %294 : vector<8x96xf32>
    %cst_73 = arith.constant 1.000000e+00 : f32
    %296 = vector.broadcast %cst_73 : f32 to vector<8x96xf32>
    %297 = arith.addf %296, %295 : vector<8x96xf32>
    %298 = arith.divf %296, %297 : vector<8x96xf32>
    %299 = vector.extract_strided_slice %287 {offsets = [0, 96], sizes = [8, 32], strides = [1, 1]} : vector<8x128xf32> to vector<8x32xf32>
    %300 = math.tanh %299 : vector<8x32xf32>
    %301 = vector.extract_strided_slice %292 {offsets = [0, 0], sizes = [8, 96], strides = [1, 1]} : vector<8x128xf32> to vector<8x96xf32>
    %302 = arith.negf %301 : vector<8x96xf32>
    %303 = math.exp %302 : vector<8x96xf32>
    %cst_74 = arith.constant 1.000000e+00 : f32
    %304 = vector.broadcast %cst_74 : f32 to vector<8x96xf32>
    %305 = arith.addf %304, %303 : vector<8x96xf32>
    %306 = arith.divf %304, %305 : vector<8x96xf32>
    %307 = vector.extract_strided_slice %292 {offsets = [0, 96], sizes = [8, 32], strides = [1, 1]} : vector<8x128xf32> to vector<8x32xf32>
    %308 = math.tanh %307 : vector<8x32xf32>
    %309 = vector.extract_strided_slice %298 {offsets = [0, 0], sizes = [8, 32], strides = [1, 1]} : vector<8x96xf32> to vector<8x32xf32>
    %310 = vector.extract_strided_slice %298 {offsets = [0, 32], sizes = [8, 32], strides = [1, 1]} : vector<8x96xf32> to vector<8x32xf32>
    %311 = vector.extract_strided_slice %298 {offsets = [0, 64], sizes = [8, 32], strides = [1, 1]} : vector<8x96xf32> to vector<8x32xf32>
    %312 = vector.extract_strided_slice %306 {offsets = [0, 0], sizes = [8, 32], strides = [1, 1]} : vector<8x96xf32> to vector<8x32xf32>
    %313 = vector.extract_strided_slice %306 {offsets = [0, 32], sizes = [8, 32], strides = [1, 1]} : vector<8x96xf32> to vector<8x32xf32>
    %314 = vector.extract_strided_slice %306 {offsets = [0, 64], sizes = [8, 32], strides = [1, 1]} : vector<8x96xf32> to vector<8x32xf32>
    %315 = arith.mulf %310, %264 : vector<8x32xf32>
    %316 = arith.mulf %309, %300 : vector<8x32xf32>
    %317 = arith.addf %315, %316 : vector<8x32xf32>
    %318 = arith.mulf %313, %267 : vector<8x32xf32>
    %319 = arith.mulf %312, %308 : vector<8x32xf32>
    %320 = arith.addf %318, %319 : vector<8x32xf32>
    %321 = math.tanh %317 : vector<8x32xf32>
    %322 = arith.mulf %311, %321 : vector<8x32xf32>
    %323 = math.tanh %320 : vector<8x32xf32>
    %324 = arith.mulf %314, %323 : vector<8x32xf32>
    %325 = arith.truncf %322 : vector<8x32xf32> to vector<8x32xbf16>
    %326 = arith.index_cast %279 : i32 to index
    %c0_75 = arith.constant 0 : index
    %327 = vector.load %arg5[%326, %c0_75] : memref<64x64xbf16, #tpu.memory_space<vmem>>, vector<8x32xbf16>
    tpu.vector_store %arg5[%326, %c0_75], %325 {strides = array<i32>} : memref<64x64xbf16, #tpu.memory_space<vmem>>, vector<8x32xbf16>,
    %328 = arith.truncf %324 : vector<8x32xf32> to vector<8x32xbf16>
    %329 = arith.index_cast %282 : i32 to index
    %c32_76 = arith.constant 32 : index
    %330 = vector.load %arg5[%329, %c32_76] : memref<64x64xbf16, #tpu.memory_space<vmem>>, vector<8x32xbf16>
    tpu.vector_store %arg5[%329, %c32_76], %328 {strides = array<i32>} : memref<64x64xbf16, #tpu.memory_space<vmem>>, vector<8x32xbf16>,
    %c6_i32 = arith.constant 6 : i32
    %c8_i32_77 = arith.constant 8 : i32
    %331 = arith.muli %c6_i32, %c8_i32_77 : i32
    %332 = tpu.assume_multiple %331, 8 : i32
    %c7_i32_78 = arith.constant 7 : i32
    %333 = arith.subi %c7_i32_78, %c6_i32 : i32
    %c8_i32_79 = arith.constant 8 : i32
    %334 = arith.muli %333, %c8_i32_79 : i32
    %335 = tpu.assume_multiple %334, 8 : i32
    %336 = arith.index_cast %332 : i32 to index
    %c0_80 = arith.constant 0 : index
    %337 = vector.load %arg6[%336, %c0_80] : memref<64x256xf32, #tpu.memory_space<vmem>>, vector<8x128xf32>
    %338 = arith.truncf %322 : vector<8x32xf32> to vector<8x32xbf16>
    %cst_81 = arith.constant dense<0.000000e+00> : vector<8x128xf32>
    %339 = tpu.matmul %338, %7, %cst_81 {dimension_numbers = #tpu.dot_dimension_numbers<[1], [0], [0], [1], [0, 0, 1, 1], [], []>} : vector<8x32xbf16>, vector<32x128xbf16>, vector<8x128xf32> -> vector<8x128xf32>
    %340 = arith.addf %337, %339 : vector<8x128xf32>
    %341 = arith.index_cast %335 : i32 to index
    %c128_82 = arith.constant 128 : index
    %342 = vector.load %arg6[%341, %c128_82] : memref<64x256xf32, #tpu.memory_space<vmem>>, vector<8x128xf32>
    %343 = arith.truncf %324 : vector<8x32xf32> to vector<8x32xbf16>
    %cst_83 = arith.constant dense<0.000000e+00> : vector<8x128xf32>
    %344 = tpu.matmul %343, %8, %cst_83 {dimension_numbers = #tpu.dot_dimension_numbers<[1], [0], [0], [1], [0, 0, 1, 1], [], []>} : vector<8x32xbf16>, vector<32x128xbf16>, vector<8x128xf32> -> vector<8x128xf32>
    %345 = arith.addf %342, %344 : vector<8x128xf32>
    %346 = vector.extract_strided_slice %340 {offsets = [0, 0], sizes = [8, 96], strides = [1, 1]} : vector<8x128xf32> to vector<8x96xf32>
    %347 = arith.negf %346 : vector<8x96xf32>
    %348 = math.exp %347 : vector<8x96xf32>
    %cst_84 = arith.constant 1.000000e+00 : f32
    %349 = vector.broadcast %cst_84 : f32 to vector<8x96xf32>
    %350 = arith.addf %349, %348 : vector<8x96xf32>
    %351 = arith.divf %349, %350 : vector<8x96xf32>
    %352 = vector.extract_strided_slice %340 {offsets = [0, 96], sizes = [8, 32], strides = [1, 1]} : vector<8x128xf32> to vector<8x32xf32>
    %353 = math.tanh %352 : vector<8x32xf32>
    %354 = vector.extract_strided_slice %345 {offsets = [0, 0], sizes = [8, 96], strides = [1, 1]} : vector<8x128xf32> to vector<8x96xf32>
    %355 = arith.negf %354 : vector<8x96xf32>
    %356 = math.exp %355 : vector<8x96xf32>
    %cst_85 = arith.constant 1.000000e+00 : f32
    %357 = vector.broadcast %cst_85 : f32 to vector<8x96xf32>
    %358 = arith.addf %357, %356 : vector<8x96xf32>
    %359 = arith.divf %357, %358 : vector<8x96xf32>
    %360 = vector.extract_strided_slice %345 {offsets = [0, 96], sizes = [8, 32], strides = [1, 1]} : vector<8x128xf32> to vector<8x32xf32>
    %361 = math.tanh %360 : vector<8x32xf32>
    %362 = vector.extract_strided_slice %351 {offsets = [0, 0], sizes = [8, 32], strides = [1, 1]} : vector<8x96xf32> to vector<8x32xf32>
    %363 = vector.extract_strided_slice %351 {offsets = [0, 32], sizes = [8, 32], strides = [1, 1]} : vector<8x96xf32> to vector<8x32xf32>
    %364 = vector.extract_strided_slice %351 {offsets = [0, 64], sizes = [8, 32], strides = [1, 1]} : vector<8x96xf32> to vector<8x32xf32>
    %365 = vector.extract_strided_slice %359 {offsets = [0, 0], sizes = [8, 32], strides = [1, 1]} : vector<8x96xf32> to vector<8x32xf32>
    %366 = vector.extract_strided_slice %359 {offsets = [0, 32], sizes = [8, 32], strides = [1, 1]} : vector<8x96xf32> to vector<8x32xf32>
    %367 = vector.extract_strided_slice %359 {offsets = [0, 64], sizes = [8, 32], strides = [1, 1]} : vector<8x96xf32> to vector<8x32xf32>
    %368 = arith.mulf %363, %317 : vector<8x32xf32>
    %369 = arith.mulf %362, %353 : vector<8x32xf32>
    %370 = arith.addf %368, %369 : vector<8x32xf32>
    %371 = arith.mulf %366, %320 : vector<8x32xf32>
    %372 = arith.mulf %365, %361 : vector<8x32xf32>
    %373 = arith.addf %371, %372 : vector<8x32xf32>
    %374 = math.tanh %370 : vector<8x32xf32>
    %375 = arith.mulf %364, %374 : vector<8x32xf32>
    %376 = math.tanh %373 : vector<8x32xf32>
    %377 = arith.mulf %367, %376 : vector<8x32xf32>
    %378 = arith.truncf %375 : vector<8x32xf32> to vector<8x32xbf16>
    %379 = arith.index_cast %332 : i32 to index
    %c0_86 = arith.constant 0 : index
    %380 = vector.load %arg5[%379, %c0_86] : memref<64x64xbf16, #tpu.memory_space<vmem>>, vector<8x32xbf16>
    tpu.vector_store %arg5[%379, %c0_86], %378 {strides = array<i32>} : memref<64x64xbf16, #tpu.memory_space<vmem>>, vector<8x32xbf16>,
    %381 = arith.truncf %377 : vector<8x32xf32> to vector<8x32xbf16>
    %382 = arith.index_cast %335 : i32 to index
    %c32_87 = arith.constant 32 : index
    %383 = vector.load %arg5[%382, %c32_87] : memref<64x64xbf16, #tpu.memory_space<vmem>>, vector<8x32xbf16>
    tpu.vector_store %arg5[%382, %c32_87], %381 {strides = array<i32>} : memref<64x64xbf16, #tpu.memory_space<vmem>>, vector<8x32xbf16>,
    %c7_i32_88 = arith.constant 7 : i32
    %c8_i32_89 = arith.constant 8 : i32
    %384 = arith.muli %c7_i32_88, %c8_i32_89 : i32
    %385 = tpu.assume_multiple %384, 8 : i32
    %c7_i32_90 = arith.constant 7 : i32
    %386 = arith.subi %c7_i32_90, %c7_i32_88 : i32
    %c8_i32_91 = arith.constant 8 : i32
    %387 = arith.muli %386, %c8_i32_91 : i32
    %388 = tpu.assume_multiple %387, 8 : i32
    %389 = arith.index_cast %385 : i32 to index
    %c0_92 = arith.constant 0 : index
    %390 = vector.load %arg6[%389, %c0_92] : memref<64x256xf32, #tpu.memory_space<vmem>>, vector<8x128xf32>
    %391 = arith.truncf %375 : vector<8x32xf32> to vector<8x32xbf16>
    %cst_93 = arith.constant dense<0.000000e+00> : vector<8x128xf32>
    %392 = tpu.matmul %391, %7, %cst_93 {dimension_numbers = #tpu.dot_dimension_numbers<[1], [0], [0], [1], [0, 0, 1, 1], [], []>} : vector<8x32xbf16>, vector<32x128xbf16>, vector<8x128xf32> -> vector<8x128xf32>
    %393 = arith.addf %390, %392 : vector<8x128xf32>
    %394 = arith.index_cast %388 : i32 to index
    %c128_94 = arith.constant 128 : index
    %395 = vector.load %arg6[%394, %c128_94] : memref<64x256xf32, #tpu.memory_space<vmem>>, vector<8x128xf32>
    %396 = arith.truncf %377 : vector<8x32xf32> to vector<8x32xbf16>
    %cst_95 = arith.constant dense<0.000000e+00> : vector<8x128xf32>
    %397 = tpu.matmul %396, %8, %cst_95 {dimension_numbers = #tpu.dot_dimension_numbers<[1], [0], [0], [1], [0, 0, 1, 1], [], []>} : vector<8x32xbf16>, vector<32x128xbf16>, vector<8x128xf32> -> vector<8x128xf32>
    %398 = arith.addf %395, %397 : vector<8x128xf32>
    %399 = vector.extract_strided_slice %393 {offsets = [0, 0], sizes = [8, 96], strides = [1, 1]} : vector<8x128xf32> to vector<8x96xf32>
    %400 = arith.negf %399 : vector<8x96xf32>
    %401 = math.exp %400 : vector<8x96xf32>
    %cst_96 = arith.constant 1.000000e+00 : f32
    %402 = vector.broadcast %cst_96 : f32 to vector<8x96xf32>
    %403 = arith.addf %402, %401 : vector<8x96xf32>
    %404 = arith.divf %402, %403 : vector<8x96xf32>
    %405 = vector.extract_strided_slice %393 {offsets = [0, 96], sizes = [8, 32], strides = [1, 1]} : vector<8x128xf32> to vector<8x32xf32>
    %406 = math.tanh %405 : vector<8x32xf32>
    %407 = vector.extract_strided_slice %398 {offsets = [0, 0], sizes = [8, 96], strides = [1, 1]} : vector<8x128xf32> to vector<8x96xf32>
    %408 = arith.negf %407 : vector<8x96xf32>
    %409 = math.exp %408 : vector<8x96xf32>
    %cst_97 = arith.constant 1.000000e+00 : f32
    %410 = vector.broadcast %cst_97 : f32 to vector<8x96xf32>
    %411 = arith.addf %410, %409 : vector<8x96xf32>
    %412 = arith.divf %410, %411 : vector<8x96xf32>
    %413 = vector.extract_strided_slice %398 {offsets = [0, 96], sizes = [8, 32], strides = [1, 1]} : vector<8x128xf32> to vector<8x32xf32>
    %414 = math.tanh %413 : vector<8x32xf32>
    %415 = vector.extract_strided_slice %404 {offsets = [0, 0], sizes = [8, 32], strides = [1, 1]} : vector<8x96xf32> to vector<8x32xf32>
    %416 = vector.extract_strided_slice %404 {offsets = [0, 32], sizes = [8, 32], strides = [1, 1]} : vector<8x96xf32> to vector<8x32xf32>
    %417 = vector.extract_strided_slice %404 {offsets = [0, 64], sizes = [8, 32], strides = [1, 1]} : vector<8x96xf32> to vector<8x32xf32>
    %418 = vector.extract_strided_slice %412 {offsets = [0, 0], sizes = [8, 32], strides = [1, 1]} : vector<8x96xf32> to vector<8x32xf32>
    %419 = vector.extract_strided_slice %412 {offsets = [0, 32], sizes = [8, 32], strides = [1, 1]} : vector<8x96xf32> to vector<8x32xf32>
    %420 = vector.extract_strided_slice %412 {offsets = [0, 64], sizes = [8, 32], strides = [1, 1]} : vector<8x96xf32> to vector<8x32xf32>
    %421 = arith.mulf %416, %370 : vector<8x32xf32>
    %422 = arith.mulf %415, %406 : vector<8x32xf32>
    %423 = arith.addf %421, %422 : vector<8x32xf32>
    %424 = arith.mulf %419, %373 : vector<8x32xf32>
    %425 = arith.mulf %418, %414 : vector<8x32xf32>
    %426 = arith.addf %424, %425 : vector<8x32xf32>
    %427 = math.tanh %423 : vector<8x32xf32>
    %428 = arith.mulf %417, %427 : vector<8x32xf32>
    %429 = math.tanh %426 : vector<8x32xf32>
    %430 = arith.mulf %420, %429 : vector<8x32xf32>
    %431 = arith.truncf %428 : vector<8x32xf32> to vector<8x32xbf16>
    %432 = arith.index_cast %385 : i32 to index
    %c0_98 = arith.constant 0 : index
    %433 = vector.load %arg5[%432, %c0_98] : memref<64x64xbf16, #tpu.memory_space<vmem>>, vector<8x32xbf16>
    tpu.vector_store %arg5[%432, %c0_98], %431 {strides = array<i32>} : memref<64x64xbf16, #tpu.memory_space<vmem>>, vector<8x32xbf16>,
    %434 = arith.truncf %430 : vector<8x32xf32> to vector<8x32xbf16>
    %435 = arith.index_cast %388 : i32 to index
    %c32_99 = arith.constant 32 : index
    %436 = vector.load %arg5[%435, %c32_99] : memref<64x64xbf16, #tpu.memory_space<vmem>>, vector<8x32xbf16>
    tpu.vector_store %arg5[%435, %c32_99], %434 {strides = array<i32>} : memref<64x64xbf16, #tpu.memory_space<vmem>>, vector<8x32xbf16>,
    %c8_i32_100 = arith.constant 8 : i32
    return
  }
}

module attributes {stable_mosaic.version = 11 : i64} {
  func.func @_attn_fc_kernel(%arg0: i32, %arg1: memref<1x8x64xf32, #tpu.memory_space<vmem>>, %arg2: memref<64x64xbf16, #tpu.memory_space<vmem>>, %arg3: memref<1x64xf32, #tpu.memory_space<vmem>>, %arg4: memref<64x64xbf16, #tpu.memory_space<vmem>>, %arg5: memref<1x64xf32, #tpu.memory_space<vmem>>, %arg6: memref<1x8x64xf32, #tpu.memory_space<vmem>>) attributes {dimension_semantics = [#tpu.dimension_semantics<parallel>], iteration_bounds = array<i64: 2>, scalar_prefetch = 0 : i64, scratch_operands = 0 : i64, tpu.core_type = #tpu.core_type<tc>, window_params = [{transform_indices = @transform_0, window_bounds = array<i64: 1, 8, 64>}, {pipeline_mode = #tpu.pipeline_mode<synchronous>, transform_indices = @transform_1, window_bounds = array<i64: 64, 64>}, {pipeline_mode = #tpu.pipeline_mode<synchronous>, transform_indices = @transform_2, window_bounds = array<i64: 1, 64>}, {pipeline_mode = #tpu.pipeline_mode<synchronous>, transform_indices = @transform_3, window_bounds = array<i64: 64, 64>}, {pipeline_mode = #tpu.pipeline_mode<synchronous>, transform_indices = @transform_4, window_bounds = array<i64: 1, 64>}, {transform_indices = @transform_5, window_bounds = array<i64: 1, 8, 64>}]} {
    %c0 = arith.constant 0 : index
    %c0_0 = arith.constant 0 : index
    %c0_1 = arith.constant 0 : index
    %0 = vector.load %arg1[%c0, %c0_0, %c0_1] : memref<1x8x64xf32, #tpu.memory_space<vmem>>, vector<1x8x64xf32>
    %1 = vector.shape_cast %0 : vector<1x8x64xf32> to vector<8x64xf32>
    %2 = arith.truncf %1 : vector<8x64xf32> to vector<8x64xbf16>
    %c0_2 = arith.constant 0 : index
    %c0_3 = arith.constant 0 : index
    %3 = vector.load %arg2[%c0_2, %c0_3] : memref<64x64xbf16, #tpu.memory_space<vmem>>, vector<64x64xbf16>
    %cst = arith.constant dense<0.000000e+00> : vector<8x64xf32>
    %4 = tpu.matmul %2, %3, %cst {dimension_numbers = #tpu.dot_dimension_numbers<[1], [0], [0], [1], [0, 0, 1, 1], [], []>} : vector<8x64xbf16>, vector<64x64xbf16>, vector<8x64xf32> -> vector<8x64xf32>
    %5 = math.tanh %4 : vector<8x64xf32>
    %c0_4 = arith.constant 0 : index
    %c0_5 = arith.constant 0 : index
    %6 = vector.load %arg3[%c0_4, %c0_5] : memref<1x64xf32, #tpu.memory_space<vmem>>, vector<1x64xf32>
    %7 = vector.broadcast %6 : vector<1x64xf32> to vector<8x64xf32>
    %8 = arith.mulf %5, %7 : vector<8x64xf32>
    %cst_6 = arith.constant dense<0.000000e+00> : vector<8xf32>
    %9 = vector.multi_reduction <add>, %8, %cst_6 [1] : vector<8x64xf32> to vector<8xf32>
    %10 = vector.shape_cast %9 : vector<8xf32> to vector<8x1xf32>
    %cst_7 = arith.constant dense<0xFF800000> : vector<1xf32>
    %11 = vector.multi_reduction <maximumf>, %10, %cst_7 [0] : vector<8x1xf32> to vector<1xf32>
    %12 = vector.shape_cast %11 : vector<1xf32> to vector<1x1xf32>
    %13 = vector.broadcast %12 : vector<1x1xf32> to vector<8x1xf32>
    %14 = arith.subf %10, %13 : vector<8x1xf32>
    %15 = math.exp %14 : vector<8x1xf32>
    %cst_8 = arith.constant dense<0.000000e+00> : vector<1xf32>
    %16 = vector.multi_reduction <add>, %15, %cst_8 [0] : vector<8x1xf32> to vector<1xf32>
    %17 = vector.shape_cast %16 : vector<1xf32> to vector<1x1xf32>
    %18 = tpu.reciprocal %17 {approx = true} : vector<1x1xf32> -> vector<1x1xf32>
    %19 = vector.broadcast %18 : vector<1x1xf32> to vector<8x1xf32>
    %20 = arith.mulf %15, %19 : vector<8x1xf32>
    %21 = vector.broadcast %20 : vector<8x1xf32> to vector<8x64xf32>
    %22 = arith.mulf %1, %21 : vector<8x64xf32>
    %23 = arith.truncf %22 : vector<8x64xf32> to vector<8x64xbf16>
    %c0_9 = arith.constant 0 : index
    %c0_10 = arith.constant 0 : index
    %24 = vector.load %arg4[%c0_9, %c0_10] : memref<64x64xbf16, #tpu.memory_space<vmem>>, vector<64x64xbf16>
    %cst_11 = arith.constant dense<0.000000e+00> : vector<8x64xf32>
    %25 = tpu.matmul %23, %24, %cst_11 {dimension_numbers = #tpu.dot_dimension_numbers<[1], [0], [0], [1], [0, 0, 1, 1], [], []>} : vector<8x64xbf16>, vector<64x64xbf16>, vector<8x64xf32> -> vector<8x64xf32>
    %c0_12 = arith.constant 0 : index
    %c0_13 = arith.constant 0 : index
    %26 = vector.load %arg5[%c0_12, %c0_13] : memref<1x64xf32, #tpu.memory_space<vmem>>, vector<1x64xf32>
    %27 = vector.broadcast %26 : vector<1x64xf32> to vector<8x64xf32>
    %28 = arith.addf %25, %27 : vector<8x64xf32>
    %c0_14 = arith.constant 0 : index
    %c0_15 = arith.constant 0 : index
    %c0_16 = arith.constant 0 : index
    %29 = vector.load %arg6[%c0_14, %c0_15, %c0_16] : memref<1x8x64xf32, #tpu.memory_space<vmem>>, vector<1x8x64xf32>
    %30 = vector.shape_cast %29 : vector<1x8x64xf32> to vector<8x64xf32>
    %31 = vector.shape_cast %28 : vector<8x64xf32> to vector<1x8x64xf32>
    tpu.vector_store %arg6[%c0_14, %c0_15, %c0_16], %31 {strides = array<i32>} : memref<1x8x64xf32, #tpu.memory_space<vmem>>, vector<1x8x64xf32>,
    return
  }
  func.func @transform_0(%arg0: i32) -> (i32, i32, i32) {
    %c0_i32 = arith.constant 0 : i32
    %c0_i32_0 = arith.constant 0 : i32
    %c0_i32_1 = arith.constant 0 : i32
    return %arg0, %c0_i32, %c0_i32_0 : i32, i32, i32
  }
  func.func @transform_1(%arg0: i32) -> (i32, i32) {
    %c0_i32 = arith.constant 0 : i32
    %c0_i32_0 = arith.constant 0 : i32
    %c0_i32_1 = arith.constant 0 : i32
    return %c0_i32, %c0_i32_0 : i32, i32
  }
  func.func @transform_2(%arg0: i32) -> (i32, i32) {
    %c0_i32 = arith.constant 0 : i32
    %c0_i32_0 = arith.constant 0 : i32
    %c0_i32_1 = arith.constant 0 : i32
    return %c0_i32, %c0_i32_0 : i32, i32
  }
  func.func @transform_3(%arg0: i32) -> (i32, i32) {
    %c0_i32 = arith.constant 0 : i32
    %c0_i32_0 = arith.constant 0 : i32
    %c0_i32_1 = arith.constant 0 : i32
    return %c0_i32, %c0_i32_0 : i32, i32
  }
  func.func @transform_4(%arg0: i32) -> (i32, i32) {
    %c0_i32 = arith.constant 0 : i32
    %c0_i32_0 = arith.constant 0 : i32
    %c0_i32_1 = arith.constant 0 : i32
    return %c0_i32, %c0_i32_0 : i32, i32
  }
  func.func @transform_5(%arg0: i32) -> (i32, i32, i32) {
    %c0_i32 = arith.constant 0 : i32
    %c0_i32_0 = arith.constant 0 : i32
    %c0_i32_1 = arith.constant 0 : i32
    return %arg0, %c0_i32, %c0_i32_0 : i32, i32, i32
  }
}

module attributes {stable_mosaic.version = 11 : i64} {
  func.func @_bilstm_layer_kernel(%arg0: memref<64x64xbf16, #tpu.memory_space<vmem>>, %arg1: memref<64x256xbf16, #tpu.memory_space<vmem>>, %arg2: memref<32x128xbf16, #tpu.memory_space<vmem>>, %arg3: memref<32x128xbf16, #tpu.memory_space<vmem>>, %arg4: memref<1x256xf32, #tpu.memory_space<vmem>>, %arg5: memref<64x64xf32, #tpu.memory_space<vmem>>, %arg6: memref<64x256xf32, #tpu.memory_space<vmem>>) attributes {dimension_semantics = [], scalar_prefetch = 0 : i64, scratch_operands = 1 : i64, tpu.core_type = #tpu.core_type<tc>} {
    %c0 = arith.constant 0 : index
    %c0_0 = arith.constant 0 : index
    %0 = vector.load %arg0[%c0, %c0_0] : memref<64x64xbf16, #tpu.memory_space<vmem>>, vector<64x64xbf16>
    %c0_1 = arith.constant 0 : index
    %c0_2 = arith.constant 0 : index
    %1 = vector.load %arg1[%c0_1, %c0_2] : memref<64x256xbf16, #tpu.memory_space<vmem>>, vector<64x256xbf16>
    %cst = arith.constant dense<0.000000e+00> : vector<64x256xf32>
    %2 = tpu.matmul %0, %1, %cst {dimension_numbers = #tpu.dot_dimension_numbers<[1], [0], [0], [1], [0, 0, 1, 1], [], []>} : vector<64x64xbf16>, vector<64x256xbf16>, vector<64x256xf32> -> vector<64x256xf32>
    %c0_3 = arith.constant 0 : index
    %c0_4 = arith.constant 0 : index
    %3 = vector.load %arg4[%c0_3, %c0_4] : memref<1x256xf32, #tpu.memory_space<vmem>>, vector<1x256xf32>
    %4 = vector.broadcast %3 : vector<1x256xf32> to vector<64x256xf32>
    %5 = arith.addf %2, %4 : vector<64x256xf32>
    %c0_5 = arith.constant 0 : index
    %c0_6 = arith.constant 0 : index
    %6 = vector.load %arg6[%c0_5, %c0_6] : memref<64x256xf32, #tpu.memory_space<vmem>>, vector<64x256xf32>
    tpu.vector_store %arg6[%c0_5, %c0_6], %5 {strides = array<i32>} : memref<64x256xf32, #tpu.memory_space<vmem>>, vector<64x256xf32>,
    %c0_7 = arith.constant 0 : index
    %c0_8 = arith.constant 0 : index
    %7 = vector.load %arg2[%c0_7, %c0_8] : memref<32x128xbf16, #tpu.memory_space<vmem>>, vector<32x128xbf16>
    %c0_9 = arith.constant 0 : index
    %c0_10 = arith.constant 0 : index
    %8 = vector.load %arg3[%c0_9, %c0_10] : memref<32x128xbf16, #tpu.memory_space<vmem>>, vector<32x128xbf16>
    %cst_11 = arith.constant 0.000000e+00 : f32
    %9 = vector.broadcast %cst_11 : f32 to vector<8x32xf32>
    %cst_12 = arith.constant 0.000000e+00 : f32
    %10 = vector.broadcast %cst_12 : f32 to vector<8x32xf32>
    %cst_13 = arith.constant 0.000000e+00 : f32
    %11 = vector.broadcast %cst_13 : f32 to vector<8x32xf32>
    %cst_14 = arith.constant 0.000000e+00 : f32
    %12 = vector.broadcast %cst_14 : f32 to vector<8x32xf32>
    %c0_i32 = arith.constant 0 : i32
    %c8_i32 = arith.constant 8 : i32
    %13 = arith.muli %c0_i32, %c8_i32 : i32
    %14 = tpu.assume_multiple %13, 8 : i32
    %c7_i32 = arith.constant 7 : i32
    %15 = arith.subi %c7_i32, %c0_i32 : i32
    %c8_i32_15 = arith.constant 8 : i32
    %16 = arith.muli %15, %c8_i32_15 : i32
    %17 = tpu.assume_multiple %16, 8 : i32
    %18 = arith.index_cast %14 : i32 to index
    %c0_16 = arith.constant 0 : index
    %19 = vector.load %arg6[%18, %c0_16] : memref<64x256xf32, #tpu.memory_space<vmem>>, vector<8x128xf32>
    %20 = arith.truncf %9 : vector<8x32xf32> to vector<8x32xbf16>
    %cst_17 = arith.constant dense<0.000000e+00> : vector<8x128xf32>
    %21 = tpu.matmul %20, %7, %cst_17 {dimension_numbers = #tpu.dot_dimension_numbers<[1], [0], [0], [1], [0, 0, 1, 1], [], []>} : vector<8x32xbf16>, vector<32x128xbf16>, vector<8x128xf32> -> vector<8x128xf32>
    %22 = arith.addf %19, %21 : vector<8x128xf32>
    %23 = arith.index_cast %17 : i32 to index
    %c128 = arith.constant 128 : index
    %24 = vector.load %arg6[%23, %c128] : memref<64x256xf32, #tpu.memory_space<vmem>>, vector<8x128xf32>
    %25 = arith.truncf %11 : vector<8x32xf32> to vector<8x32xbf16>
    %cst_18 = arith.constant dense<0.000000e+00> : vector<8x128xf32>
    %26 = tpu.matmul %25, %8, %cst_18 {dimension_numbers = #tpu.dot_dimension_numbers<[1], [0], [0], [1], [0, 0, 1, 1], [], []>} : vector<8x32xbf16>, vector<32x128xbf16>, vector<8x128xf32> -> vector<8x128xf32>
    %27 = arith.addf %24, %26 : vector<8x128xf32>
    %28 = vector.extract_strided_slice %22 {offsets = [0, 0], sizes = [8, 96], strides = [1, 1]} : vector<8x128xf32> to vector<8x96xf32>
    %29 = arith.negf %28 : vector<8x96xf32>
    %30 = math.exp %29 : vector<8x96xf32>
    %cst_19 = arith.constant 1.000000e+00 : f32
    %31 = vector.broadcast %cst_19 : f32 to vector<8x96xf32>
    %32 = arith.addf %31, %30 : vector<8x96xf32>
    %33 = arith.divf %31, %32 : vector<8x96xf32>
    %34 = vector.extract_strided_slice %22 {offsets = [0, 96], sizes = [8, 32], strides = [1, 1]} : vector<8x128xf32> to vector<8x32xf32>
    %35 = math.tanh %34 : vector<8x32xf32>
    %36 = vector.extract_strided_slice %27 {offsets = [0, 0], sizes = [8, 96], strides = [1, 1]} : vector<8x128xf32> to vector<8x96xf32>
    %37 = arith.negf %36 : vector<8x96xf32>
    %38 = math.exp %37 : vector<8x96xf32>
    %cst_20 = arith.constant 1.000000e+00 : f32
    %39 = vector.broadcast %cst_20 : f32 to vector<8x96xf32>
    %40 = arith.addf %39, %38 : vector<8x96xf32>
    %41 = arith.divf %39, %40 : vector<8x96xf32>
    %42 = vector.extract_strided_slice %27 {offsets = [0, 96], sizes = [8, 32], strides = [1, 1]} : vector<8x128xf32> to vector<8x32xf32>
    %43 = math.tanh %42 : vector<8x32xf32>
    %44 = vector.extract_strided_slice %33 {offsets = [0, 0], sizes = [8, 32], strides = [1, 1]} : vector<8x96xf32> to vector<8x32xf32>
    %45 = vector.extract_strided_slice %33 {offsets = [0, 32], sizes = [8, 32], strides = [1, 1]} : vector<8x96xf32> to vector<8x32xf32>
    %46 = vector.extract_strided_slice %33 {offsets = [0, 64], sizes = [8, 32], strides = [1, 1]} : vector<8x96xf32> to vector<8x32xf32>
    %47 = vector.extract_strided_slice %41 {offsets = [0, 0], sizes = [8, 32], strides = [1, 1]} : vector<8x96xf32> to vector<8x32xf32>
    %48 = vector.extract_strided_slice %41 {offsets = [0, 32], sizes = [8, 32], strides = [1, 1]} : vector<8x96xf32> to vector<8x32xf32>
    %49 = vector.extract_strided_slice %41 {offsets = [0, 64], sizes = [8, 32], strides = [1, 1]} : vector<8x96xf32> to vector<8x32xf32>
    %50 = arith.mulf %45, %10 : vector<8x32xf32>
    %51 = arith.mulf %44, %35 : vector<8x32xf32>
    %52 = arith.addf %50, %51 : vector<8x32xf32>
    %53 = arith.mulf %48, %12 : vector<8x32xf32>
    %54 = arith.mulf %47, %43 : vector<8x32xf32>
    %55 = arith.addf %53, %54 : vector<8x32xf32>
    %56 = math.tanh %52 : vector<8x32xf32>
    %57 = arith.mulf %46, %56 : vector<8x32xf32>
    %58 = math.tanh %55 : vector<8x32xf32>
    %59 = arith.mulf %49, %58 : vector<8x32xf32>
    %60 = arith.index_cast %14 : i32 to index
    %c0_21 = arith.constant 0 : index
    %61 = vector.load %arg5[%60, %c0_21] : memref<64x64xf32, #tpu.memory_space<vmem>>, vector<8x32xf32>
    tpu.vector_store %arg5[%60, %c0_21], %57 {strides = array<i32>} : memref<64x64xf32, #tpu.memory_space<vmem>>, vector<8x32xf32>,
    %62 = arith.index_cast %17 : i32 to index
    %c32 = arith.constant 32 : index
    %63 = vector.load %arg5[%62, %c32] : memref<64x64xf32, #tpu.memory_space<vmem>>, vector<8x32xf32>
    tpu.vector_store %arg5[%62, %c32], %59 {strides = array<i32>} : memref<64x64xf32, #tpu.memory_space<vmem>>, vector<8x32xf32>,
    %c1_i32 = arith.constant 1 : i32
    %c8_i32_22 = arith.constant 8 : i32
    %64 = arith.muli %c1_i32, %c8_i32_22 : i32
    %65 = tpu.assume_multiple %64, 8 : i32
    %c7_i32_23 = arith.constant 7 : i32
    %66 = arith.subi %c7_i32_23, %c1_i32 : i32
    %c8_i32_24 = arith.constant 8 : i32
    %67 = arith.muli %66, %c8_i32_24 : i32
    %68 = tpu.assume_multiple %67, 8 : i32
    %69 = arith.index_cast %65 : i32 to index
    %c0_25 = arith.constant 0 : index
    %70 = vector.load %arg6[%69, %c0_25] : memref<64x256xf32, #tpu.memory_space<vmem>>, vector<8x128xf32>
    %71 = arith.truncf %57 : vector<8x32xf32> to vector<8x32xbf16>
    %cst_26 = arith.constant dense<0.000000e+00> : vector<8x128xf32>
    %72 = tpu.matmul %71, %7, %cst_26 {dimension_numbers = #tpu.dot_dimension_numbers<[1], [0], [0], [1], [0, 0, 1, 1], [], []>} : vector<8x32xbf16>, vector<32x128xbf16>, vector<8x128xf32> -> vector<8x128xf32>
    %73 = arith.addf %70, %72 : vector<8x128xf32>
    %74 = arith.index_cast %68 : i32 to index
    %c128_27 = arith.constant 128 : index
    %75 = vector.load %arg6[%74, %c128_27] : memref<64x256xf32, #tpu.memory_space<vmem>>, vector<8x128xf32>
    %76 = arith.truncf %59 : vector<8x32xf32> to vector<8x32xbf16>
    %cst_28 = arith.constant dense<0.000000e+00> : vector<8x128xf32>
    %77 = tpu.matmul %76, %8, %cst_28 {dimension_numbers = #tpu.dot_dimension_numbers<[1], [0], [0], [1], [0, 0, 1, 1], [], []>} : vector<8x32xbf16>, vector<32x128xbf16>, vector<8x128xf32> -> vector<8x128xf32>
    %78 = arith.addf %75, %77 : vector<8x128xf32>
    %79 = vector.extract_strided_slice %73 {offsets = [0, 0], sizes = [8, 96], strides = [1, 1]} : vector<8x128xf32> to vector<8x96xf32>
    %80 = arith.negf %79 : vector<8x96xf32>
    %81 = math.exp %80 : vector<8x96xf32>
    %cst_29 = arith.constant 1.000000e+00 : f32
    %82 = vector.broadcast %cst_29 : f32 to vector<8x96xf32>
    %83 = arith.addf %82, %81 : vector<8x96xf32>
    %84 = arith.divf %82, %83 : vector<8x96xf32>
    %85 = vector.extract_strided_slice %73 {offsets = [0, 96], sizes = [8, 32], strides = [1, 1]} : vector<8x128xf32> to vector<8x32xf32>
    %86 = math.tanh %85 : vector<8x32xf32>
    %87 = vector.extract_strided_slice %78 {offsets = [0, 0], sizes = [8, 96], strides = [1, 1]} : vector<8x128xf32> to vector<8x96xf32>
    %88 = arith.negf %87 : vector<8x96xf32>
    %89 = math.exp %88 : vector<8x96xf32>
    %cst_30 = arith.constant 1.000000e+00 : f32
    %90 = vector.broadcast %cst_30 : f32 to vector<8x96xf32>
    %91 = arith.addf %90, %89 : vector<8x96xf32>
    %92 = arith.divf %90, %91 : vector<8x96xf32>
    %93 = vector.extract_strided_slice %78 {offsets = [0, 96], sizes = [8, 32], strides = [1, 1]} : vector<8x128xf32> to vector<8x32xf32>
    %94 = math.tanh %93 : vector<8x32xf32>
    %95 = vector.extract_strided_slice %84 {offsets = [0, 0], sizes = [8, 32], strides = [1, 1]} : vector<8x96xf32> to vector<8x32xf32>
    %96 = vector.extract_strided_slice %84 {offsets = [0, 32], sizes = [8, 32], strides = [1, 1]} : vector<8x96xf32> to vector<8x32xf32>
    %97 = vector.extract_strided_slice %84 {offsets = [0, 64], sizes = [8, 32], strides = [1, 1]} : vector<8x96xf32> to vector<8x32xf32>
    %98 = vector.extract_strided_slice %92 {offsets = [0, 0], sizes = [8, 32], strides = [1, 1]} : vector<8x96xf32> to vector<8x32xf32>
    %99 = vector.extract_strided_slice %92 {offsets = [0, 32], sizes = [8, 32], strides = [1, 1]} : vector<8x96xf32> to vector<8x32xf32>
    %100 = vector.extract_strided_slice %92 {offsets = [0, 64], sizes = [8, 32], strides = [1, 1]} : vector<8x96xf32> to vector<8x32xf32>
    %101 = arith.mulf %96, %52 : vector<8x32xf32>
    %102 = arith.mulf %95, %86 : vector<8x32xf32>
    %103 = arith.addf %101, %102 : vector<8x32xf32>
    %104 = arith.mulf %99, %55 : vector<8x32xf32>
    %105 = arith.mulf %98, %94 : vector<8x32xf32>
    %106 = arith.addf %104, %105 : vector<8x32xf32>
    %107 = math.tanh %103 : vector<8x32xf32>
    %108 = arith.mulf %97, %107 : vector<8x32xf32>
    %109 = math.tanh %106 : vector<8x32xf32>
    %110 = arith.mulf %100, %109 : vector<8x32xf32>
    %111 = arith.index_cast %65 : i32 to index
    %c0_31 = arith.constant 0 : index
    %112 = vector.load %arg5[%111, %c0_31] : memref<64x64xf32, #tpu.memory_space<vmem>>, vector<8x32xf32>
    tpu.vector_store %arg5[%111, %c0_31], %108 {strides = array<i32>} : memref<64x64xf32, #tpu.memory_space<vmem>>, vector<8x32xf32>,
    %113 = arith.index_cast %68 : i32 to index
    %c32_32 = arith.constant 32 : index
    %114 = vector.load %arg5[%113, %c32_32] : memref<64x64xf32, #tpu.memory_space<vmem>>, vector<8x32xf32>
    tpu.vector_store %arg5[%113, %c32_32], %110 {strides = array<i32>} : memref<64x64xf32, #tpu.memory_space<vmem>>, vector<8x32xf32>,
    %c2_i32 = arith.constant 2 : i32
    %c8_i32_33 = arith.constant 8 : i32
    %115 = arith.muli %c2_i32, %c8_i32_33 : i32
    %116 = tpu.assume_multiple %115, 8 : i32
    %c7_i32_34 = arith.constant 7 : i32
    %117 = arith.subi %c7_i32_34, %c2_i32 : i32
    %c8_i32_35 = arith.constant 8 : i32
    %118 = arith.muli %117, %c8_i32_35 : i32
    %119 = tpu.assume_multiple %118, 8 : i32
    %120 = arith.index_cast %116 : i32 to index
    %c0_36 = arith.constant 0 : index
    %121 = vector.load %arg6[%120, %c0_36] : memref<64x256xf32, #tpu.memory_space<vmem>>, vector<8x128xf32>
    %122 = arith.truncf %108 : vector<8x32xf32> to vector<8x32xbf16>
    %cst_37 = arith.constant dense<0.000000e+00> : vector<8x128xf32>
    %123 = tpu.matmul %122, %7, %cst_37 {dimension_numbers = #tpu.dot_dimension_numbers<[1], [0], [0], [1], [0, 0, 1, 1], [], []>} : vector<8x32xbf16>, vector<32x128xbf16>, vector<8x128xf32> -> vector<8x128xf32>
    %124 = arith.addf %121, %123 : vector<8x128xf32>
    %125 = arith.index_cast %119 : i32 to index
    %c128_38 = arith.constant 128 : index
    %126 = vector.load %arg6[%125, %c128_38] : memref<64x256xf32, #tpu.memory_space<vmem>>, vector<8x128xf32>
    %127 = arith.truncf %110 : vector<8x32xf32> to vector<8x32xbf16>
    %cst_39 = arith.constant dense<0.000000e+00> : vector<8x128xf32>
    %128 = tpu.matmul %127, %8, %cst_39 {dimension_numbers = #tpu.dot_dimension_numbers<[1], [0], [0], [1], [0, 0, 1, 1], [], []>} : vector<8x32xbf16>, vector<32x128xbf16>, vector<8x128xf32> -> vector<8x128xf32>
    %129 = arith.addf %126, %128 : vector<8x128xf32>
    %130 = vector.extract_strided_slice %124 {offsets = [0, 0], sizes = [8, 96], strides = [1, 1]} : vector<8x128xf32> to vector<8x96xf32>
    %131 = arith.negf %130 : vector<8x96xf32>
    %132 = math.exp %131 : vector<8x96xf32>
    %cst_40 = arith.constant 1.000000e+00 : f32
    %133 = vector.broadcast %cst_40 : f32 to vector<8x96xf32>
    %134 = arith.addf %133, %132 : vector<8x96xf32>
    %135 = arith.divf %133, %134 : vector<8x96xf32>
    %136 = vector.extract_strided_slice %124 {offsets = [0, 96], sizes = [8, 32], strides = [1, 1]} : vector<8x128xf32> to vector<8x32xf32>
    %137 = math.tanh %136 : vector<8x32xf32>
    %138 = vector.extract_strided_slice %129 {offsets = [0, 0], sizes = [8, 96], strides = [1, 1]} : vector<8x128xf32> to vector<8x96xf32>
    %139 = arith.negf %138 : vector<8x96xf32>
    %140 = math.exp %139 : vector<8x96xf32>
    %cst_41 = arith.constant 1.000000e+00 : f32
    %141 = vector.broadcast %cst_41 : f32 to vector<8x96xf32>
    %142 = arith.addf %141, %140 : vector<8x96xf32>
    %143 = arith.divf %141, %142 : vector<8x96xf32>
    %144 = vector.extract_strided_slice %129 {offsets = [0, 96], sizes = [8, 32], strides = [1, 1]} : vector<8x128xf32> to vector<8x32xf32>
    %145 = math.tanh %144 : vector<8x32xf32>
    %146 = vector.extract_strided_slice %135 {offsets = [0, 0], sizes = [8, 32], strides = [1, 1]} : vector<8x96xf32> to vector<8x32xf32>
    %147 = vector.extract_strided_slice %135 {offsets = [0, 32], sizes = [8, 32], strides = [1, 1]} : vector<8x96xf32> to vector<8x32xf32>
    %148 = vector.extract_strided_slice %135 {offsets = [0, 64], sizes = [8, 32], strides = [1, 1]} : vector<8x96xf32> to vector<8x32xf32>
    %149 = vector.extract_strided_slice %143 {offsets = [0, 0], sizes = [8, 32], strides = [1, 1]} : vector<8x96xf32> to vector<8x32xf32>
    %150 = vector.extract_strided_slice %143 {offsets = [0, 32], sizes = [8, 32], strides = [1, 1]} : vector<8x96xf32> to vector<8x32xf32>
    %151 = vector.extract_strided_slice %143 {offsets = [0, 64], sizes = [8, 32], strides = [1, 1]} : vector<8x96xf32> to vector<8x32xf32>
    %152 = arith.mulf %147, %103 : vector<8x32xf32>
    %153 = arith.mulf %146, %137 : vector<8x32xf32>
    %154 = arith.addf %152, %153 : vector<8x32xf32>
    %155 = arith.mulf %150, %106 : vector<8x32xf32>
    %156 = arith.mulf %149, %145 : vector<8x32xf32>
    %157 = arith.addf %155, %156 : vector<8x32xf32>
    %158 = math.tanh %154 : vector<8x32xf32>
    %159 = arith.mulf %148, %158 : vector<8x32xf32>
    %160 = math.tanh %157 : vector<8x32xf32>
    %161 = arith.mulf %151, %160 : vector<8x32xf32>
    %162 = arith.index_cast %116 : i32 to index
    %c0_42 = arith.constant 0 : index
    %163 = vector.load %arg5[%162, %c0_42] : memref<64x64xf32, #tpu.memory_space<vmem>>, vector<8x32xf32>
    tpu.vector_store %arg5[%162, %c0_42], %159 {strides = array<i32>} : memref<64x64xf32, #tpu.memory_space<vmem>>, vector<8x32xf32>,
    %164 = arith.index_cast %119 : i32 to index
    %c32_43 = arith.constant 32 : index
    %165 = vector.load %arg5[%164, %c32_43] : memref<64x64xf32, #tpu.memory_space<vmem>>, vector<8x32xf32>
    tpu.vector_store %arg5[%164, %c32_43], %161 {strides = array<i32>} : memref<64x64xf32, #tpu.memory_space<vmem>>, vector<8x32xf32>,
    %c3_i32 = arith.constant 3 : i32
    %c8_i32_44 = arith.constant 8 : i32
    %166 = arith.muli %c3_i32, %c8_i32_44 : i32
    %167 = tpu.assume_multiple %166, 8 : i32
    %c7_i32_45 = arith.constant 7 : i32
    %168 = arith.subi %c7_i32_45, %c3_i32 : i32
    %c8_i32_46 = arith.constant 8 : i32
    %169 = arith.muli %168, %c8_i32_46 : i32
    %170 = tpu.assume_multiple %169, 8 : i32
    %171 = arith.index_cast %167 : i32 to index
    %c0_47 = arith.constant 0 : index
    %172 = vector.load %arg6[%171, %c0_47] : memref<64x256xf32, #tpu.memory_space<vmem>>, vector<8x128xf32>
    %173 = arith.truncf %159 : vector<8x32xf32> to vector<8x32xbf16>
    %cst_48 = arith.constant dense<0.000000e+00> : vector<8x128xf32>
    %174 = tpu.matmul %173, %7, %cst_48 {dimension_numbers = #tpu.dot_dimension_numbers<[1], [0], [0], [1], [0, 0, 1, 1], [], []>} : vector<8x32xbf16>, vector<32x128xbf16>, vector<8x128xf32> -> vector<8x128xf32>
    %175 = arith.addf %172, %174 : vector<8x128xf32>
    %176 = arith.index_cast %170 : i32 to index
    %c128_49 = arith.constant 128 : index
    %177 = vector.load %arg6[%176, %c128_49] : memref<64x256xf32, #tpu.memory_space<vmem>>, vector<8x128xf32>
    %178 = arith.truncf %161 : vector<8x32xf32> to vector<8x32xbf16>
    %cst_50 = arith.constant dense<0.000000e+00> : vector<8x128xf32>
    %179 = tpu.matmul %178, %8, %cst_50 {dimension_numbers = #tpu.dot_dimension_numbers<[1], [0], [0], [1], [0, 0, 1, 1], [], []>} : vector<8x32xbf16>, vector<32x128xbf16>, vector<8x128xf32> -> vector<8x128xf32>
    %180 = arith.addf %177, %179 : vector<8x128xf32>
    %181 = vector.extract_strided_slice %175 {offsets = [0, 0], sizes = [8, 96], strides = [1, 1]} : vector<8x128xf32> to vector<8x96xf32>
    %182 = arith.negf %181 : vector<8x96xf32>
    %183 = math.exp %182 : vector<8x96xf32>
    %cst_51 = arith.constant 1.000000e+00 : f32
    %184 = vector.broadcast %cst_51 : f32 to vector<8x96xf32>
    %185 = arith.addf %184, %183 : vector<8x96xf32>
    %186 = arith.divf %184, %185 : vector<8x96xf32>
    %187 = vector.extract_strided_slice %175 {offsets = [0, 96], sizes = [8, 32], strides = [1, 1]} : vector<8x128xf32> to vector<8x32xf32>
    %188 = math.tanh %187 : vector<8x32xf32>
    %189 = vector.extract_strided_slice %180 {offsets = [0, 0], sizes = [8, 96], strides = [1, 1]} : vector<8x128xf32> to vector<8x96xf32>
    %190 = arith.negf %189 : vector<8x96xf32>
    %191 = math.exp %190 : vector<8x96xf32>
    %cst_52 = arith.constant 1.000000e+00 : f32
    %192 = vector.broadcast %cst_52 : f32 to vector<8x96xf32>
    %193 = arith.addf %192, %191 : vector<8x96xf32>
    %194 = arith.divf %192, %193 : vector<8x96xf32>
    %195 = vector.extract_strided_slice %180 {offsets = [0, 96], sizes = [8, 32], strides = [1, 1]} : vector<8x128xf32> to vector<8x32xf32>
    %196 = math.tanh %195 : vector<8x32xf32>
    %197 = vector.extract_strided_slice %186 {offsets = [0, 0], sizes = [8, 32], strides = [1, 1]} : vector<8x96xf32> to vector<8x32xf32>
    %198 = vector.extract_strided_slice %186 {offsets = [0, 32], sizes = [8, 32], strides = [1, 1]} : vector<8x96xf32> to vector<8x32xf32>
    %199 = vector.extract_strided_slice %186 {offsets = [0, 64], sizes = [8, 32], strides = [1, 1]} : vector<8x96xf32> to vector<8x32xf32>
    %200 = vector.extract_strided_slice %194 {offsets = [0, 0], sizes = [8, 32], strides = [1, 1]} : vector<8x96xf32> to vector<8x32xf32>
    %201 = vector.extract_strided_slice %194 {offsets = [0, 32], sizes = [8, 32], strides = [1, 1]} : vector<8x96xf32> to vector<8x32xf32>
    %202 = vector.extract_strided_slice %194 {offsets = [0, 64], sizes = [8, 32], strides = [1, 1]} : vector<8x96xf32> to vector<8x32xf32>
    %203 = arith.mulf %198, %154 : vector<8x32xf32>
    %204 = arith.mulf %197, %188 : vector<8x32xf32>
    %205 = arith.addf %203, %204 : vector<8x32xf32>
    %206 = arith.mulf %201, %157 : vector<8x32xf32>
    %207 = arith.mulf %200, %196 : vector<8x32xf32>
    %208 = arith.addf %206, %207 : vector<8x32xf32>
    %209 = math.tanh %205 : vector<8x32xf32>
    %210 = arith.mulf %199, %209 : vector<8x32xf32>
    %211 = math.tanh %208 : vector<8x32xf32>
    %212 = arith.mulf %202, %211 : vector<8x32xf32>
    %213 = arith.index_cast %167 : i32 to index
    %c0_53 = arith.constant 0 : index
    %214 = vector.load %arg5[%213, %c0_53] : memref<64x64xf32, #tpu.memory_space<vmem>>, vector<8x32xf32>
    tpu.vector_store %arg5[%213, %c0_53], %210 {strides = array<i32>} : memref<64x64xf32, #tpu.memory_space<vmem>>, vector<8x32xf32>,
    %215 = arith.index_cast %170 : i32 to index
    %c32_54 = arith.constant 32 : index
    %216 = vector.load %arg5[%215, %c32_54] : memref<64x64xf32, #tpu.memory_space<vmem>>, vector<8x32xf32>
    tpu.vector_store %arg5[%215, %c32_54], %212 {strides = array<i32>} : memref<64x64xf32, #tpu.memory_space<vmem>>, vector<8x32xf32>,
    %c4_i32 = arith.constant 4 : i32
    %c8_i32_55 = arith.constant 8 : i32
    %217 = arith.muli %c4_i32, %c8_i32_55 : i32
    %218 = tpu.assume_multiple %217, 8 : i32
    %c7_i32_56 = arith.constant 7 : i32
    %219 = arith.subi %c7_i32_56, %c4_i32 : i32
    %c8_i32_57 = arith.constant 8 : i32
    %220 = arith.muli %219, %c8_i32_57 : i32
    %221 = tpu.assume_multiple %220, 8 : i32
    %222 = arith.index_cast %218 : i32 to index
    %c0_58 = arith.constant 0 : index
    %223 = vector.load %arg6[%222, %c0_58] : memref<64x256xf32, #tpu.memory_space<vmem>>, vector<8x128xf32>
    %224 = arith.truncf %210 : vector<8x32xf32> to vector<8x32xbf16>
    %cst_59 = arith.constant dense<0.000000e+00> : vector<8x128xf32>
    %225 = tpu.matmul %224, %7, %cst_59 {dimension_numbers = #tpu.dot_dimension_numbers<[1], [0], [0], [1], [0, 0, 1, 1], [], []>} : vector<8x32xbf16>, vector<32x128xbf16>, vector<8x128xf32> -> vector<8x128xf32>
    %226 = arith.addf %223, %225 : vector<8x128xf32>
    %227 = arith.index_cast %221 : i32 to index
    %c128_60 = arith.constant 128 : index
    %228 = vector.load %arg6[%227, %c128_60] : memref<64x256xf32, #tpu.memory_space<vmem>>, vector<8x128xf32>
    %229 = arith.truncf %212 : vector<8x32xf32> to vector<8x32xbf16>
    %cst_61 = arith.constant dense<0.000000e+00> : vector<8x128xf32>
    %230 = tpu.matmul %229, %8, %cst_61 {dimension_numbers = #tpu.dot_dimension_numbers<[1], [0], [0], [1], [0, 0, 1, 1], [], []>} : vector<8x32xbf16>, vector<32x128xbf16>, vector<8x128xf32> -> vector<8x128xf32>
    %231 = arith.addf %228, %230 : vector<8x128xf32>
    %232 = vector.extract_strided_slice %226 {offsets = [0, 0], sizes = [8, 96], strides = [1, 1]} : vector<8x128xf32> to vector<8x96xf32>
    %233 = arith.negf %232 : vector<8x96xf32>
    %234 = math.exp %233 : vector<8x96xf32>
    %cst_62 = arith.constant 1.000000e+00 : f32
    %235 = vector.broadcast %cst_62 : f32 to vector<8x96xf32>
    %236 = arith.addf %235, %234 : vector<8x96xf32>
    %237 = arith.divf %235, %236 : vector<8x96xf32>
    %238 = vector.extract_strided_slice %226 {offsets = [0, 96], sizes = [8, 32], strides = [1, 1]} : vector<8x128xf32> to vector<8x32xf32>
    %239 = math.tanh %238 : vector<8x32xf32>
    %240 = vector.extract_strided_slice %231 {offsets = [0, 0], sizes = [8, 96], strides = [1, 1]} : vector<8x128xf32> to vector<8x96xf32>
    %241 = arith.negf %240 : vector<8x96xf32>
    %242 = math.exp %241 : vector<8x96xf32>
    %cst_63 = arith.constant 1.000000e+00 : f32
    %243 = vector.broadcast %cst_63 : f32 to vector<8x96xf32>
    %244 = arith.addf %243, %242 : vector<8x96xf32>
    %245 = arith.divf %243, %244 : vector<8x96xf32>
    %246 = vector.extract_strided_slice %231 {offsets = [0, 96], sizes = [8, 32], strides = [1, 1]} : vector<8x128xf32> to vector<8x32xf32>
    %247 = math.tanh %246 : vector<8x32xf32>
    %248 = vector.extract_strided_slice %237 {offsets = [0, 0], sizes = [8, 32], strides = [1, 1]} : vector<8x96xf32> to vector<8x32xf32>
    %249 = vector.extract_strided_slice %237 {offsets = [0, 32], sizes = [8, 32], strides = [1, 1]} : vector<8x96xf32> to vector<8x32xf32>
    %250 = vector.extract_strided_slice %237 {offsets = [0, 64], sizes = [8, 32], strides = [1, 1]} : vector<8x96xf32> to vector<8x32xf32>
    %251 = vector.extract_strided_slice %245 {offsets = [0, 0], sizes = [8, 32], strides = [1, 1]} : vector<8x96xf32> to vector<8x32xf32>
    %252 = vector.extract_strided_slice %245 {offsets = [0, 32], sizes = [8, 32], strides = [1, 1]} : vector<8x96xf32> to vector<8x32xf32>
    %253 = vector.extract_strided_slice %245 {offsets = [0, 64], sizes = [8, 32], strides = [1, 1]} : vector<8x96xf32> to vector<8x32xf32>
    %254 = arith.mulf %249, %205 : vector<8x32xf32>
    %255 = arith.mulf %248, %239 : vector<8x32xf32>
    %256 = arith.addf %254, %255 : vector<8x32xf32>
    %257 = arith.mulf %252, %208 : vector<8x32xf32>
    %258 = arith.mulf %251, %247 : vector<8x32xf32>
    %259 = arith.addf %257, %258 : vector<8x32xf32>
    %260 = math.tanh %256 : vector<8x32xf32>
    %261 = arith.mulf %250, %260 : vector<8x32xf32>
    %262 = math.tanh %259 : vector<8x32xf32>
    %263 = arith.mulf %253, %262 : vector<8x32xf32>
    %264 = arith.index_cast %218 : i32 to index
    %c0_64 = arith.constant 0 : index
    %265 = vector.load %arg5[%264, %c0_64] : memref<64x64xf32, #tpu.memory_space<vmem>>, vector<8x32xf32>
    tpu.vector_store %arg5[%264, %c0_64], %261 {strides = array<i32>} : memref<64x64xf32, #tpu.memory_space<vmem>>, vector<8x32xf32>,
    %266 = arith.index_cast %221 : i32 to index
    %c32_65 = arith.constant 32 : index
    %267 = vector.load %arg5[%266, %c32_65] : memref<64x64xf32, #tpu.memory_space<vmem>>, vector<8x32xf32>
    tpu.vector_store %arg5[%266, %c32_65], %263 {strides = array<i32>} : memref<64x64xf32, #tpu.memory_space<vmem>>, vector<8x32xf32>,
    %c5_i32 = arith.constant 5 : i32
    %c8_i32_66 = arith.constant 8 : i32
    %268 = arith.muli %c5_i32, %c8_i32_66 : i32
    %269 = tpu.assume_multiple %268, 8 : i32
    %c7_i32_67 = arith.constant 7 : i32
    %270 = arith.subi %c7_i32_67, %c5_i32 : i32
    %c8_i32_68 = arith.constant 8 : i32
    %271 = arith.muli %270, %c8_i32_68 : i32
    %272 = tpu.assume_multiple %271, 8 : i32
    %273 = arith.index_cast %269 : i32 to index
    %c0_69 = arith.constant 0 : index
    %274 = vector.load %arg6[%273, %c0_69] : memref<64x256xf32, #tpu.memory_space<vmem>>, vector<8x128xf32>
    %275 = arith.truncf %261 : vector<8x32xf32> to vector<8x32xbf16>
    %cst_70 = arith.constant dense<0.000000e+00> : vector<8x128xf32>
    %276 = tpu.matmul %275, %7, %cst_70 {dimension_numbers = #tpu.dot_dimension_numbers<[1], [0], [0], [1], [0, 0, 1, 1], [], []>} : vector<8x32xbf16>, vector<32x128xbf16>, vector<8x128xf32> -> vector<8x128xf32>
    %277 = arith.addf %274, %276 : vector<8x128xf32>
    %278 = arith.index_cast %272 : i32 to index
    %c128_71 = arith.constant 128 : index
    %279 = vector.load %arg6[%278, %c128_71] : memref<64x256xf32, #tpu.memory_space<vmem>>, vector<8x128xf32>
    %280 = arith.truncf %263 : vector<8x32xf32> to vector<8x32xbf16>
    %cst_72 = arith.constant dense<0.000000e+00> : vector<8x128xf32>
    %281 = tpu.matmul %280, %8, %cst_72 {dimension_numbers = #tpu.dot_dimension_numbers<[1], [0], [0], [1], [0, 0, 1, 1], [], []>} : vector<8x32xbf16>, vector<32x128xbf16>, vector<8x128xf32> -> vector<8x128xf32>
    %282 = arith.addf %279, %281 : vector<8x128xf32>
    %283 = vector.extract_strided_slice %277 {offsets = [0, 0], sizes = [8, 96], strides = [1, 1]} : vector<8x128xf32> to vector<8x96xf32>
    %284 = arith.negf %283 : vector<8x96xf32>
    %285 = math.exp %284 : vector<8x96xf32>
    %cst_73 = arith.constant 1.000000e+00 : f32
    %286 = vector.broadcast %cst_73 : f32 to vector<8x96xf32>
    %287 = arith.addf %286, %285 : vector<8x96xf32>
    %288 = arith.divf %286, %287 : vector<8x96xf32>
    %289 = vector.extract_strided_slice %277 {offsets = [0, 96], sizes = [8, 32], strides = [1, 1]} : vector<8x128xf32> to vector<8x32xf32>
    %290 = math.tanh %289 : vector<8x32xf32>
    %291 = vector.extract_strided_slice %282 {offsets = [0, 0], sizes = [8, 96], strides = [1, 1]} : vector<8x128xf32> to vector<8x96xf32>
    %292 = arith.negf %291 : vector<8x96xf32>
    %293 = math.exp %292 : vector<8x96xf32>
    %cst_74 = arith.constant 1.000000e+00 : f32
    %294 = vector.broadcast %cst_74 : f32 to vector<8x96xf32>
    %295 = arith.addf %294, %293 : vector<8x96xf32>
    %296 = arith.divf %294, %295 : vector<8x96xf32>
    %297 = vector.extract_strided_slice %282 {offsets = [0, 96], sizes = [8, 32], strides = [1, 1]} : vector<8x128xf32> to vector<8x32xf32>
    %298 = math.tanh %297 : vector<8x32xf32>
    %299 = vector.extract_strided_slice %288 {offsets = [0, 0], sizes = [8, 32], strides = [1, 1]} : vector<8x96xf32> to vector<8x32xf32>
    %300 = vector.extract_strided_slice %288 {offsets = [0, 32], sizes = [8, 32], strides = [1, 1]} : vector<8x96xf32> to vector<8x32xf32>
    %301 = vector.extract_strided_slice %288 {offsets = [0, 64], sizes = [8, 32], strides = [1, 1]} : vector<8x96xf32> to vector<8x32xf32>
    %302 = vector.extract_strided_slice %296 {offsets = [0, 0], sizes = [8, 32], strides = [1, 1]} : vector<8x96xf32> to vector<8x32xf32>
    %303 = vector.extract_strided_slice %296 {offsets = [0, 32], sizes = [8, 32], strides = [1, 1]} : vector<8x96xf32> to vector<8x32xf32>
    %304 = vector.extract_strided_slice %296 {offsets = [0, 64], sizes = [8, 32], strides = [1, 1]} : vector<8x96xf32> to vector<8x32xf32>
    %305 = arith.mulf %300, %256 : vector<8x32xf32>
    %306 = arith.mulf %299, %290 : vector<8x32xf32>
    %307 = arith.addf %305, %306 : vector<8x32xf32>
    %308 = arith.mulf %303, %259 : vector<8x32xf32>
    %309 = arith.mulf %302, %298 : vector<8x32xf32>
    %310 = arith.addf %308, %309 : vector<8x32xf32>
    %311 = math.tanh %307 : vector<8x32xf32>
    %312 = arith.mulf %301, %311 : vector<8x32xf32>
    %313 = math.tanh %310 : vector<8x32xf32>
    %314 = arith.mulf %304, %313 : vector<8x32xf32>
    %315 = arith.index_cast %269 : i32 to index
    %c0_75 = arith.constant 0 : index
    %316 = vector.load %arg5[%315, %c0_75] : memref<64x64xf32, #tpu.memory_space<vmem>>, vector<8x32xf32>
    tpu.vector_store %arg5[%315, %c0_75], %312 {strides = array<i32>} : memref<64x64xf32, #tpu.memory_space<vmem>>, vector<8x32xf32>,
    %317 = arith.index_cast %272 : i32 to index
    %c32_76 = arith.constant 32 : index
    %318 = vector.load %arg5[%317, %c32_76] : memref<64x64xf32, #tpu.memory_space<vmem>>, vector<8x32xf32>
    tpu.vector_store %arg5[%317, %c32_76], %314 {strides = array<i32>} : memref<64x64xf32, #tpu.memory_space<vmem>>, vector<8x32xf32>,
    %c6_i32 = arith.constant 6 : i32
    %c8_i32_77 = arith.constant 8 : i32
    %319 = arith.muli %c6_i32, %c8_i32_77 : i32
    %320 = tpu.assume_multiple %319, 8 : i32
    %c7_i32_78 = arith.constant 7 : i32
    %321 = arith.subi %c7_i32_78, %c6_i32 : i32
    %c8_i32_79 = arith.constant 8 : i32
    %322 = arith.muli %321, %c8_i32_79 : i32
    %323 = tpu.assume_multiple %322, 8 : i32
    %324 = arith.index_cast %320 : i32 to index
    %c0_80 = arith.constant 0 : index
    %325 = vector.load %arg6[%324, %c0_80] : memref<64x256xf32, #tpu.memory_space<vmem>>, vector<8x128xf32>
    %326 = arith.truncf %312 : vector<8x32xf32> to vector<8x32xbf16>
    %cst_81 = arith.constant dense<0.000000e+00> : vector<8x128xf32>
    %327 = tpu.matmul %326, %7, %cst_81 {dimension_numbers = #tpu.dot_dimension_numbers<[1], [0], [0], [1], [0, 0, 1, 1], [], []>} : vector<8x32xbf16>, vector<32x128xbf16>, vector<8x128xf32> -> vector<8x128xf32>
    %328 = arith.addf %325, %327 : vector<8x128xf32>
    %329 = arith.index_cast %323 : i32 to index
    %c128_82 = arith.constant 128 : index
    %330 = vector.load %arg6[%329, %c128_82] : memref<64x256xf32, #tpu.memory_space<vmem>>, vector<8x128xf32>
    %331 = arith.truncf %314 : vector<8x32xf32> to vector<8x32xbf16>
    %cst_83 = arith.constant dense<0.000000e+00> : vector<8x128xf32>
    %332 = tpu.matmul %331, %8, %cst_83 {dimension_numbers = #tpu.dot_dimension_numbers<[1], [0], [0], [1], [0, 0, 1, 1], [], []>} : vector<8x32xbf16>, vector<32x128xbf16>, vector<8x128xf32> -> vector<8x128xf32>
    %333 = arith.addf %330, %332 : vector<8x128xf32>
    %334 = vector.extract_strided_slice %328 {offsets = [0, 0], sizes = [8, 96], strides = [1, 1]} : vector<8x128xf32> to vector<8x96xf32>
    %335 = arith.negf %334 : vector<8x96xf32>
    %336 = math.exp %335 : vector<8x96xf32>
    %cst_84 = arith.constant 1.000000e+00 : f32
    %337 = vector.broadcast %cst_84 : f32 to vector<8x96xf32>
    %338 = arith.addf %337, %336 : vector<8x96xf32>
    %339 = arith.divf %337, %338 : vector<8x96xf32>
    %340 = vector.extract_strided_slice %328 {offsets = [0, 96], sizes = [8, 32], strides = [1, 1]} : vector<8x128xf32> to vector<8x32xf32>
    %341 = math.tanh %340 : vector<8x32xf32>
    %342 = vector.extract_strided_slice %333 {offsets = [0, 0], sizes = [8, 96], strides = [1, 1]} : vector<8x128xf32> to vector<8x96xf32>
    %343 = arith.negf %342 : vector<8x96xf32>
    %344 = math.exp %343 : vector<8x96xf32>
    %cst_85 = arith.constant 1.000000e+00 : f32
    %345 = vector.broadcast %cst_85 : f32 to vector<8x96xf32>
    %346 = arith.addf %345, %344 : vector<8x96xf32>
    %347 = arith.divf %345, %346 : vector<8x96xf32>
    %348 = vector.extract_strided_slice %333 {offsets = [0, 96], sizes = [8, 32], strides = [1, 1]} : vector<8x128xf32> to vector<8x32xf32>
    %349 = math.tanh %348 : vector<8x32xf32>
    %350 = vector.extract_strided_slice %339 {offsets = [0, 0], sizes = [8, 32], strides = [1, 1]} : vector<8x96xf32> to vector<8x32xf32>
    %351 = vector.extract_strided_slice %339 {offsets = [0, 32], sizes = [8, 32], strides = [1, 1]} : vector<8x96xf32> to vector<8x32xf32>
    %352 = vector.extract_strided_slice %339 {offsets = [0, 64], sizes = [8, 32], strides = [1, 1]} : vector<8x96xf32> to vector<8x32xf32>
    %353 = vector.extract_strided_slice %347 {offsets = [0, 0], sizes = [8, 32], strides = [1, 1]} : vector<8x96xf32> to vector<8x32xf32>
    %354 = vector.extract_strided_slice %347 {offsets = [0, 32], sizes = [8, 32], strides = [1, 1]} : vector<8x96xf32> to vector<8x32xf32>
    %355 = vector.extract_strided_slice %347 {offsets = [0, 64], sizes = [8, 32], strides = [1, 1]} : vector<8x96xf32> to vector<8x32xf32>
    %356 = arith.mulf %351, %307 : vector<8x32xf32>
    %357 = arith.mulf %350, %341 : vector<8x32xf32>
    %358 = arith.addf %356, %357 : vector<8x32xf32>
    %359 = arith.mulf %354, %310 : vector<8x32xf32>
    %360 = arith.mulf %353, %349 : vector<8x32xf32>
    %361 = arith.addf %359, %360 : vector<8x32xf32>
    %362 = math.tanh %358 : vector<8x32xf32>
    %363 = arith.mulf %352, %362 : vector<8x32xf32>
    %364 = math.tanh %361 : vector<8x32xf32>
    %365 = arith.mulf %355, %364 : vector<8x32xf32>
    %366 = arith.index_cast %320 : i32 to index
    %c0_86 = arith.constant 0 : index
    %367 = vector.load %arg5[%366, %c0_86] : memref<64x64xf32, #tpu.memory_space<vmem>>, vector<8x32xf32>
    tpu.vector_store %arg5[%366, %c0_86], %363 {strides = array<i32>} : memref<64x64xf32, #tpu.memory_space<vmem>>, vector<8x32xf32>,
    %368 = arith.index_cast %323 : i32 to index
    %c32_87 = arith.constant 32 : index
    %369 = vector.load %arg5[%368, %c32_87] : memref<64x64xf32, #tpu.memory_space<vmem>>, vector<8x32xf32>
    tpu.vector_store %arg5[%368, %c32_87], %365 {strides = array<i32>} : memref<64x64xf32, #tpu.memory_space<vmem>>, vector<8x32xf32>,
    %c7_i32_88 = arith.constant 7 : i32
    %c8_i32_89 = arith.constant 8 : i32
    %370 = arith.muli %c7_i32_88, %c8_i32_89 : i32
    %371 = tpu.assume_multiple %370, 8 : i32
    %c7_i32_90 = arith.constant 7 : i32
    %372 = arith.subi %c7_i32_90, %c7_i32_88 : i32
    %c8_i32_91 = arith.constant 8 : i32
    %373 = arith.muli %372, %c8_i32_91 : i32
    %374 = tpu.assume_multiple %373, 8 : i32
    %375 = arith.index_cast %371 : i32 to index
    %c0_92 = arith.constant 0 : index
    %376 = vector.load %arg6[%375, %c0_92] : memref<64x256xf32, #tpu.memory_space<vmem>>, vector<8x128xf32>
    %377 = arith.truncf %363 : vector<8x32xf32> to vector<8x32xbf16>
    %cst_93 = arith.constant dense<0.000000e+00> : vector<8x128xf32>
    %378 = tpu.matmul %377, %7, %cst_93 {dimension_numbers = #tpu.dot_dimension_numbers<[1], [0], [0], [1], [0, 0, 1, 1], [], []>} : vector<8x32xbf16>, vector<32x128xbf16>, vector<8x128xf32> -> vector<8x128xf32>
    %379 = arith.addf %376, %378 : vector<8x128xf32>
    %380 = arith.index_cast %374 : i32 to index
    %c128_94 = arith.constant 128 : index
    %381 = vector.load %arg6[%380, %c128_94] : memref<64x256xf32, #tpu.memory_space<vmem>>, vector<8x128xf32>
    %382 = arith.truncf %365 : vector<8x32xf32> to vector<8x32xbf16>
    %cst_95 = arith.constant dense<0.000000e+00> : vector<8x128xf32>
    %383 = tpu.matmul %382, %8, %cst_95 {dimension_numbers = #tpu.dot_dimension_numbers<[1], [0], [0], [1], [0, 0, 1, 1], [], []>} : vector<8x32xbf16>, vector<32x128xbf16>, vector<8x128xf32> -> vector<8x128xf32>
    %384 = arith.addf %381, %383 : vector<8x128xf32>
    %385 = vector.extract_strided_slice %379 {offsets = [0, 0], sizes = [8, 96], strides = [1, 1]} : vector<8x128xf32> to vector<8x96xf32>
    %386 = arith.negf %385 : vector<8x96xf32>
    %387 = math.exp %386 : vector<8x96xf32>
    %cst_96 = arith.constant 1.000000e+00 : f32
    %388 = vector.broadcast %cst_96 : f32 to vector<8x96xf32>
    %389 = arith.addf %388, %387 : vector<8x96xf32>
    %390 = arith.divf %388, %389 : vector<8x96xf32>
    %391 = vector.extract_strided_slice %379 {offsets = [0, 96], sizes = [8, 32], strides = [1, 1]} : vector<8x128xf32> to vector<8x32xf32>
    %392 = math.tanh %391 : vector<8x32xf32>
    %393 = vector.extract_strided_slice %384 {offsets = [0, 0], sizes = [8, 96], strides = [1, 1]} : vector<8x128xf32> to vector<8x96xf32>
    %394 = arith.negf %393 : vector<8x96xf32>
    %395 = math.exp %394 : vector<8x96xf32>
    %cst_97 = arith.constant 1.000000e+00 : f32
    %396 = vector.broadcast %cst_97 : f32 to vector<8x96xf32>
    %397 = arith.addf %396, %395 : vector<8x96xf32>
    %398 = arith.divf %396, %397 : vector<8x96xf32>
    %399 = vector.extract_strided_slice %384 {offsets = [0, 96], sizes = [8, 32], strides = [1, 1]} : vector<8x128xf32> to vector<8x32xf32>
    %400 = math.tanh %399 : vector<8x32xf32>
    %401 = vector.extract_strided_slice %390 {offsets = [0, 0], sizes = [8, 32], strides = [1, 1]} : vector<8x96xf32> to vector<8x32xf32>
    %402 = vector.extract_strided_slice %390 {offsets = [0, 32], sizes = [8, 32], strides = [1, 1]} : vector<8x96xf32> to vector<8x32xf32>
    %403 = vector.extract_strided_slice %390 {offsets = [0, 64], sizes = [8, 32], strides = [1, 1]} : vector<8x96xf32> to vector<8x32xf32>
    %404 = vector.extract_strided_slice %398 {offsets = [0, 0], sizes = [8, 32], strides = [1, 1]} : vector<8x96xf32> to vector<8x32xf32>
    %405 = vector.extract_strided_slice %398 {offsets = [0, 32], sizes = [8, 32], strides = [1, 1]} : vector<8x96xf32> to vector<8x32xf32>
    %406 = vector.extract_strided_slice %398 {offsets = [0, 64], sizes = [8, 32], strides = [1, 1]} : vector<8x96xf32> to vector<8x32xf32>
    %407 = arith.mulf %402, %358 : vector<8x32xf32>
    %408 = arith.mulf %401, %392 : vector<8x32xf32>
    %409 = arith.addf %407, %408 : vector<8x32xf32>
    %410 = arith.mulf %405, %361 : vector<8x32xf32>
    %411 = arith.mulf %404, %400 : vector<8x32xf32>
    %412 = arith.addf %410, %411 : vector<8x32xf32>
    %413 = math.tanh %409 : vector<8x32xf32>
    %414 = arith.mulf %403, %413 : vector<8x32xf32>
    %415 = math.tanh %412 : vector<8x32xf32>
    %416 = arith.mulf %406, %415 : vector<8x32xf32>
    %417 = arith.index_cast %371 : i32 to index
    %c0_98 = arith.constant 0 : index
    %418 = vector.load %arg5[%417, %c0_98] : memref<64x64xf32, #tpu.memory_space<vmem>>, vector<8x32xf32>
    tpu.vector_store %arg5[%417, %c0_98], %414 {strides = array<i32>} : memref<64x64xf32, #tpu.memory_space<vmem>>, vector<8x32xf32>,
    %419 = arith.index_cast %374 : i32 to index
    %c32_99 = arith.constant 32 : index
    %420 = vector.load %arg5[%419, %c32_99] : memref<64x64xf32, #tpu.memory_space<vmem>>, vector<8x32xf32>
    tpu.vector_store %arg5[%419, %c32_99], %416 {strides = array<i32>} : memref<64x64xf32, #tpu.memory_space<vmem>>, vector<8x32xf32>,
    %c8_i32_100 = arith.constant 8 : i32
    return
  }
}

</mosaic_0001>

<llo_original>
// kernel: bigru_attention_forward.5
$region0: #{bigru_attention_forward.5}
  #allocation0 [shape = 'u32[]', space=smem, size = 0x4, offset = 0x4, fixed_abs, tag = 'smem constant byte address 0x4 - core index']
  #allocation1 [shape = 'u32[72,128]{1,0:T(1,128)}', space=vmem, size = 0x9000, scoped, tag = 'internal scratch']
  %s0 = inlined_call_operand.vmem [shape: f32[2,8,64], index: 0, kind: input, shape index: {}]
  %s1 = inlined_call_operand.vmem [shape: bf16[64,64], index: 1, kind: input, shape index: {}]
  %s2 = inlined_call_operand.vmem [shape: f32[1,64], index: 2, kind: input, shape index: {}]
  %s3 = inlined_call_operand.vmem [shape: bf16[64,64], index: 3, kind: input, shape index: {}]
  %s4 = inlined_call_operand.vmem [shape: f32[1,64], index: 4, kind: input, shape index: {}]
  %s5 = inlined_call_operand.hbm [shape: f32[2,8,64], index: 5, kind: output, shape index: {}]
  %s6 = sld [smem:[#allocation0]]
  $region53: #{bigru_attention_forward.5} parent=0
    _
  %s8 = ssub.s32 1, %s6
  %s9 = scalar_select 0, %s8, %s6
  $region1: #{bigru_attention_forward.5} parent=0
    #allocation2 [shape = 'u8[8192]{0}', space=vmem, size = 0x2000, scoped, tag = 'output window, operand 0']
    #allocation3 [shape = 's32[2]{0}', space=sflag, size = 0x8, scoped, tag = 'scoped memory for bigru_attention_forward.5']
    %10 = vsyncpa [#allocation3], 0
    %s11 = scalar_lea.sflag [#allocation3], 1
    %12 = vsyncpa %s11, 0
    loop: start=0, step=1, limit=4
    $region2: #{bigru_attention_forward.5} parent=1 // loop_pre_header
      _
    $region3: #{bigru_attention_forward.5} parent=1 // loop_header
      %s14 = sphi 0, %s18
      %p15 = scmp.ge.s32.totalorder %s14, 4
      %s24 = sphi 0, %s26
      %s27 = sphi 0, %s24
      %s28 = sphi 0, %s27
      %s44 = sphi 0, %s28
      %s48 = sphi 0, %s48
      %s50 = sphi 0, %s48
      %s51 = sphi 0, %s50
      %s65 = sphi 0, %s51
      %s69 = sphi 0, %s69
      %s71 = sphi 0, %s69
      %s72 = sphi 0, %s71
      %s86 = sphi 0, %s72
      %s90 = sphi 0, %s90
      %s92 = sphi 0, %s90
      %s93 = sphi 0, %s92
      %s107 = sphi 0, %s93
      %s111 = sphi 0, %s111
      %s113 = sphi 0, %s111
      %s114 = sphi 0, %s113
      %s128 = sphi 0, %s114
      %s134 = sphi 0, %s136
      %s137 = sphi 0, %s134
      %s138 = sphi 0, %s137
      %s154 = sphi 0, %s138
    $region4: #{bigru_attention_forward.5} parent=1 // loop_header_branch
      %17 = sbr.rel (%p15) target = $region8
    $region5: #{bigru_attention_forward.5} parent=1 // loop_body
      %s19 = ssub.s32 %s14, 1
      %s20 = ssub.s32 %s14, 2
      %s21 = sadd.s32 %s14, 1
      %s22 = ssub.s32 %s14, %s21
      %p23 = scmp.eq.s32.totalorder %s22, 0
      %s25 = sadd.s32 %s24, 1
      %s26 = scalar_select %p23, %s24, %s25
      %p29 = pneg %p23
      %p30 = scmp.eq.s32.totalorder %s14, 1
      %p31 = por %p29, %p30
      %p32 = scmp.ne.s32.totalorder %s24, %s27
      %p33 = scmp.eq.s32.totalorder %s14, 0
      %p34 = por %p32, %p33
      %p35 = scmp.ne.s32.totalorder %s24, %s27
      %p36 = scmp.eq.s32.totalorder %s19, 1
      %p37 = por %p35, %p36
      %p38 = scmp.ne.s32.totalorder %s27, %s28
      %p39 = scmp.eq.s32.totalorder %s19, 0
      %p40 = por %p38, %p39
      %p41 = scmp.ne.s32.totalorder %s27, %s28
      %p42 = scmp.eq.s32.totalorder %s20, 1
      %p43 = por %p41, %p42
      %p45 = scmp.ne.s32.totalorder %s28, %s44
      %p46 = scmp.eq.s32.totalorder %s20, 0
      %p47 = por %p45, %p46
      %s49 = sadd.s32 %s48, 1
      %p52 = scmp.eq.s32.totalorder %s14, 1
      %p53 = scmp.ne.s32.totalorder %s48, %s50
      %p54 = scmp.eq.s32.totalorder %s14, 0
      %p55 = por %p53, %p54
      %p56 = scmp.ne.s32.totalorder %s48, %s50
      %p57 = scmp.eq.s32.totalorder %s19, 1
      %p58 = por %p56, %p57
      %p59 = scmp.ne.s32.totalorder %s50, %s51
      %p60 = scmp.eq.s32.totalorder %s19, 0
      %p61 = por %p59, %p60
      %p62 = scmp.ne.s32.totalorder %s50, %s51
      %p63 = scmp.eq.s32.totalorder %s20, 1
      %p64 = por %p62, %p63
      %p66 = scmp.ne.s32.totalorder %s51, %s65
      %p67 = scmp.eq.s32.totalorder %s20, 0
      %p68 = por %p66, %p67
      %s70 = sadd.s32 %s69, 1
      %p73 = scmp.eq.s32.totalorder %s14, 1
      %p74 = scmp.ne.s32.totalorder %s69, %s71
      %p75 = scmp.eq.s32.totalorder %s14, 0
      %p76 = por %p74, %p75
      %p77 = scmp.ne.s32.totalorder %s69, %s71
      %p78 = scmp.eq.s32.totalorder %s19, 1
      %p79 = por %p77, %p78
      %p80 = scmp.ne.s32.totalorder %s71, %s72
      %p81 = scmp.eq.s32.totalorder %s19, 0
      %p82 = por %p80, %p81
      %p83 = scmp.ne.s32.totalorder %s71, %s72
      %p84 = scmp.eq.s32.totalorder %s20, 1
      %p85 = por %p83, %p84
      %p87 = scmp.ne.s32.totalorder %s72, %s86
      %p88 = scmp.eq.s32.totalorder %s20, 0
      %p89 = por %p87, %p88
      %s91 = sadd.s32 %s90, 1
      %p94 = scmp.eq.s32.totalorder %s14, 1
      %p95 = scmp.ne.s32.totalorder %s90, %s92
      %p96 = scmp.eq.s32.totalorder %s14, 0
      %p97 = por %p95, %p96
      %p98 = scmp.ne.s32.totalorder %s90, %s92
      %p99 = scmp.eq.s32.totalorder %s19, 1
      %p100 = por %p98, %p99
      %p101 = scmp.ne.s32.totalorder %s92, %s93
      %p102 = scmp.eq.s32.totalorder %s19, 0
      %p103 = por %p101, %p102
      %p104 = scmp.ne.s32.totalorder %s92, %s93
      %p105 = scmp.eq.s32.totalorder %s20, 1
      %p106 = por %p104, %p105
      %p108 = scmp.ne.s32.totalorder %s93, %s107
      %p109 = scmp.eq.s32.totalorder %s20, 0
      %p110 = por %p108, %p109
      %s112 = sadd.s32 %s111, 1
      %p115 = scmp.eq.s32.totalorder %s14, 1
      %p116 = scmp.ne.s32.totalorder %s111, %s113
      %p117 = scmp.eq.s32.totalorder %s14, 0
      %p118 = por %p116, %p117
      %p119 = scmp.ne.s32.totalorder %s111, %s113
      %p120 = scmp.eq.s32.totalorder %s19, 1
      %p121 = por %p119, %p120
      %p122 = scmp.ne.s32.totalorder %s113, %s114
      %p123 = scmp.eq.s32.totalorder %s19, 0
      %p124 = por %p122, %p123
      %p125 = scmp.ne.s32.totalorder %s113, %s114
      %p126 = scmp.eq.s32.totalorder %s20, 1
      %p127 = por %p125, %p126
      %p129 = scmp.ne.s32.totalorder %s114, %s128
      %p130 = scmp.eq.s32.totalorder %s20, 0
      %p131 = por %p129, %p130
      %s132 = ssub.s32 %s14, %s21
      %p133 = scmp.eq.s32.totalorder %s132, 0
      %s135 = sadd.s32 %s134, 1
      %s136 = scalar_select %p133, %s134, %s135
      %p139 = pneg %p133
      %p140 = scmp.eq.s32.totalorder %s14, 1
      %p141 = por %p139, %p140
      %p142 = scmp.ne.s32.totalorder %s134, %s137
      %p143 = scmp.eq.s32.totalorder %s14, 0
      %p144 = por %p142, %p143
      %p145 = scmp.ne.s32.totalorder %s134, %s137
      %p146 = scmp.eq.s32.totalorder %s19, 1
      %p147 = por %p145, %p146
      %p148 = scmp.ne.s32.totalorder %s137, %s138
      %p149 = scmp.eq.s32.totalorder %s19, 0
      %p150 = por %p148, %p149
      %p151 = scmp.ne.s32.totalorder %s137, %s138
      %p152 = scmp.eq.s32.totalorder %s20, 1
      %p153 = por %p151, %p152
      %p155 = scmp.ne.s32.totalorder %s138, %s154
      %p156 = scmp.eq.s32.totalorder %s20, 0
      %p157 = por %p155, %p156
      %p158 = scmp.le.s32.totalorder 1, %s14
      %p159 = scmp.lt.s32.totalorder %s14, 3
      %p160 = pnand %p158, %p159
      %p161 = pneg %p160
      // Predicated region
      $region9: #{bigru_attention_forward.5} parent=5 // pred_check
        _
      $region10: #{bigru_attention_forward.5} parent=5 // pred_check_branch
        %163 = sbr.rel (%p160) target = $region12
      $region11: #{bigru_attention_forward.5} parent=5 // pred_region
        %s164 = ssub.s32 %s14, 1
        // Predicated region
        $region13: #{bigru_attention_forward.5} parent=11 // pred_check
          %p165 = pneg %p61
        $region14: #{bigru_attention_forward.5} parent=11 // pred_check_branch
          %167 = sbr.rel (%p165) target = $region16
        $region15: #{bigru_attention_forward.5} parent=11 // pred_region
          _
        $region16: #{bigru_attention_forward.5} parent=11 // pred_fallthru
          _
        // Predicated region
        $region17: #{bigru_attention_forward.5} parent=11 // pred_check
          %p168 = pneg %p82
        $region18: #{bigru_attention_forward.5} parent=11 // pred_check_branch
          %170 = sbr.rel (%p168) target = $region20
        $region19: #{bigru_attention_forward.5} parent=11 // pred_region
          _
        $region20: #{bigru_attention_forward.5} parent=11 // pred_fallthru
          _
        // Predicated region
        $region21: #{bigru_attention_forward.5} parent=11 // pred_check
          %p171 = pneg %p103
        $region22: #{bigru_attention_forward.5} parent=11 // pred_check_branch
          %173 = sbr.rel (%p171) target = $region24
        $region23: #{bigru_attention_forward.5} parent=11 // pred_region
          _
        $region24: #{bigru_attention_forward.5} parent=11 // pred_fallthru
          _
        // Predicated region
        $region25: #{bigru_attention_forward.5} parent=11 // pred_check
          %p174 = pneg %p124
        $region26: #{bigru_attention_forward.5} parent=11 // pred_check_branch
          %176 = sbr.rel (%p174) target = $region28
        $region27: #{bigru_attention_forward.5} parent=11 // pred_region
          _
        $region28: #{bigru_attention_forward.5} parent=11 // pred_fallthru
          _
      $region12: #{bigru_attention_forward.5} parent=5 // pred_fallthru
        _
      %p177 = scmp.lt.s32.totalorder %s14, 2
      // Predicated region
      $region29: #{bigru_attention_forward.5} parent=5 // pred_check
        %p178 = pneg %p177
      $region30: #{bigru_attention_forward.5} parent=5 // pred_check_branch
        %180 = sbr.rel (%p178) target = $region32
      $region31: #{bigru_attention_forward.5} parent=5 // pred_region
        // Predicated region
        $region33: #{bigru_attention_forward.5} parent=31 // pred_check
          %p181 = pneg %p34
        $region34: #{bigru_attention_forward.5} parent=31 // pred_check_branch
          %183 = sbr.rel (%p181) target = $region36
        $region35: #{bigru_attention_forward.5} parent=31 // pred_region
          %p184 = scmp.lt.s32.totalorder %s14, 1
          %s185 = scalar_select %p184, %s14, 1
          %s186 = smul.addr %s185, 8
          %s187 = scalar_lea.vmem %s0, %s186
        $region36: #{bigru_attention_forward.5} parent=31 // pred_fallthru
          _
      $region32: #{bigru_attention_forward.5} parent=5 // pred_fallthru
        _
      %p188 = scmp.le.s32.totalorder 1, %s14
      %p189 = scmp.lt.s32.totalorder %s14, 3
      %p190 = pnand %p188, %p189
      %p191 = pneg %p190
      // Predicated region
      $region37: #{bigru_attention_forward.5} parent=5 // pred_check
        _
      $region38: #{bigru_attention_forward.5} parent=5 // pred_check_branch
        %193 = sbr.rel (%p190) target = $region40
      $region39: #{bigru_attention_forward.5} parent=5 // pred_region
        %s194 = ssub.s32 %s14, 1
        %p195 = scmp.lt.s32.totalorder %s19, 1
        %s196 = scalar_select %p195, %s19, 1
        %s197 = smul.addr %s196, 8
        %s198 = scalar_lea.vmem %s0, %s197
        %p199 = pneg %p40
        %p200 = pneg %p37
        %p201 = pneg %p61
        %p202 = pneg %p58
        %p203 = pneg %p82
        %p204 = pneg %p79
        %p205 = pneg %p103
        %p206 = pneg %p100
        %p207 = pneg %p124
        %p208 = pneg %p121
        %p209 = pneg %p150
        %p210 = pneg %p147
        %s211 = sand.u32 %s137, 1
        %s212 = scalar_lea.sflag [#allocation3], %s211
        %s213 = sand.u32 %s137, 1
        %s214 = smul.addr %s213, 8
        %s215 = scalar_lea.vmem [#allocation2], %s214
        %p216 = scmp.lt.s32.totalorder %s19, 1
        %s217 = scalar_select %p216, %s19, 1
        %s218 = smul.addr %s217, 8
        %s219 = scalar_lea.vmem %s0, %s218
        %v221 = vld [vmem:[%s219] sm:$0xff]
        %v222 = vpack.c.bf16 %v221, %v221
        %v223 = vld [vmem:[%s1] sm:$0xf]
        %v224 = vld [vmem:[%s1 + $0x4] sm:$0xf]
        %v225 = vld [vmem:[%s1 + $0x8] sm:$0xf]
        %v226 = vld [vmem:[%s1 + $0xc] sm:$0xf]
        %v227 = vld [vmem:[%s1 + $0x10] sm:$0xf]
        %v228 = vld [vmem:[%s1 + $0x14] sm:$0xf]
        %v229 = vld [vmem:[%s1 + $0x18] sm:$0xf]
        %v230 = vld [vmem:[%s1 + $0x1c] sm:$0xf]
        %v239 = vunpack.c.l.b16 %v223
        %v240 = vunpack.c.l.b16 %v224
        %v241 = vunpack.c.l.b16 %v225
        %v242 = vunpack.c.l.b16 %v226
        %v243 = vunpack.c.l.b16 %v227
        %v244 = vunpack.c.l.b16 %v228
        %v245 = vunpack.c.l.b16 %v229
        %v246 = vunpack.c.l.b16 %v230
        %v247 = vpack.c.b16 %v240, %v239
        %v248 = vpack.c.b16 %v242, %v241
        %v249 = vpack.c.b16 %v244, %v243
        %v250 = vpack.c.b16 %v246, %v245
        %vm255 = vcmask 523264
        %v257 = vsel %vm255, %v222, 0
        %259 = vmatpush.bf16.msra.mxu0 0
        %260 = vmatpush.bf16.msra.mxu0 0
        %261 = vmatpush.bf16.msra.mxu0 0
        %262 = vmatpush.bf16.msra.mxu0 0
        %263 = vmatpush.bf16.msra.mxu0 %v250
        %264 = vmatpush.bf16.msra.mxu0 %v249
        %265 = vmatpush.bf16.msra.mxu0 %v248
        %266 = vmatpush.bf16.msra.mxu0 %v247
        %267 = vmatmul.bf16.gmra.mxu0 %v257
        %v268 = vpop.f32.mrf.mxu0
        %v269 = vadd.f32 0.0, %v268
        %v270 = vpop.f32.mrf.mxu0
        %271 = vdwg.mxu0
        %v272 = vtanh.pop %v269
        %v273 = vld [vmem:[%s2] sm:$0x1]
        %v275 = vperm.slane %v273, 0
        %v277 = vmul.f32 %v272, %v275
        %v278 = vsel %vm255, %v277, 0.0
        %279 = vadd.xlane.f32.xlu0 %v278
        %v280 = vpop.xlane.xlu0 %279
        %v281 = vrot.slane %v280, 4
        %v282 = vmax.f32 %v280, %v281
        %v283 = vrot.slane %v282, 2
        %v284 = vmax.f32 %v282, %v283
        %v285 = vrot.slane %v284, 1
        %v286 = vmax.f32 %v284, %v285
        %v287 = vsub.f32 %v280, %v286
        %v288 = vmul.f32 %v287, 1.442695
        %v289 = vpow.pop %v288
        %v290 = vrot.slane %v289, 4
        %v291 = vadd.f32 %v289, %v290
        %v292 = vrot.slane %v291, 2
        %v293 = vadd.f32 %v291, %v292
        %v294 = vrot.slane %v293, 1
        %v295 = vadd.f32 %v293, %v294
        %v296 = vrcp.pop %v295
        %v297 = vmul.f32 %v289, %v296
        %v298 = vmul.f32 %v221, %v297
        %v299 = vpack.c.bf16 %v298, %v298
        %v300 = vld [vmem:[%s3] sm:$0xf]
        %v301 = vld [vmem:[%s3 + $0x4] sm:$0xf]
        %v302 = vld [vmem:[%s3 + $0x8] sm:$0xf]
        %v303 = vld [vmem:[%s3 + $0xc] sm:$0xf]
        %v304 = vld [vmem:[%s3 + $0x10] sm:$0xf]
        %v305 = vld [vmem:[%s3 + $0x14] sm:$0xf]
        %v306 = vld [vmem:[%s3 + $0x18] sm:$0xf]
        %v307 = vld [vmem:[%s3 + $0x1c] sm:$0xf]
        %v308 = vld [vmem:[%s4] sm:$0x1]
        %v310 = vperm.slane %v308, 0
        %v320 = vunpack.c.l.b16 %v300
        %v321 = vunpack.c.l.b16 %v301
        %v322 = vunpack.c.l.b16 %v302
        %v323 = vunpack.c.l.b16 %v303
        %v324 = vunpack.c.l.b16 %v304
        %v325 = vunpack.c.l.b16 %v305
        %v326 = vunpack.c.l.b16 %v306
        %v327 = vunpack.c.l.b16 %v307
        %v328 = vpack.c.b16 %v321, %v320
        %v329 = vpack.c.b16 %v323, %v322
        %v330 = vpack.c.b16 %v325, %v324
        %v331 = vpack.c.b16 %v327, %v326
        %v337 = vsel %vm255, %v299, 0
        %339 = vmatpush.bf16.msra.mxu0 0
        %340 = vmatpush.bf16.msra.mxu0 0
        %341 = vmatpush.bf16.msra.mxu0 0
        %342 = vmatpush.bf16.msra.mxu0 0
        %343 = vmatpush.bf16.msra.mxu0 %v331
        %344 = vmatpush.bf16.msra.mxu0 %v330
        %345 = vmatpush.bf16.msra.mxu0 %v329
        %346 = vmatpush.bf16.msra.mxu0 %v328
        %347 = vmatmul.bf16.gmra.mxu0 %v337
        %v348 = vpop.f32.mrf.mxu0
        %v349 = vadd.f32 %v310, %v348
        %v350 = vpop.f32.mrf.mxu0
        %351 = vdwg.mxu0
        %352 = vst.msk [vmem:[%s215] sm:$0xff] %vm255, %v349
        %s353 = sand.u32 %s137, 1
        %s354 = scalar_lea.sflag [#allocation3], %s353
        %s355 = sand.u32 %s137, 1
        %s356 = smul.addr %s355, 8
        %s357 = scalar_lea.vmem [#allocation2], %s356
        // Predicated region
        $region41: #{bigru_attention_forward.5} parent=39 // pred_check
          %p358 = pneg %p147
        $region42: #{bigru_attention_forward.5} parent=39 // pred_check_branch
          %360 = sbr.rel (%p358) target = $region44
        $region43: #{bigru_attention_forward.5} parent=39 // pred_region
          %362 = vsyncadd %s354, 0
          %s363 = smul.addr %s19, 8
          %s364 = scalar_lea.hbm %s5, %s363
          %s366 = sshll.u32 %s357, 4
          %s367 = int_to_ptr.vmem [resolvable:$true] %s366
          %s368 = sshll.u32 %s364, 4
          %s369 = int_to_ptr.hbm [resolvable:$true] %s368
          %371 = dma.vmem_to_hbm [thread:$0]  %s367, 128, %s369, %s354
        $region44: #{bigru_attention_forward.5} parent=39 // pred_fallthru
          _
      $region40: #{bigru_attention_forward.5} parent=5 // pred_fallthru
        _
      %p372 = scmp.le.s32.totalorder 2, %s14
      // Predicated region
      $region45: #{bigru_attention_forward.5} parent=5 // pred_check
        %p373 = pneg %p372
      $region46: #{bigru_attention_forward.5} parent=5 // pred_check_branch
        %375 = sbr.rel (%p373) target = $region48
      $region47: #{bigru_attention_forward.5} parent=5 // pred_region
        %s376 = ssub.s32 %s14, 2
        // Predicated region
        $region49: #{bigru_attention_forward.5} parent=47 // pred_check
          %p377 = pneg %p153
        $region50: #{bigru_attention_forward.5} parent=47 // pred_check_branch
          %379 = sbr.rel (%p377) target = $region52
        $region51: #{bigru_attention_forward.5} parent=47 // pred_region
          %s380 = sand.u32 %s138, 1
          %s381 = scalar_lea.sflag [#allocation3], %s380
          %s382 = sand.u32 %s138, 1
          %s383 = smul.addr %s382, 8
          %s384 = scalar_lea.vmem [#allocation2], %s383
          %386 = dma.done %s381, 128
        $region52: #{bigru_attention_forward.5} parent=47 // pred_fallthru
          _
      $region48: #{bigru_attention_forward.5} parent=5 // pred_fallthru
        _
    $region6: #{bigru_attention_forward.5} parent=1 // loop_footer
      %s18 = sadd.s32 1, %s14
    $region7: #{bigru_attention_forward.5} parent=1 // loop_footer_branch
      %13 = sbr.rel target = $region3
    $region8: #{bigru_attention_forward.5} parent=1 // loop_exit
      _
    %387 = vsyncpa [#allocation3], 1
    %s388 = scalar_lea.sflag [#allocation3], 1
    %389 = vsyncpa %s388, 1

// kernel: bigru_attention_forward.3
$region0: #{bigru_attention_forward.3}
  #allocation0 [shape = 'u32[]', space=smem, size = 0x4, offset = 0x4, fixed_abs, tag = 'smem constant byte address 0x4 - core index']
  #allocation1 [shape = 'u32[72,128]{1,0:T(1,128)}', space=vmem, size = 0x9000, scoped, tag = 'internal scratch']
  #allocation2 [shape = 'f32[64,256]{1,0:T(8,128)}', space=vmem, size = 0x10000, scoped, tag = 'scratch operand']
  %s0 = inlined_call_operand.vmem [shape: bf16[64,16], index: 0, kind: input, shape index: {}]
  %s1 = inlined_call_operand.vmem [shape: bf16[16,256], index: 1, kind: input, shape index: {}]
  %s2 = inlined_call_operand.vmem [shape: bf16[32,128], index: 2, kind: input, shape index: {}]
  %s3 = inlined_call_operand.vmem [shape: bf16[32,128], index: 3, kind: input, shape index: {}]
  %s4 = inlined_call_operand.vmem [shape: f32[1,256], index: 4, kind: input, shape index: {}]
  %s5 = inlined_call_operand.vmem [shape: bf16[64,64], index: 5, kind: output, shape index: {}]
  %s6 = sld [smem:[#allocation0]]
  $region30: #{bigru_attention_forward.3} parent=0
    _
  %s8 = ssub.s32 1, %s6
  %s9 = scalar_select 0, %s8, %s6
  // Predicated region
  $region2: #{bigru_attention_forward.3} parent=0 // pred_check
    _
  $region3: #{bigru_attention_forward.3} parent=0 // pred_check_branch
    %11 = sbr.rel (0) target = $region5
  $region4: #{bigru_attention_forward.3} parent=0 // pred_region
    _
  $region5: #{bigru_attention_forward.3} parent=0 // pred_fallthru
    _
  // Predicated region
  $region6: #{bigru_attention_forward.3} parent=0 // pred_check
    _
  $region7: #{bigru_attention_forward.3} parent=0 // pred_check_branch
    %13 = sbr.rel (0) target = $region9
  $region8: #{bigru_attention_forward.3} parent=0 // pred_region
    _
  $region9: #{bigru_attention_forward.3} parent=0 // pred_fallthru
    _
  // Predicated region
  $region10: #{bigru_attention_forward.3} parent=0 // pred_check
    _
  $region11: #{bigru_attention_forward.3} parent=0 // pred_check_branch
    %15 = sbr.rel (0) target = $region13
  $region12: #{bigru_attention_forward.3} parent=0 // pred_region
    _
  $region13: #{bigru_attention_forward.3} parent=0 // pred_fallthru
    _
  // Predicated region
  $region14: #{bigru_attention_forward.3} parent=0 // pred_check
    _
  $region15: #{bigru_attention_forward.3} parent=0 // pred_check_branch
    %17 = sbr.rel (0) target = $region17
  $region16: #{bigru_attention_forward.3} parent=0 // pred_region
    _
  $region17: #{bigru_attention_forward.3} parent=0 // pred_fallthru
    _
  // Predicated region
  $region18: #{bigru_attention_forward.3} parent=0 // pred_check
    _
  $region19: #{bigru_attention_forward.3} parent=0 // pred_check_branch
    %19 = sbr.rel (0) target = $region21
  $region20: #{bigru_attention_forward.3} parent=0 // pred_region
    _
  $region21: #{bigru_attention_forward.3} parent=0 // pred_fallthru
    _
  %v21 = vld [vmem:[%s0] sm:$0xf]
  %v22 = vld [vmem:[%s0 + $0x4] sm:$0xf]
  %v23 = vld [vmem:[%s0 + $0x8] sm:$0xf]
  %v24 = vld [vmem:[%s0 + $0xc] sm:$0xf]
  %v25 = vld [vmem:[%s0 + $0x10] sm:$0xf]
  %v26 = vld [vmem:[%s0 + $0x14] sm:$0xf]
  %v27 = vld [vmem:[%s0 + $0x18] sm:$0xf]
  %v28 = vld [vmem:[%s0 + $0x1c] sm:$0xf]
  %v29 = vld [vmem:[%s1] sm:$0xff]
  %v30 = vld [vmem:[%s1 + $0x8] sm:$0xff]
  %v31 = vld [vmem:[%s4] sm:$0x3]
  %v33 = vperm.slane %v31, 0
  %v34 = vperm.slane %v31, 1
  %v45 = vunpack.c.l.b16 %v21
  %v46 = vunpack.c.l.b16 %v22
  %v47 = vunpack.c.l.b16 %v23
  %v48 = vunpack.c.l.b16 %v24
  %v49 = vunpack.c.l.b16 %v25
  %v50 = vunpack.c.l.b16 %v26
  %v51 = vunpack.c.l.b16 %v27
  %v52 = vunpack.c.l.b16 %v28
  %v53 = vpack.c.b16 %v46, %v45
  %v54 = vpack.c.b16 %v48, %v47
  %v55 = vpack.c.b16 %v50, %v49
  %v56 = vpack.c.b16 %v52, %v51
  %v59 = vunpack.c.l.b16 %v29
  %v60 = vunpack.c.h.b16 %v29
  %v61 = vunpack.c.l.b16 %v30
  %v62 = vunpack.c.h.b16 %v30
  %v63 = vpack.c.b16 %v61, %v59
  %v64 = vpack.c.b16 %v62, %v60
  %vm67 = vcmask 130048
  %v69 = vsel %vm67, %v53, 0
  %v72 = vsel %vm67, %v54, 0
  %v75 = vsel %vm67, %v55, 0
  %v78 = vsel %vm67, %v56, 0
  %80 = vmatpush.bf16.msra.mxu0 0
  %81 = vmatpush.bf16.msra.mxu0 0
  %82 = vmatpush.bf16.msra.mxu0 0
  %83 = vmatpush.bf16.msra.mxu0 0
  %84 = vmatpush.bf16.msra.mxu0 0
  %85 = vmatpush.bf16.msra.mxu0 0
  %86 = vmatpush.bf16.msra.mxu0 0
  %87 = vmatpush.bf16.msra.mxu0 %v63
  %88 = vmatmul.bf16.gmra.mxu0 %v69
  %v89 = vpop.f32.mrf.mxu0
  %v90 = vadd.f32 %v33, %v89
  %v91 = vpop.f32.mrf.mxu0
  %v92 = vadd.f32 %v33, %v91
  %93 = vmatmul.bf16.gmra.mxu0 %v72
  %v94 = vpop.f32.mrf.mxu0
  %v95 = vadd.f32 %v33, %v94
  %v96 = vpop.f32.mrf.mxu0
  %v97 = vadd.f32 %v33, %v96
  %98 = vmatmul.bf16.gmra.mxu0 %v75
  %v99 = vpop.f32.mrf.mxu0
  %v100 = vadd.f32 %v33, %v99
  %v101 = vpop.f32.mrf.mxu0
  %v102 = vadd.f32 %v33, %v101
  %103 = vmatmul.bf16.gmra.mxu0 %v78
  %v104 = vpop.f32.mrf.mxu0
  %v105 = vadd.f32 %v33, %v104
  %v106 = vpop.f32.mrf.mxu0
  %v107 = vadd.f32 %v33, %v106
  %108 = vdwg.mxu0
  %109 = vmatpush.bf16.msra.mxu0 0
  %110 = vmatpush.bf16.msra.mxu0 0
  %111 = vmatpush.bf16.msra.mxu0 0
  %112 = vmatpush.bf16.msra.mxu0 0
  %113 = vmatpush.bf16.msra.mxu0 0
  %114 = vmatpush.bf16.msra.mxu0 0
  %115 = vmatpush.bf16.msra.mxu0 0
  %116 = vmatpush.bf16.msra.mxu0 %v64
  %117 = vmatmul.bf16.gmra.mxu0 %v69
  %v118 = vpop.f32.mrf.mxu0
  %v119 = vadd.f32 %v34, %v118
  %v120 = vpop.f32.mrf.mxu0
  %v121 = vadd.f32 %v34, %v120
  %122 = vmatmul.bf16.gmra.mxu0 %v72
  %v123 = vpop.f32.mrf.mxu0
  %v124 = vadd.f32 %v34, %v123
  %v125 = vpop.f32.mrf.mxu0
  %v126 = vadd.f32 %v34, %v125
  %127 = vmatmul.bf16.gmra.mxu0 %v75
  %v128 = vpop.f32.mrf.mxu0
  %v129 = vadd.f32 %v34, %v128
  %v130 = vpop.f32.mrf.mxu0
  %v131 = vadd.f32 %v34, %v130
  %132 = vmatmul.bf16.gmra.mxu0 %v78
  %v133 = vpop.f32.mrf.mxu0
  %v134 = vadd.f32 %v34, %v133
  %v135 = vpop.f32.mrf.mxu0
  %v136 = vadd.f32 %v34, %v135
  %137 = vdwg.mxu0
  %138 = vst [vmem:[#allocation2] sm:$0xff] %v90
  %139 = vst [vmem:[#allocation2 + $0x8] sm:$0xff] %v119
  %140 = vst [vmem:[#allocation2 + $0x10] sm:$0xff] %v92
  %141 = vst [vmem:[#allocation2 + $0x18] sm:$0xff] %v121
  %142 = vst [vmem:[#allocation2 + $0x20] sm:$0xff] %v95
  %143 = vst [vmem:[#allocation2 + $0x28] sm:$0xff] %v124
  %144 = vst [vmem:[#allocation2 + $0x30] sm:$0xff] %v97
  %145 = vst [vmem:[#allocation2 + $0x38] sm:$0xff] %v126
  %146 = vst [vmem:[#allocation2 + $0x40] sm:$0xff] %v100
  %147 = vst [vmem:[#allocation2 + $0x48] sm:$0xff] %v129
  %148 = vst [vmem:[#allocation2 + $0x50] sm:$0xff] %v102
  %149 = vst [vmem:[#allocation2 + $0x58] sm:$0xff] %v131
  %150 = vst [vmem:[#allocation2 + $0x60] sm:$0xff] %v105
  %151 = vst [vmem:[#allocation2 + $0x68] sm:$0xff] %v134
  %152 = vst [vmem:[#allocation2 + $0x70] sm:$0xff] %v107
  %153 = vst [vmem:[#allocation2 + $0x78] sm:$0xff] %v136
  %v154 = vld [vmem:[%s2] sm:$0xf]
  %v155 = vld [vmem:[%s2 + $0x4] sm:$0xf]
  %v156 = vld [vmem:[%s2 + $0x8] sm:$0xf]
  %v157 = vld [vmem:[%s2 + $0xc] sm:$0xf]
  %v158 = vld [vmem:[%s3] sm:$0xf]
  %v159 = vld [vmem:[%s3 + $0x4] sm:$0xf]
  %v160 = vld [vmem:[%s3 + $0x8] sm:$0xf]
  %v161 = vld [vmem:[%s3 + $0xc] sm:$0xf]
  %s162 = smul.u32 0, 2
  %s163 = smul.addr %s162, 8
  %s164 = scalar_lea.vmem [#allocation2], %s163
  %v165 = vld [vmem:[%s164] sm:$0xff]
  %v170 = vunpack.c.l.b16 %v154
  %v171 = vunpack.c.l.b16 %v155
  %v172 = vunpack.c.l.b16 %v156
  %v173 = vunpack.c.l.b16 %v157
  %v174 = vpack.c.b16 %v171, %v170
  %v175 = vpack.c.b16 %v173, %v172
  %vm178 = vcmask 261120
  %v180 = vsel %vm178, 0, 0
  %182 = vmatpush.bf16.msra.mxu0 0
  %183 = vmatpush.bf16.msra.mxu0 0
  %184 = vmatpush.bf16.msra.mxu0 0
  %185 = vmatpush.bf16.msra.mxu0 0
  %186 = vmatpush.bf16.msra.mxu0 0
  %187 = vmatpush.bf16.msra.mxu0 0
  %188 = vmatpush.bf16.msra.mxu0 %v175
  %189 = vmatpush.bf16.msra.mxu0 %v174
  %190 = vmatmul.bf16.gmra.mxu0 %v180
  %v191 = vpop.f32.mrf.mxu0
  %v192 = vadd.f32 0.0, %v191
  %v193 = vpop.f32.mrf.mxu0
  %194 = vdwg.mxu0
  %v195 = vadd.f32 %v165, %v192
  %s196 = smul.u32 7, 2
  %s197 = smul.addr %s196, 8
  %s198 = scalar_lea.vmem [#allocation2], %s197
  %v199 = vld [vmem:[%s198 + $0x8] sm:$0xff]
  %v204 = vunpack.c.l.b16 %v158
  %v205 = vunpack.c.l.b16 %v159
  %v206 = vunpack.c.l.b16 %v160
  %v207 = vunpack.c.l.b16 %v161
  %v208 = vpack.c.b16 %v205, %v204
  %v209 = vpack.c.b16 %v207, %v206
  %212 = vmatpush.bf16.msra.mxu0 0
  %213 = vmatpush.bf16.msra.mxu0 0
  %214 = vmatpush.bf16.msra.mxu0 0
  %215 = vmatpush.bf16.msra.mxu0 0
  %216 = vmatpush.bf16.msra.mxu0 0
  %217 = vmatpush.bf16.msra.mxu0 0
  %218 = vmatpush.bf16.msra.mxu0 %v209
  %219 = vmatpush.bf16.msra.mxu0 %v208
  %220 = vmatmul.bf16.gmra.mxu0 %v180
  %v221 = vpop.f32.mrf.mxu0
  %v222 = vadd.f32 0.0, %v221
  %v223 = vpop.f32.mrf.mxu0
  %224 = vdwg.mxu0
  %v225 = vadd.f32 %v199, %v222
  %v226 = vxor.u32 %v195, 2147483648
  %v227 = vmul.f32 %v226, 1.442695
  %v228 = vpow.pop %v227
  %v229 = vadd.f32 %v228, 1.0
  %v230 = vrcp.pop %v229
  %v231 = vmul.f32 %v229, %v230
  %v232 = vsub.f32 1.0, %v231
  %v233 = vmul.f32 %v230, %v232
  %v234 = vadd.f32 %v230, %v233
  %vm235 = vweird.f32 %v229
  %vm236 = vweird.f32 %v230
  %vm237 = vmor %vm235, %vm236
  %v238 = vsel %vm237, %v230, %v234
  %v239 = vand.u32 2147483647, %v229
  %vm240 = vcmp.eq.f32.partialorder %v239, 8.507059e+37
  %v241 = vand.u32 %v229, 2147483648
  %v242 = vor.u32 1.1754944e-38, %v241
  %v243 = vsel %vm240, %v242, %v238
  %v244 = vmul.f32 1.0, %v243
  %v245 = vtanh.pop %v195
  %v246 = vxor.u32 %v225, 2147483648
  %v247 = vmul.f32 %v246, 1.442695
  %v248 = vpow.pop %v247
  %v249 = vadd.f32 %v248, 1.0
  %v250 = vrcp.pop %v249
  %v251 = vmul.f32 %v249, %v250
  %v252 = vsub.f32 1.0, %v251
  %v253 = vmul.f32 %v250, %v252
  %v254 = vadd.f32 %v250, %v253
  %vm255 = vweird.f32 %v249
  %vm256 = vweird.f32 %v250
  %vm257 = vmor %vm255, %vm256
  %v258 = vsel %vm257, %v250, %v254
  %v259 = vand.u32 2147483647, %v249
  %vm260 = vcmp.eq.f32.partialorder %v259, 8.507059e+37
  %v261 = vand.u32 %v249, 2147483648
  %v262 = vor.u32 1.1754944e-38, %v261
  %v263 = vsel %vm260, %v262, %v258
  %v264 = vmul.f32 1.0, %v263
  %v265 = vtanh.pop %v225
  %v266 = vmul.f32 %v244, 0.0
  %268 = vrot.lane.b32.xlu0 %v245, 32
  %v269 = vpop.permute.xlu0 %268
  %v271 = vmul.f32 %v244, %v269
  %273 = vrot.lane.b32.xlu0 %v271, 32
  %v274 = vpop.permute.xlu0 %273
  %v276 = vadd.f32 %v266, %v274
  %v277 = vmul.f32 %v264, 0.0
  %279 = vrot.lane.b32.xlu0 %v265, 32
  %v280 = vpop.permute.xlu0 %279
  %v282 = vmul.f32 %v264, %v280
  %284 = vrot.lane.b32.xlu0 %v282, 32
  %v285 = vpop.permute.xlu0 %284
  %v287 = vadd.f32 %v277, %v285
  %v288 = vtanh.pop %v276
  %290 = vrot.lane.b32.xlu0 %v288, 32
  %v291 = vpop.permute.xlu0 %290
  %v293 = vmul.f32 %v244, %v291
  %v294 = vtanh.pop %v287
  %296 = vrot.lane.b32.xlu0 %v294, 32
  %v297 = vpop.permute.xlu0 %296
  %v299 = vmul.f32 %v264, %v297
  %v300 = vpack.c.bf16 %v293, %v293
  %302 = vrot.lane.b32.xlu0 %v300, 64
  %v303 = vpop.permute.xlu0 %302
  %vm305 = vcmask 257024
  %306 = vst.msk [vmem:[%s5] sm:$0xf] %vm305, %v303
  %v307 = vpack.c.bf16 %v299, %v299
  %309 = vrot.lane.b32.xlu0 %v307, 96
  %v310 = vpop.permute.xlu0 %309
  %s312 = scalar_lea.vmem %s5, 28
  %vm313 = vcmask 519424
  %314 = vst.msk [vmem:[%s312] sm:$0xf] %vm313, %v310
  %s315 = smul.u32 1, 2
  %s316 = smul.addr %s315, 8
  %s317 = scalar_lea.vmem [#allocation2], %s316
  %v318 = vld [vmem:[%s317] sm:$0xff]
  %v319 = vunpack.c.l.b16 %v300
  %v320 = vpack.c.b16 %v319, %v319
  %321 = vrot.lane.b32.xlu0 %v320, 64
  %v322 = vpop.permute.xlu0 %321
  %v324 = vsel %vm178, %v322, 0
  %326 = vmatpush.bf16.msra.mxu0 0
  %327 = vmatpush.bf16.msra.mxu0 0
  %328 = vmatpush.bf16.msra.mxu0 0
  %329 = vmatpush.bf16.msra.mxu0 0
  %330 = vmatpush.bf16.msra.mxu0 0
  %331 = vmatpush.bf16.msra.mxu0 0
  %332 = vmatpush.bf16.msra.mxu0 %v175
  %333 = vmatpush.bf16.msra.mxu0 %v174
  %334 = vmatmul.bf16.gmra.mxu0 %v324
  %v335 = vpop.f32.mrf.mxu0
  %v336 = vadd.f32 0.0, %v335
  %v337 = vpop.f32.mrf.mxu0
  %338 = vdwg.mxu0
  %v339 = vadd.f32 %v318, %v336
  %s340 = smul.u32 6, 2
  %s341 = smul.addr %s340, 8
  %s342 = scalar_lea.vmem [#allocation2], %s341
  %v343 = vld [vmem:[%s342 + $0x8] sm:$0xff]
  %v344 = vunpack.c.l.b16 %v307
  %v345 = vpack.c.b16 %v344, %v344
  %346 = vrot.lane.b32.xlu0 %v345, 64
  %v347 = vpop.permute.xlu0 %346
  %v349 = vsel %vm178, %v347, 0
  %351 = vmatpush.bf16.msra.mxu0 0
  %352 = vmatpush.bf16.msra.mxu0 0
  %353 = vmatpush.bf16.msra.mxu0 0
  %354 = vmatpush.bf16.msra.mxu0 0
  %355 = vmatpush.bf16.msra.mxu0 0
  %356 = vmatpush.bf16.msra.mxu0 0
  %357 = vmatpush.bf16.msra.mxu0 %v209
  %358 = vmatpush.bf16.msra.mxu0 %v208
  %359 = vmatmul.bf16.gmra.mxu0 %v349
  %v360 = vpop.f32.mrf.mxu0
  %v361 = vadd.f32 0.0, %v360
  %v362 = vpop.f32.mrf.mxu0
  %363 = vdwg.mxu0
  %v364 = vadd.f32 %v343, %v361
  %v365 = vxor.u32 %v339, 2147483648
  %v366 = vmul.f32 %v365, 1.442695
  %v367 = vpow.pop %v366
  %v368 = vadd.f32 %v367, 1.0
  %v369 = vrcp.pop %v368
  %v370 = vmul.f32 %v368, %v369
  %v371 = vsub.f32 1.0, %v370
  %v372 = vmul.f32 %v369, %v371
  %v373 = vadd.f32 %v369, %v372
  %vm374 = vweird.f32 %v368
  %vm375 = vweird.f32 %v369
  %vm376 = vmor %vm374, %vm375
  %v377 = vsel %vm376, %v369, %v373
  %v378 = vand.u32 2147483647, %v368
  %vm379 = vcmp.eq.f32.partialorder %v378, 8.507059e+37
  %v380 = vand.u32 %v368, 2147483648
  %v381 = vor.u32 1.1754944e-38, %v380
  %v382 = vsel %vm379, %v381, %v377
  %v383 = vmul.f32 1.0, %v382
  %v384 = vtanh.pop %v339
  %v385 = vxor.u32 %v364, 2147483648
  %v386 = vmul.f32 %v385, 1.442695
  %v387 = vpow.pop %v386
  %v388 = vadd.f32 %v387, 1.0
  %v389 = vrcp.pop %v388
  %v390 = vmul.f32 %v388, %v389
  %v391 = vsub.f32 1.0, %v390
  %v392 = vmul.f32 %v389, %v391
  %v393 = vadd.f32 %v389, %v392
  %vm394 = vweird.f32 %v388
  %vm395 = vweird.f32 %v389
  %vm396 = vmor %vm394, %vm395
  %v397 = vsel %vm396, %v389, %v393
  %v398 = vand.u32 2147483647, %v388
  %vm399 = vcmp.eq.f32.partialorder %v398, 8.507059e+37
  %v400 = vand.u32 %v388, 2147483648
  %v401 = vor.u32 1.1754944e-38, %v400
  %v402 = vsel %vm399, %v401, %v397
  %v403 = vmul.f32 1.0, %v402
  %v404 = vtanh.pop %v364
  %v405 = vmul.f32 %v383, %v276
  %407 = vrot.lane.b32.xlu0 %v384, 32
  %v408 = vpop.permute.xlu0 %407
  %v410 = vmul.f32 %v383, %v408
  %412 = vrot.lane.b32.xlu0 %v410, 32
  %v413 = vpop.permute.xlu0 %412
  %v415 = vadd.f32 %v405, %v413
  %v416 = vmul.f32 %v403, %v287
  %418 = vrot.lane.b32.xlu0 %v404, 32
  %v419 = vpop.permute.xlu0 %418
  %v421 = vmul.f32 %v403, %v419
  %423 = vrot.lane.b32.xlu0 %v421, 32
  %v424 = vpop.permute.xlu0 %423
  %v426 = vadd.f32 %v416, %v424
  %v427 = vtanh.pop %v415
  %429 = vrot.lane.b32.xlu0 %v427, 32
  %v430 = vpop.permute.xlu0 %429
  %v432 = vmul.f32 %v383, %v430
  %v433 = vtanh.pop %v426
  %435 = vrot.lane.b32.xlu0 %v433, 32
  %v436 = vpop.permute.xlu0 %435
  %v438 = vmul.f32 %v403, %v436
  %v439 = vpack.c.bf16 %v432, %v432
  %441 = vrot.lane.b32.xlu0 %v439, 64
  %v442 = vpop.permute.xlu0 %441
  %s444 = scalar_lea.vmem %s5, 4
  %445 = vst.msk [vmem:[%s444] sm:$0xf] %vm305, %v442
  %v446 = vpack.c.bf16 %v438, %v438
  %448 = vrot.lane.b32.xlu0 %v446, 96
  %v449 = vpop.permute.xlu0 %448
  %s451 = scalar_lea.vmem %s5, 24
  %452 = vst.msk [vmem:[%s451] sm:$0xf] %vm313, %v449
  %s453 = smul.u32 2, 2
  %s454 = smul.addr %s453, 8
  %s455 = scalar_lea.vmem [#allocation2], %s454
  %v456 = vld [vmem:[%s455] sm:$0xff]
  %v457 = vunpack.c.l.b16 %v439
  %v458 = vpack.c.b16 %v457, %v457
  %459 = vrot.lane.b32.xlu0 %v458, 64
  %v460 = vpop.permute.xlu0 %459
  %v462 = vsel %vm178, %v460, 0
  %464 = vmatpush.bf16.msra.mxu0 0
  %465 = vmatpush.bf16.msra.mxu0 0
  %466 = vmatpush.bf16.msra.mxu0 0
  %467 = vmatpush.bf16.msra.mxu0 0
  %468 = vmatpush.bf16.msra.mxu0 0
  %469 = vmatpush.bf16.msra.mxu0 0
  %470 = vmatpush.bf16.msra.mxu0 %v175
  %471 = vmatpush.bf16.msra.mxu0 %v174
  %472 = vmatmul.bf16.gmra.mxu0 %v462
  %v473 = vpop.f32.mrf.mxu0
  %v474 = vadd.f32 0.0, %v473
  %v475 = vpop.f32.mrf.mxu0
  %476 = vdwg.mxu0
  %v477 = vadd.f32 %v456, %v474
  %s478 = smul.u32 5, 2
  %s479 = smul.addr %s478, 8
  %s480 = scalar_lea.vmem [#allocation2], %s479
  %v481 = vld [vmem:[%s480 + $0x8] sm:$0xff]
  %v482 = vunpack.c.l.b16 %v446
  %v483 = vpack.c.b16 %v482, %v482
  %484 = vrot.lane.b32.xlu0 %v483, 64
  %v485 = vpop.permute.xlu0 %484
  %v487 = vsel %vm178, %v485, 0
  %489 = vmatpush.bf16.msra.mxu0 0
  %490 = vmatpush.bf16.msra.mxu0 0
  %491 = vmatpush.bf16.msra.mxu0 0
  %492 = vmatpush.bf16.msra.mxu0 0
  %493 = vmatpush.bf16.msra.mxu0 0
  %494 = vmatpush.bf16.msra.mxu0 0
  %495 = vmatpush.bf16.msra.mxu0 %v209
  %496 = vmatpush.bf16.msra.mxu0 %v208
  %497 = vmatmul.bf16.gmra.mxu0 %v487
  %v498 = vpop.f32.mrf.mxu0
  %v499 = vadd.f32 0.0, %v498
  %v500 = vpop.f32.mrf.mxu0
  %501 = vdwg.mxu0
  %v502 = vadd.f32 %v481, %v499
  %v503 = vxor.u32 %v477, 2147483648
  %v504 = vmul.f32 %v503, 1.442695
  %v505 = vpow.pop %v504
  %v506 = vadd.f32 %v505, 1.0
  %v507 = vrcp.pop %v506
  %v508 = vmul.f32 %v506, %v507
  %v509 = vsub.f32 1.0, %v508
  %v510 = vmul.f32 %v507, %v509
  %v511 = vadd.f32 %v507, %v510
  %vm512 = vweird.f32 %v506
  %vm513 = vweird.f32 %v507
  %vm514 = vmor %vm512, %vm513
  %v515 = vsel %vm514, %v507, %v511
  %v516 = vand.u32 2147483647, %v506
  %vm517 = vcmp.eq.f32.partialorder %v516, 8.507059e+37
  %v518 = vand.u32 %v506, 2147483648
  %v519 = vor.u32 1.1754944e-38, %v518
  %v520 = vsel %vm517, %v519, %v515
  %v521 = vmul.f32 1.0, %v520
  %v522 = vtanh.pop %v477
  %v523 = vxor.u32 %v502, 2147483648
  %v524 = vmul.f32 %v523, 1.442695
  %v525 = vpow.pop %v524
  %v526 = vadd.f32 %v525, 1.0
  %v527 = vrcp.pop %v526
  %v528 = vmul.f32 %v526, %v527
  %v529 = vsub.f32 1.0, %v528
  %v530 = vmul.f32 %v527, %v529
  %v531 = vadd.f32 %v527, %v530
  %vm532 = vweird.f32 %v526
  %vm533 = vweird.f32 %v527
  %vm534 = vmor %vm532, %vm533
  %v535 = vsel %vm534, %v527, %v531
  %v536 = vand.u32 2147483647, %v526
  %vm537 = vcmp.eq.f32.partialorder %v536, 8.507059e+37
  %v538 = vand.u32 %v526, 2147483648
  %v539 = vor.u32 1.1754944e-38, %v538
  %v540 = vsel %vm537, %v539, %v535
  %v541 = vmul.f32 1.0, %v540
  %v542 = vtanh.pop %v502
  %v543 = vmul.f32 %v521, %v415
  %545 = vrot.lane.b32.xlu0 %v522, 32
  %v546 = vpop.permute.xlu0 %545
  %v548 = vmul.f32 %v521, %v546
  %550 = vrot.lane.b32.xlu0 %v548, 32
  %v551 = vpop.permute.xlu0 %550
  %v553 = vadd.f32 %v543, %v551
  %v554 = vmul.f32 %v541, %v426
  %556 = vrot.lane.b32.xlu0 %v542, 32
  %v557 = vpop.permute.xlu0 %556
  %v559 = vmul.f32 %v541, %v557
  %561 = vrot.lane.b32.xlu0 %v559, 32
  %v562 = vpop.permute.xlu0 %561
  %v564 = vadd.f32 %v554, %v562
  %v565 = vtanh.pop %v553
  %567 = vrot.lane.b32.xlu0 %v565, 32
  %v568 = vpop.permute.xlu0 %567
  %v570 = vmul.f32 %v521, %v568
  %v571 = vtanh.pop %v564
  %573 = vrot.lane.b32.xlu0 %v571, 32
  %v574 = vpop.permute.xlu0 %573
  %v576 = vmul.f32 %v541, %v574
  %v577 = vpack.c.bf16 %v570, %v570
  %579 = vrot.lane.b32.xlu0 %v577, 64
  %v580 = vpop.permute.xlu0 %579
  %s582 = scalar_lea.vmem %s5, 8
  %583 = vst.msk [vmem:[%s582] sm:$0xf] %vm305, %v580
  %v584 = vpack.c.bf16 %v576, %v576
  %586 = vrot.lane.b32.xlu0 %v584, 96
  %v587 = vpop.permute.xlu0 %586
  %s589 = scalar_lea.vmem %s5, 20
  %590 = vst.msk [vmem:[%s589] sm:$0xf] %vm313, %v587
  %s591 = smul.u32 3, 2
  %s592 = smul.addr %s591, 8
  %s593 = scalar_lea.vmem [#allocation2], %s592
  %v594 = vld [vmem:[%s593] sm:$0xff]
  %v595 = vunpack.c.l.b16 %v577
  %v596 = vpack.c.b16 %v595, %v595
  %597 = vrot.lane.b32.xlu0 %v596, 64
  %v598 = vpop.permute.xlu0 %597
  %v600 = vsel %vm178, %v598, 0
  %602 = vmatpush.bf16.msra.mxu0 0
  %603 = vmatpush.bf16.msra.mxu0 0
  %604 = vmatpush.bf16.msra.mxu0 0
  %605 = vmatpush.bf16.msra.mxu0 0
  %606 = vmatpush.bf16.msra.mxu0 0
  %607 = vmatpush.bf16.msra.mxu0 0
  %608 = vmatpush.bf16.msra.mxu0 %v175
  %609 = vmatpush.bf16.msra.mxu0 %v174
  %610 = vmatmul.bf16.gmra.mxu0 %v600
  %v611 = vpop.f32.mrf.mxu0
  %v612 = vadd.f32 0.0, %v611
  %v613 = vpop.f32.mrf.mxu0
  %614 = vdwg.mxu0
  %v615 = vadd.f32 %v594, %v612
  %s616 = smul.u32 4, 2
  %s617 = smul.addr %s616, 8
  %s618 = scalar_lea.vmem [#allocation2], %s617
  %v619 = vld [vmem:[%s618 + $0x8] sm:$0xff]
  %v620 = vunpack.c.l.b16 %v584
  %v621 = vpack.c.b16 %v620, %v620
  %622 = vrot.lane.b32.xlu0 %v621, 64
  %v623 = vpop.permute.xlu0 %622
  %v625 = vsel %vm178, %v623, 0
  %627 = vmatpush.bf16.msra.mxu0 0
  %628 = vmatpush.bf16.msra.mxu0 0
  %629 = vmatpush.bf16.msra.mxu0 0
  %630 = vmatpush.bf16.msra.mxu0 0
  %631 = vmatpush.bf16.msra.mxu0 0
  %632 = vmatpush.bf16.msra.mxu0 0
  %633 = vmatpush.bf16.msra.mxu0 %v209
  %634 = vmatpush.bf16.msra.mxu0 %v208
  %635 = vmatmul.bf16.gmra.mxu0 %v625
  %v636 = vpop.f32.mrf.mxu0
  %v637 = vadd.f32 0.0, %v636
  %v638 = vpop.f32.mrf.mxu0
  %639 = vdwg.mxu0
  %v640 = vadd.f32 %v619, %v637
  %v641 = vxor.u32 %v615, 2147483648
  %v642 = vmul.f32 %v641, 1.442695
  %v643 = vpow.pop %v642
  %v644 = vadd.f32 %v643, 1.0
  %v645 = vrcp.pop %v644
  %v646 = vmul.f32 %v644, %v645
  %v647 = vsub.f32 1.0, %v646
  %v648 = vmul.f32 %v645, %v647
  %v649 = vadd.f32 %v645, %v648
  %vm650 = vweird.f32 %v644
  %vm651 = vweird.f32 %v645
  %vm652 = vmor %vm650, %vm651
  %v653 = vsel %vm652, %v645, %v649
  %v654 = vand.u32 2147483647, %v644
  %vm655 = vcmp.eq.f32.partialorder %v654, 8.507059e+37
  %v656 = vand.u32 %v644, 2147483648
  %v657 = vor.u32 1.1754944e-38, %v656
  %v658 = vsel %vm655, %v657, %v653
  %v659 = vmul.f32 1.0, %v658
  %v660 = vtanh.pop %v615
  %v661 = vxor.u32 %v640, 2147483648
  %v662 = vmul.f32 %v661, 1.442695
  %v663 = vpow.pop %v662
  %v664 = vadd.f32 %v663, 1.0
  %v665 = vrcp.pop %v664
  %v666 = vmul.f32 %v664, %v665
  %v667 = vsub.f32 1.0, %v666
  %v668 = vmul.f32 %v665, %v667
  %v669 = vadd.f32 %v665, %v668
  %vm670 = vweird.f32 %v664
  %vm671 = vweird.f32 %v665
  %vm672 = vmor %vm670, %vm671
  %v673 = vsel %vm672, %v665, %v669
  %v674 = vand.u32 2147483647, %v664
  %vm675 = vcmp.eq.f32.partialorder %v674, 8.507059e+37
  %v676 = vand.u32 %v664, 2147483648
  %v677 = vor.u32 1.1754944e-38, %v676
  %v678 = vsel %vm675, %v677, %v673
  %v679 = vmul.f32 1.0, %v678
  %v680 = vtanh.pop %v640
  %v681 = vmul.f32 %v659, %v553
  %683 = vrot.lane.b32.xlu0 %v660, 32
  %v684 = vpop.permute.xlu0 %683
  %v686 = vmul.f32 %v659, %v684
  %688 = vrot.lane.b32.xlu0 %v686, 32
  %v689 = vpop.permute.xlu0 %688
  %v691 = vadd.f32 %v681, %v689
  %v692 = vmul.f32 %v679, %v564
  %694 = vrot.lane.b32.xlu0 %v680, 32
  %v695 = vpop.permute.xlu0 %694
  %v697 = vmul.f32 %v679, %v695
  %699 = vrot.lane.b32.xlu0 %v697, 32
  %v700 = vpop.permute.xlu0 %699
  %v702 = vadd.f32 %v692, %v700
  %v703 = vtanh.pop %v691
  %705 = vrot.lane.b32.xlu0 %v703, 32
  %v706 = vpop.permute.xlu0 %705
  %v708 = vmul.f32 %v659, %v706
  %v709 = vtanh.pop %v702
  %711 = vrot.lane.b32.xlu0 %v709, 32
  %v712 = vpop.permute.xlu0 %711
  %v714 = vmul.f32 %v679, %v712
  %v715 = vpack.c.bf16 %v708, %v708
  %717 = vrot.lane.b32.xlu0 %v715, 64
  %v718 = vpop.permute.xlu0 %717
  %s720 = scalar_lea.vmem %s5, 12
  %721 = vst.msk [vmem:[%s720] sm:$0xf] %vm305, %v718
  %v722 = vpack.c.bf16 %v714, %v714
  %724 = vrot.lane.b32.xlu0 %v722, 96
  %v725 = vpop.permute.xlu0 %724
  %s727 = scalar_lea.vmem %s5, 16
  %728 = vst.msk [vmem:[%s727] sm:$0xf] %vm313, %v725
  %v729 = vld [vmem:[%s618] sm:$0xff]
  %v730 = vunpack.c.l.b16 %v715
  %v731 = vpack.c.b16 %v730, %v730
  %732 = vrot.lane.b32.xlu0 %v731, 64
  %v733 = vpop.permute.xlu0 %732
  %v735 = vsel %vm178, %v733, 0
  %737 = vmatpush.bf16.msra.mxu0 0
  %738 = vmatpush.bf16.msra.mxu0 0
  %739 = vmatpush.bf16.msra.mxu0 0
  %740 = vmatpush.bf16.msra.mxu0 0
  %741 = vmatpush.bf16.msra.mxu0 0
  %742 = vmatpush.bf16.msra.mxu0 0
  %743 = vmatpush.bf16.msra.mxu0 %v175
  %744 = vmatpush.bf16.msra.mxu0 %v174
  %745 = vmatmul.bf16.gmra.mxu0 %v735
  %v746 = vpop.f32.mrf.mxu0
  %v747 = vadd.f32 0.0, %v746
  %v748 = vpop.f32.mrf.mxu0
  %749 = vdwg.mxu0
  %v750 = vadd.f32 %v729, %v747
  %v751 = vld [vmem:[%s593 + $0x8] sm:$0xff]
  %v752 = vunpack.c.l.b16 %v722
  %v753 = vpack.c.b16 %v752, %v752
  %754 = vrot.lane.b32.xlu0 %v753, 64
  %v755 = vpop.permute.xlu0 %754
  %v757 = vsel %vm178, %v755, 0
  %759 = vmatpush.bf16.msra.mxu0 0
  %760 = vmatpush.bf16.msra.mxu0 0
  %761 = vmatpush.bf16.msra.mxu0 0
  %762 = vmatpush.bf16.msra.mxu0 0
  %763 = vmatpush.bf16.msra.mxu0 0
  %764 = vmatpush.bf16.msra.mxu0 0
  %765 = vmatpush.bf16.msra.mxu0 %v209
  %766 = vmatpush.bf16.msra.mxu0 %v208
  %767 = vmatmul.bf16.gmra.mxu0 %v757
  %v768 = vpop.f32.mrf.mxu0
  %v769 = vadd.f32 0.0, %v768
  %v770 = vpop.f32.mrf.mxu0
  %771 = vdwg.mxu0
  %v772 = vadd.f32 %v751, %v769
  %v773 = vxor.u32 %v750, 2147483648
  %v774 = vmul.f32 %v773, 1.442695
  %v775 = vpow.pop %v774
  %v776 = vadd.f32 %v775, 1.0
  %v777 = vrcp.pop %v776
  %v778 = vmul.f32 %v776, %v777
  %v779 = vsub.f32 1.0, %v778
  %v780 = vmul.f32 %v777, %v779
  %v781 = vadd.f32 %v777, %v780
  %vm782 = vweird.f32 %v776
  %vm783 = vweird.f32 %v777
  %vm784 = vmor %vm782, %vm783
  %v785 = vsel %vm784, %v777, %v781
  %v786 = vand.u32 2147483647, %v776
  %vm787 = vcmp.eq.f32.partialorder %v786, 8.507059e+37
  %v788 = vand.u32 %v776, 2147483648
  %v789 = vor.u32 1.1754944e-38, %v788
  %v790 = vsel %vm787, %v789, %v785
  %v791 = vmul.f32 1.0, %v790
  %v792 = vtanh.pop %v750
  %v793 = vxor.u32 %v772, 2147483648
  %v794 = vmul.f32 %v793, 1.442695
  %v795 = vpow.pop %v794
  %v796 = vadd.f32 %v795, 1.0
  %v797 = vrcp.pop %v796
  %v798 = vmul.f32 %v796, %v797
  %v799 = vsub.f32 1.0, %v798
  %v800 = vmul.f32 %v797, %v799
  %v801 = vadd.f32 %v797, %v800
  %vm802 = vweird.f32 %v796
  %vm803 = vweird.f32 %v797
  %vm804 = vmor %vm802, %vm803
  %v805 = vsel %vm804, %v797, %v801
  %v806 = vand.u32 2147483647, %v796
  %vm807 = vcmp.eq.f32.partialorder %v806, 8.507059e+37
  %v808 = vand.u32 %v796, 2147483648
  %v809 = vor.u32 1.1754944e-38, %v808
  %v810 = vsel %vm807, %v809, %v805
  %v811 = vmul.f32 1.0, %v810
  %v812 = vtanh.pop %v772
  %v813 = vmul.f32 %v791, %v691
  %815 = vrot.lane.b32.xlu0 %v792, 32
  %v816 = vpop.permute.xlu0 %815
  %v818 = vmul.f32 %v791, %v816
  %820 = vrot.lane.b32.xlu0 %v818, 32
  %v821 = vpop.permute.xlu0 %820
  %v823 = vadd.f32 %v813, %v821
  %v824 = vmul.f32 %v811, %v702
  %826 = vrot.lane.b32.xlu0 %v812, 32
  %v827 = vpop.permute.xlu0 %826
  %v829 = vmul.f32 %v811, %v827
  %831 = vrot.lane.b32.xlu0 %v829, 32
  %v832 = vpop.permute.xlu0 %831
  %v834 = vadd.f32 %v824, %v832
  %v835 = vtanh.pop %v823
  %837 = vrot.lane.b32.xlu0 %v835, 32
  %v838 = vpop.permute.xlu0 %837
  %v840 = vmul.f32 %v791, %v838
  %v841 = vtanh.pop %v834
  %843 = vrot.lane.b32.xlu0 %v841, 32
  %v844 = vpop.permute.xlu0 %843
  %v846 = vmul.f32 %v811, %v844
  %v847 = vpack.c.bf16 %v840, %v840
  %849 = vrot.lane.b32.xlu0 %v847, 64
  %v850 = vpop.permute.xlu0 %849
  %852 = vst.msk [vmem:[%s727] sm:$0xf] %vm305, %v850
  %v853 = vpack.c.bf16 %v846, %v846
  %855 = vrot.lane.b32.xlu0 %v853, 96
  %v856 = vpop.permute.xlu0 %855
  %858 = vst.msk [vmem:[%s720] sm:$0xf] %vm313, %v856
  %v859 = vld [vmem:[%s480] sm:$0xff]
  %v860 = vunpack.c.l.b16 %v847
  %v861 = vpack.c.b16 %v860, %v860
  %862 = vrot.lane.b32.xlu0 %v861, 64
  %v863 = vpop.permute.xlu0 %862
  %v865 = vsel %vm178, %v863, 0
  %867 = vmatpush.bf16.msra.mxu0 0
  %868 = vmatpush.bf16.msra.mxu0 0
  %869 = vmatpush.bf16.msra.mxu0 0
  %870 = vmatpush.bf16.msra.mxu0 0
  %871 = vmatpush.bf16.msra.mxu0 0
  %872 = vmatpush.bf16.msra.mxu0 0
  %873 = vmatpush.bf16.msra.mxu0 %v175
  %874 = vmatpush.bf16.msra.mxu0 %v174
  %875 = vmatmul.bf16.gmra.mxu0 %v865
  %v876 = vpop.f32.mrf.mxu0
  %v877 = vadd.f32 0.0, %v876
  %v878 = vpop.f32.mrf.mxu0
  %879 = vdwg.mxu0
  %v880 = vadd.f32 %v859, %v877
  %v881 = vld [vmem:[%s455 + $0x8] sm:$0xff]
  %v882 = vunpack.c.l.b16 %v853
  %v883 = vpack.c.b16 %v882, %v882
  %884 = vrot.lane.b32.xlu0 %v883, 64
  %v885 = vpop.permute.xlu0 %884
  %v887 = vsel %vm178, %v885, 0
  %889 = vmatpush.bf16.msra.mxu0 0
  %890 = vmatpush.bf16.msra.mxu0 0
  %891 = vmatpush.bf16.msra.mxu0 0
  %892 = vmatpush.bf16.msra.mxu0 0
  %893 = vmatpush.bf16.msra.mxu0 0
  %894 = vmatpush.bf16.msra.mxu0 0
  %895 = vmatpush.bf16.msra.mxu0 %v209
  %896 = vmatpush.bf16.msra.mxu0 %v208
  %897 = vmatmul.bf16.gmra.mxu0 %v887
  %v898 = vpop.f32.mrf.mxu0
  %v899 = vadd.f32 0.0, %v898
  %v900 = vpop.f32.mrf.mxu0
  %901 = vdwg.mxu0
  %v902 = vadd.f32 %v881, %v899
  %v903 = vxor.u32 %v880, 2147483648
  %v904 = vmul.f32 %v903, 1.442695
  %v905 = vpow.pop %v904
  %v906 = vadd.f32 %v905, 1.0
  %v907 = vrcp.pop %v906
  %v908 = vmul.f32 %v906, %v907
  %v909 = vsub.f32 1.0, %v908
  %v910 = vmul.f32 %v907, %v909
  %v911 = vadd.f32 %v907, %v910
  %vm912 = vweird.f32 %v906
  %vm913 = vweird.f32 %v907
  %vm914 = vmor %vm912, %vm913
  %v915 = vsel %vm914, %v907, %v911
  %v916 = vand.u32 2147483647, %v906
  %vm917 = vcmp.eq.f32.partialorder %v916, 8.507059e+37
  %v918 = vand.u32 %v906, 2147483648
  %v919 = vor.u32 1.1754944e-38, %v918
  %v920 = vsel %vm917, %v919, %v915
  %v921 = vmul.f32 1.0, %v920
  %v922 = vtanh.pop %v880
  %v923 = vxor.u32 %v902, 2147483648
  %v924 = vmul.f32 %v923, 1.442695
  %v925 = vpow.pop %v924
  %v926 = vadd.f32 %v925, 1.0
  %v927 = vrcp.pop %v926
  %v928 = vmul.f32 %v926, %v927
  %v929 = vsub.f32 1.0, %v928
  %v930 = vmul.f32 %v927, %v929
  %v931 = vadd.f32 %v927, %v930
  %vm932 = vweird.f32 %v926
  %vm933 = vweird.f32 %v927
  %vm934 = vmor %vm932, %vm933
  %v935 = vsel %vm934, %v927, %v931
  %v936 = vand.u32 2147483647, %v926
  %vm937 = vcmp.eq.f32.partialorder %v936, 8.507059e+37
  %v938 = vand.u32 %v926, 2147483648
  %v939 = vor.u32 1.1754944e-38, %v938
  %v940 = vsel %vm937, %v939, %v935
  %v941 = vmul.f32 1.0, %v940
  %v942 = vtanh.pop %v902
  %v943 = vmul.f32 %v921, %v823
  %945 = vrot.lane.b32.xlu0 %v922, 32
  %v946 = vpop.permute.xlu0 %945
  %v948 = vmul.f32 %v921, %v946
  %950 = vrot.lane.b32.xlu0 %v948, 32
  %v951 = vpop.permute.xlu0 %950
  %v953 = vadd.f32 %v943, %v951
  %v954 = vmul.f32 %v941, %v834
  %956 = vrot.lane.b32.xlu0 %v942, 32
  %v957 = vpop.permute.xlu0 %956
  %v959 = vmul.f32 %v941, %v957
  %961 = vrot.lane.b32.xlu0 %v959, 32
  %v962 = vpop.permute.xlu0 %961
  %v964 = vadd.f32 %v954, %v962
  %v965 = vtanh.pop %v953
  %967 = vrot.lane.b32.xlu0 %v965, 32
  %v968 = vpop.permute.xlu0 %967
  %v970 = vmul.f32 %v921, %v968
  %v971 = vtanh.pop %v964
  %973 = vrot.lane.b32.xlu0 %v971, 32
  %v974 = vpop.permute.xlu0 %973
  %v976 = vmul.f32 %v941, %v974
  %v977 = vpack.c.bf16 %v970, %v970
  %979 = vrot.lane.b32.xlu0 %v977, 64
  %v980 = vpop.permute.xlu0 %979
  %982 = vst.msk [vmem:[%s589] sm:$0xf] %vm305, %v980
  %v983 = vpack.c.bf16 %v976, %v976
  %985 = vrot.lane.b32.xlu0 %v983, 96
  %v986 = vpop.permute.xlu0 %985
  %988 = vst.msk [vmem:[%s582] sm:$0xf] %vm313, %v986
  %v989 = vld [vmem:[%s342] sm:$0xff]
  %v990 = vunpack.c.l.b16 %v977
  %v991 = vpack.c.b16 %v990, %v990
  %992 = vrot.lane.b32.xlu0 %v991, 64
  %v993 = vpop.permute.xlu0 %992
  %v995 = vsel %vm178, %v993, 0
  %997 = vmatpush.bf16.msra.mxu0 0
  %998 = vmatpush.bf16.msra.mxu0 0
  %999 = vmatpush.bf16.msra.mxu0 0
  %1000 = vmatpush.bf16.msra.mxu0 0
  %1001 = vmatpush.bf16.msra.mxu0 0
  %1002 = vmatpush.bf16.msra.mxu0 0
  %1003 = vmatpush.bf16.msra.mxu0 %v175
  %1004 = vmatpush.bf16.msra.mxu0 %v174
  %1005 = vmatmul.bf16.gmra.mxu0 %v995
  %v1006 = vpop.f32.mrf.mxu0
  %v1007 = vadd.f32 0.0, %v1006
  %v1008 = vpop.f32.mrf.mxu0
  %1009 = vdwg.mxu0
  %v1010 = vadd.f32 %v989, %v1007
  %v1011 = vld [vmem:[%s317 + $0x8] sm:$0xff]
  %v1012 = vunpack.c.l.b16 %v983
  %v1013 = vpack.c.b16 %v1012, %v1012
  %1014 = vrot.lane.b32.xlu0 %v1013, 64
  %v1015 = vpop.permute.xlu0 %1014
  %v1017 = vsel %vm178, %v1015, 0
  %1019 = vmatpush.bf16.msra.mxu0 0
  %1020 = vmatpush.bf16.msra.mxu0 0
  %1021 = vmatpush.bf16.msra.mxu0 0
  %1022 = vmatpush.bf16.msra.mxu0 0
  %1023 = vmatpush.bf16.msra.mxu0 0
  %1024 = vmatpush.bf16.msra.mxu0 0
  %1025 = vmatpush.bf16.msra.mxu0 %v209
  %1026 = vmatpush.bf16.msra.mxu0 %v208
  %1027 = vmatmul.bf16.gmra.mxu0 %v1017
  %v1028 = vpop.f32.mrf.mxu0
  %v1029 = vadd.f32 0.0, %v1028
  %v1030 = vpop.f32.mrf.mxu0
  %1031 = vdwg.mxu0
  %v1032 = vadd.f32 %v1011, %v1029
  %v1033 = vxor.u32 %v1010, 2147483648
  %v1034 = vmul.f32 %v1033, 1.442695
  %v1035 = vpow.pop %v1034
  %v1036 = vadd.f32 %v1035, 1.0
  %v1037 = vrcp.pop %v1036
  %v1038 = vmul.f32 %v1036, %v1037
  %v1039 = vsub.f32 1.0, %v1038
  %v1040 = vmul.f32 %v1037, %v1039
  %v1041 = vadd.f32 %v1037, %v1040
  %vm1042 = vweird.f32 %v1036
  %vm1043 = vweird.f32 %v1037
  %vm1044 = vmor %vm1042, %vm1043
  %v1045 = vsel %vm1044, %v1037, %v1041
  %v1046 = vand.u32 2147483647, %v1036
  %vm1047 = vcmp.eq.f32.partialorder %v1046, 8.507059e+37
  %v1048 = vand.u32 %v1036, 2147483648
  %v1049 = vor.u32 1.1754944e-38, %v1048
  %v1050 = vsel %vm1047, %v1049, %v1045
  %v1051 = vmul.f32 1.0, %v1050
  %v1052 = vtanh.pop %v1010
  %v1053 = vxor.u32 %v1032, 2147483648
  %v1054 = vmul.f32 %v1053, 1.442695
  %v1055 = vpow.pop %v1054
  %v1056 = vadd.f32 %v1055, 1.0
  %v1057 = vrcp.pop %v1056
  %v1058 = vmul.f32 %v1056, %v1057
  %v1059 = vsub.f32 1.0, %v1058
  %v1060 = vmul.f32 %v1057, %v1059
  %v1061 = vadd.f32 %v1057, %v1060
  %vm1062 = vweird.f32 %v1056
  %vm1063 = vweird.f32 %v1057
  %vm1064 = vmor %vm1062, %vm1063
  %v1065 = vsel %vm1064, %v1057, %v1061
  %v1066 = vand.u32 2147483647, %v1056
  %vm1067 = vcmp.eq.f32.partialorder %v1066, 8.507059e+37
  %v1068 = vand.u32 %v1056, 2147483648
  %v1069 = vor.u32 1.1754944e-38, %v1068
  %v1070 = vsel %vm1067, %v1069, %v1065
  %v1071 = vmul.f32 1.0, %v1070
  %v1072 = vtanh.pop %v1032
  %v1073 = vmul.f32 %v1051, %v953
  %1075 = vrot.lane.b32.xlu0 %v1052, 32
  %v1076 = vpop.permute.xlu0 %1075
  %v1078 = vmul.f32 %v1051, %v1076
  %1080 = vrot.lane.b32.xlu0 %v1078, 32
  %v1081 = vpop.permute.xlu0 %1080
  %v1083 = vadd.f32 %v1073, %v1081
  %v1084 = vmul.f32 %v1071, %v964
  %1086 = vrot.lane.b32.xlu0 %v1072, 32
  %v1087 = vpop.permute.xlu0 %1086
  %v1089 = vmul.f32 %v1071, %v1087
  %1091 = vrot.lane.b32.xlu0 %v1089, 32
  %v1092 = vpop.permute.xlu0 %1091
  %v1094 = vadd.f32 %v1084, %v1092
  %v1095 = vtanh.pop %v1083
  %1097 = vrot.lane.b32.xlu0 %v1095, 32
  %v1098 = vpop.permute.xlu0 %1097
  %v1100 = vmul.f32 %v1051, %v1098
  %v1101 = vtanh.pop %v1094
  %1103 = vrot.lane.b32.xlu0 %v1101, 32
  %v1104 = vpop.permute.xlu0 %1103
  %v1106 = vmul.f32 %v1071, %v1104
  %v1107 = vpack.c.bf16 %v1100, %v1100
  %1109 = vrot.lane.b32.xlu0 %v1107, 64
  %v1110 = vpop.permute.xlu0 %1109
  %1112 = vst.msk [vmem:[%s451] sm:$0xf] %vm305, %v1110
  %v1113 = vpack.c.bf16 %v1106, %v1106
  %1115 = vrot.lane.b32.xlu0 %v1113, 96
  %v1116 = vpop.permute.xlu0 %1115
  %1118 = vst.msk [vmem:[%s444] sm:$0xf] %vm313, %v1116
  %v1119 = vld [vmem:[%s198] sm:$0xff]
  %v1120 = vunpack.c.l.b16 %v1107
  %v1121 = vpack.c.b16 %v1120, %v1120
  %1122 = vrot.lane.b32.xlu0 %v1121, 64
  %v1123 = vpop.permute.xlu0 %1122
  %v1125 = vsel %vm178, %v1123, 0
  %1127 = vmatpush.bf16.msra.mxu0 0
  %1128 = vmatpush.bf16.msra.mxu0 0
  %1129 = vmatpush.bf16.msra.mxu0 0
  %1130 = vmatpush.bf16.msra.mxu0 0
  %1131 = vmatpush.bf16.msra.mxu0 0
  %1132 = vmatpush.bf16.msra.mxu0 0
  %1133 = vmatpush.bf16.msra.mxu0 %v175
  %1134 = vmatpush.bf16.msra.mxu0 %v174
  %1135 = vmatmul.bf16.gmra.mxu0 %v1125
  %v1136 = vpop.f32.mrf.mxu0
  %v1137 = vadd.f32 0.0, %v1136
  %v1138 = vpop.f32.mrf.mxu0
  %1139 = vdwg.mxu0
  %v1140 = vadd.f32 %v1119, %v1137
  %v1141 = vld [vmem:[%s164 + $0x8] sm:$0xff]
  %v1142 = vunpack.c.l.b16 %v1113
  %v1143 = vpack.c.b16 %v1142, %v1142
  %1144 = vrot.lane.b32.xlu0 %v1143, 64
  %v1145 = vpop.permute.xlu0 %1144
  %v1147 = vsel %vm178, %v1145, 0
  %1149 = vmatpush.bf16.msra.mxu0 0
  %1150 = vmatpush.bf16.msra.mxu0 0
  %1151 = vmatpush.bf16.msra.mxu0 0
  %1152 = vmatpush.bf16.msra.mxu0 0
  %1153 = vmatpush.bf16.msra.mxu0 0
  %1154 = vmatpush.bf16.msra.mxu0 0
  %1155 = vmatpush.bf16.msra.mxu0 %v209
  %1156 = vmatpush.bf16.msra.mxu0 %v208
  %1157 = vmatmul.bf16.gmra.mxu0 %v1147
  %v1158 = vpop.f32.mrf.mxu0
  %v1159 = vadd.f32 0.0, %v1158
  %v1160 = vpop.f32.mrf.mxu0
  %1161 = vdwg.mxu0
  %v1162 = vadd.f32 %v1141, %v1159
  %v1163 = vxor.u32 %v1140, 2147483648
  %v1164 = vmul.f32 %v1163, 1.442695
  %v1165 = vpow.pop %v1164
  %v1166 = vadd.f32 %v1165, 1.0
  %v1167 = vrcp.pop %v1166
  %v1168 = vmul.f32 %v1166, %v1167
  %v1169 = vsub.f32 1.0, %v1168
  %v1170 = vmul.f32 %v1167, %v1169
  %v1171 = vadd.f32 %v1167, %v1170
  %vm1172 = vweird.f32 %v1166
  %vm1173 = vweird.f32 %v1167
  %vm1174 = vmor %vm1172, %vm1173
  %v1175 = vsel %vm1174, %v1167, %v1171
  %v1176 = vand.u32 2147483647, %v1166
  %vm1177 = vcmp.eq.f32.partialorder %v1176, 8.507059e+37
  %v1178 = vand.u32 %v1166, 2147483648
  %v1179 = vor.u32 1.1754944e-38, %v1178
  %v1180 = vsel %vm1177, %v1179, %v1175
  %v1181 = vmul.f32 1.0, %v1180
  %v1182 = vtanh.pop %v1140
  %v1183 = vxor.u32 %v1162, 2147483648
  %v1184 = vmul.f32 %v1183, 1.442695
  %v1185 = vpow.pop %v1184
  %v1186 = vadd.f32 %v1185, 1.0
  %v1187 = vrcp.pop %v1186
  %v1188 = vmul.f32 %v1186, %v1187
  %v1189 = vsub.f32 1.0, %v1188
  %v1190 = vmul.f32 %v1187, %v1189
  %v1191 = vadd.f32 %v1187, %v1190
  %vm1192 = vweird.f32 %v1186
  %vm1193 = vweird.f32 %v1187
  %vm1194 = vmor %vm1192, %vm1193
  %v1195 = vsel %vm1194, %v1187, %v1191
  %v1196 = vand.u32 2147483647, %v1186
  %vm1197 = vcmp.eq.f32.partialorder %v1196, 8.507059e+37
  %v1198 = vand.u32 %v1186, 2147483648
  %v1199 = vor.u32 1.1754944e-38, %v1198
  %v1200 = vsel %vm1197, %v1199, %v1195
  %v1201 = vmul.f32 1.0, %v1200
  %v1202 = vtanh.pop %v1162
  %v1203 = vmul.f32 %v1181, %v1083
  %1205 = vrot.lane.b32.xlu0 %v1182, 32
  %v1206 = vpop.permute.xlu0 %1205
  %v1208 = vmul.f32 %v1181, %v1206
  %1210 = vrot.lane.b32.xlu0 %v1208, 32
  %v1211 = vpop.permute.xlu0 %1210
  %v1213 = vadd.f32 %v1203, %v1211
  %v1214 = vmul.f32 %v1201, %v1094
  %1216 = vrot.lane.b32.xlu0 %v1202, 32
  %v1217 = vpop.permute.xlu0 %1216
  %v1219 = vmul.f32 %v1201, %v1217
  %1221 = vrot.lane.b32.xlu0 %v1219, 32
  %v1222 = vpop.permute.xlu0 %1221
  %v1224 = vadd.f32 %v1214, %v1222
  %v1225 = vtanh.pop %v1213
  %1227 = vrot.lane.b32.xlu0 %v1225, 32
  %v1228 = vpop.permute.xlu0 %1227
  %v1230 = vmul.f32 %v1181, %v1228
  %v1231 = vtanh.pop %v1224
  %1233 = vrot.lane.b32.xlu0 %v1231, 32
  %v1234 = vpop.permute.xlu0 %1233
  %v1236 = vmul.f32 %v1201, %v1234
  %v1237 = vpack.c.bf16 %v1230, %v1230
  %1239 = vrot.lane.b32.xlu0 %v1237, 64
  %v1240 = vpop.permute.xlu0 %1239
  %1242 = vst.msk [vmem:[%s312] sm:$0xf] %vm305, %v1240
  %v1243 = vpack.c.bf16 %v1236, %v1236
  %1245 = vrot.lane.b32.xlu0 %v1243, 96
  %v1246 = vpop.permute.xlu0 %1245
  %1248 = vst.msk [vmem:[%s5] sm:$0xf] %vm313, %v1246
  // Predicated region
  $region22: #{bigru_attention_forward.3} parent=0 // pred_check
    _
  $region23: #{bigru_attention_forward.3} parent=0 // pred_check_branch
    %1250 = sbr.rel (0) target = $region25
  $region24: #{bigru_attention_forward.3} parent=0 // pred_region
    _
  $region25: #{bigru_attention_forward.3} parent=0 // pred_fallthru
    _
  // Predicated region
  $region26: #{bigru_attention_forward.3} parent=0 // pred_check
    _
  $region27: #{bigru_attention_forward.3} parent=0 // pred_check_branch
    %1252 = sbr.rel (0) target = $region29
  $region28: #{bigru_attention_forward.3} parent=0 // pred_region
    _
  $region29: #{bigru_attention_forward.3} parent=0 // pred_fallthru
    _

// kernel: bigru_attention_forward.4
$region0: #{bigru_attention_forward.4}
  #allocation0 [shape = 'u32[]', space=smem, size = 0x4, offset = 0x4, fixed_abs, tag = 'smem constant byte address 0x4 - core index']
  #allocation1 [shape = 'u32[72,128]{1,0:T(1,128)}', space=vmem, size = 0x9000, scoped, tag = 'internal scratch']
  #allocation2 [shape = 'f32[64,256]{1,0:T(8,128)}', space=vmem, size = 0x10000, scoped, tag = 'scratch operand']
  %s0 = inlined_call_operand.vmem [shape: bf16[64,64], index: 0, kind: input, shape index: {}]
  %s1 = inlined_call_operand.vmem [shape: bf16[64,256], index: 1, kind: input, shape index: {}]
  %s2 = inlined_call_operand.vmem [shape: bf16[32,128], index: 2, kind: input, shape index: {}]
  %s3 = inlined_call_operand.vmem [shape: bf16[32,128], index: 3, kind: input, shape index: {}]
  %s4 = inlined_call_operand.vmem [shape: f32[1,256], index: 4, kind: input, shape index: {}]
  %s5 = inlined_call_operand.vmem [shape: f32[64,64], index: 5, kind: output, shape index: {}]
  %s6 = sld [smem:[#allocation0]]
  $region30: #{bigru_attention_forward.4} parent=0
    _
  %s8 = ssub.s32 1, %s6
  %s9 = scalar_select 0, %s8, %s6
  // Predicated region
  $region2: #{bigru_attention_forward.4} parent=0 // pred_check
    _
  $region3: #{bigru_attention_forward.4} parent=0 // pred_check_branch
    %11 = sbr.rel (0) target = $region5
  $region4: #{bigru_attention_forward.4} parent=0 // pred_region
    _
  $region5: #{bigru_attention_forward.4} parent=0 // pred_fallthru
    _
  // Predicated region
  $region6: #{bigru_attention_forward.4} parent=0 // pred_check
    _
  $region7: #{bigru_attention_forward.4} parent=0 // pred_check_branch
    %13 = sbr.rel (0) target = $region9
  $region8: #{bigru_attention_forward.4} parent=0 // pred_region
    _
  $region9: #{bigru_attention_forward.4} parent=0 // pred_fallthru
    _
  // Predicated region
  $region10: #{bigru_attention_forward.4} parent=0 // pred_check
    _
  $region11: #{bigru_attention_forward.4} parent=0 // pred_check_branch
    %15 = sbr.rel (0) target = $region13
  $region12: #{bigru_attention_forward.4} parent=0 // pred_region
    _
  $region13: #{bigru_attention_forward.4} parent=0 // pred_fallthru
    _
  // Predicated region
  $region14: #{bigru_attention_forward.4} parent=0 // pred_check
    _
  $region15: #{bigru_attention_forward.4} parent=0 // pred_check_branch
    %17 = sbr.rel (0) target = $region17
  $region16: #{bigru_attention_forward.4} parent=0 // pred_region
    _
  $region17: #{bigru_attention_forward.4} parent=0 // pred_fallthru
    _
  // Predicated region
  $region18: #{bigru_attention_forward.4} parent=0 // pred_check
    _
  $region19: #{bigru_attention_forward.4} parent=0 // pred_check_branch
    %19 = sbr.rel (0) target = $region21
  $region20: #{bigru_attention_forward.4} parent=0 // pred_region
    _
  $region21: #{bigru_attention_forward.4} parent=0 // pred_fallthru
    _
  %v21 = vld [vmem:[%s0] sm:$0xf]
  %v22 = vld [vmem:[%s0 + $0x4] sm:$0xf]
  %v23 = vld [vmem:[%s0 + $0x8] sm:$0xf]
  %v24 = vld [vmem:[%s0 + $0xc] sm:$0xf]
  %v25 = vld [vmem:[%s0 + $0x10] sm:$0xf]
  %v26 = vld [vmem:[%s0 + $0x14] sm:$0xf]
  %v27 = vld [vmem:[%s0 + $0x18] sm:$0xf]
  %v28 = vld [vmem:[%s0 + $0x1c] sm:$0xf]
  %v29 = vld [vmem:[%s1] sm:$0xff]
  %v30 = vld [vmem:[%s1 + $0x8] sm:$0xff]
  %v31 = vld [vmem:[%s1 + $0x10] sm:$0xff]
  %v32 = vld [vmem:[%s1 + $0x18] sm:$0xff]
  %v33 = vld [vmem:[%s1 + $0x20] sm:$0xff]
  %v34 = vld [vmem:[%s1 + $0x28] sm:$0xff]
  %v35 = vld [vmem:[%s1 + $0x30] sm:$0xff]
  %v36 = vld [vmem:[%s1 + $0x38] sm:$0xff]
  %v37 = vld [vmem:[%s4] sm:$0x3]
  %v39 = vperm.slane %v37, 0
  %v40 = vperm.slane %v37, 1
  %v51 = vunpack.c.l.b16 %v21
  %v52 = vunpack.c.l.b16 %v22
  %v53 = vunpack.c.l.b16 %v23
  %v54 = vunpack.c.l.b16 %v24
  %v55 = vunpack.c.l.b16 %v25
  %v56 = vunpack.c.l.b16 %v26
  %v57 = vunpack.c.l.b16 %v27
  %v58 = vunpack.c.l.b16 %v28
  %v59 = vpack.c.b16 %v52, %v51
  %v60 = vpack.c.b16 %v54, %v53
  %v61 = vpack.c.b16 %v56, %v55
  %v62 = vpack.c.b16 %v58, %v57
  %v71 = vunpack.c.l.b16 %v29
  %v72 = vunpack.c.h.b16 %v29
  %v73 = vunpack.c.l.b16 %v30
  %v74 = vunpack.c.h.b16 %v30
  %v75 = vunpack.c.l.b16 %v31
  %v76 = vunpack.c.h.b16 %v31
  %v77 = vunpack.c.l.b16 %v32
  %v78 = vunpack.c.h.b16 %v32
  %v79 = vunpack.c.l.b16 %v33
  %v80 = vunpack.c.h.b16 %v33
  %v81 = vunpack.c.l.b16 %v34
  %v82 = vunpack.c.h.b16 %v34
  %v83 = vunpack.c.l.b16 %v35
  %v84 = vunpack.c.h.b16 %v35
  %v85 = vunpack.c.l.b16 %v36
  %v86 = vunpack.c.h.b16 %v36
  %v87 = vpack.c.b16 %v73, %v71
  %v88 = vpack.c.b16 %v74, %v72
  %v89 = vpack.c.b16 %v77, %v75
  %v90 = vpack.c.b16 %v78, %v76
  %v91 = vpack.c.b16 %v81, %v79
  %v92 = vpack.c.b16 %v82, %v80
  %v93 = vpack.c.b16 %v85, %v83
  %v94 = vpack.c.b16 %v86, %v84
  %vm103 = vcmask 523264
  %v105 = vsel %vm103, %v59, 0
  %v108 = vsel %vm103, %v60, 0
  %v111 = vsel %vm103, %v61, 0
  %v114 = vsel %vm103, %v62, 0
  %116 = vmatpush.bf16.msra.mxu0 0
  %117 = vmatpush.bf16.msra.mxu0 0
  %118 = vmatpush.bf16.msra.mxu0 0
  %119 = vmatpush.bf16.msra.mxu0 0
  %120 = vmatpush.bf16.msra.mxu0 %v93
  %121 = vmatpush.bf16.msra.mxu0 %v91
  %122 = vmatpush.bf16.msra.mxu0 %v89
  %123 = vmatpush.bf16.msra.mxu0 %v87
  %124 = vmatmul.bf16.gmra.mxu0 %v105
  %v125 = vpop.f32.mrf.mxu0
  %v126 = vadd.f32 %v39, %v125
  %v127 = vpop.f32.mrf.mxu0
  %v128 = vadd.f32 %v39, %v127
  %129 = vmatmul.bf16.gmra.mxu0 %v108
  %v130 = vpop.f32.mrf.mxu0
  %v131 = vadd.f32 %v39, %v130
  %v132 = vpop.f32.mrf.mxu0
  %v133 = vadd.f32 %v39, %v132
  %134 = vmatmul.bf16.gmra.mxu0 %v111
  %v135 = vpop.f32.mrf.mxu0
  %v136 = vadd.f32 %v39, %v135
  %v137 = vpop.f32.mrf.mxu0
  %v138 = vadd.f32 %v39, %v137
  %139 = vmatmul.bf16.gmra.mxu0 %v114
  %v140 = vpop.f32.mrf.mxu0
  %v141 = vadd.f32 %v39, %v140
  %v142 = vpop.f32.mrf.mxu0
  %v143 = vadd.f32 %v39, %v142
  %144 = vdwg.mxu0
  %145 = vmatpush.bf16.msra.mxu0 0
  %146 = vmatpush.bf16.msra.mxu0 0
  %147 = vmatpush.bf16.msra.mxu0 0
  %148 = vmatpush.bf16.msra.mxu0 0
  %149 = vmatpush.bf16.msra.mxu0 %v94
  %150 = vmatpush.bf16.msra.mxu0 %v92
  %151 = vmatpush.bf16.msra.mxu0 %v90
  %152 = vmatpush.bf16.msra.mxu0 %v88
  %153 = vmatmul.bf16.gmra.mxu0 %v105
  %v154 = vpop.f32.mrf.mxu0
  %v155 = vadd.f32 %v40, %v154
  %v156 = vpop.f32.mrf.mxu0
  %v157 = vadd.f32 %v40, %v156
  %158 = vmatmul.bf16.gmra.mxu0 %v108
  %v159 = vpop.f32.mrf.mxu0
  %v160 = vadd.f32 %v40, %v159
  %v161 = vpop.f32.mrf.mxu0
  %v162 = vadd.f32 %v40, %v161
  %163 = vmatmul.bf16.gmra.mxu0 %v111
  %v164 = vpop.f32.mrf.mxu0
  %v165 = vadd.f32 %v40, %v164
  %v166 = vpop.f32.mrf.mxu0
  %v167 = vadd.f32 %v40, %v166
  %168 = vmatmul.bf16.gmra.mxu0 %v114
  %v169 = vpop.f32.mrf.mxu0
  %v170 = vadd.f32 %v40, %v169
  %v171 = vpop.f32.mrf.mxu0
  %v172 = vadd.f32 %v40, %v171
  %173 = vdwg.mxu0
  %174 = vst [vmem:[#allocation2] sm:$0xff] %v126
  %175 = vst [vmem:[#allocation2 + $0x8] sm:$0xff] %v155
  %176 = vst [vmem:[#allocation2 + $0x10] sm:$0xff] %v128
  %177 = vst [vmem:[#allocation2 + $0x18] sm:$0xff] %v157
  %178 = vst [vmem:[#allocation2 + $0x20] sm:$0xff] %v131
  %179 = vst [vmem:[#allocation2 + $0x28] sm:$0xff] %v160
  %180 = vst [vmem:[#allocation2 + $0x30] sm:$0xff] %v133
  %181 = vst [vmem:[#allocation2 + $0x38] sm:$0xff] %v162
  %182 = vst [vmem:[#allocation2 + $0x40] sm:$0xff] %v136
  %183 = vst [vmem:[#allocation2 + $0x48] sm:$0xff] %v165
  %184 = vst [vmem:[#allocation2 + $0x50] sm:$0xff] %v138
  %185 = vst [vmem:[#allocation2 + $0x58] sm:$0xff] %v167
  %186 = vst [vmem:[#allocation2 + $0x60] sm:$0xff] %v141
  %187 = vst [vmem:[#allocation2 + $0x68] sm:$0xff] %v170
  %188 = vst [vmem:[#allocation2 + $0x70] sm:$0xff] %v143
  %189 = vst [vmem:[#allocation2 + $0x78] sm:$0xff] %v172
  %v190 = vld [vmem:[%s2] sm:$0xf]
  %v191 = vld [vmem:[%s2 + $0x4] sm:$0xf]
  %v192 = vld [vmem:[%s2 + $0x8] sm:$0xf]
  %v193 = vld [vmem:[%s2 + $0xc] sm:$0xf]
  %v194 = vld [vmem:[%s3] sm:$0xf]
  %v195 = vld [vmem:[%s3 + $0x4] sm:$0xf]
  %v196 = vld [vmem:[%s3 + $0x8] sm:$0xf]
  %v197 = vld [vmem:[%s3 + $0xc] sm:$0xf]
  %s198 = smul.u32 0, 2
  %s199 = smul.addr %s198, 8
  %s200 = scalar_lea.vmem [#allocation2], %s199
  %v201 = vld [vmem:[%s200] sm:$0xff]
  %v206 = vunpack.c.l.b16 %v190
  %v207 = vunpack.c.l.b16 %v191
  %v208 = vunpack.c.l.b16 %v192
  %v209 = vunpack.c.l.b16 %v193
  %v210 = vpack.c.b16 %v207, %v206
  %v211 = vpack.c.b16 %v209, %v208
  %vm214 = vcmask 261120
  %v216 = vsel %vm214, 0, 0
  %218 = vmatpush.bf16.msra.mxu0 0
  %219 = vmatpush.bf16.msra.mxu0 0
  %220 = vmatpush.bf16.msra.mxu0 0
  %221 = vmatpush.bf16.msra.mxu0 0
  %222 = vmatpush.bf16.msra.mxu0 0
  %223 = vmatpush.bf16.msra.mxu0 0
  %224 = vmatpush.bf16.msra.mxu0 %v211
  %225 = vmatpush.bf16.msra.mxu0 %v210
  %226 = vmatmul.bf16.gmra.mxu0 %v216
  %v227 = vpop.f32.mrf.mxu0
  %v228 = vadd.f32 0.0, %v227
  %v229 = vpop.f32.mrf.mxu0
  %230 = vdwg.mxu0
  %v231 = vadd.f32 %v201, %v228
  %s232 = smul.u32 7, 2
  %s233 = smul.addr %s232, 8
  %s234 = scalar_lea.vmem [#allocation2], %s233
  %v235 = vld [vmem:[%s234 + $0x8] sm:$0xff]
  %v240 = vunpack.c.l.b16 %v194
  %v241 = vunpack.c.l.b16 %v195
  %v242 = vunpack.c.l.b16 %v196
  %v243 = vunpack.c.l.b16 %v197
  %v244 = vpack.c.b16 %v241, %v240
  %v245 = vpack.c.b16 %v243, %v242
  %248 = vmatpush.bf16.msra.mxu0 0
  %249 = vmatpush.bf16.msra.mxu0 0
  %250 = vmatpush.bf16.msra.mxu0 0
  %251 = vmatpush.bf16.msra.mxu0 0
  %252 = vmatpush.bf16.msra.mxu0 0
  %253 = vmatpush.bf16.msra.mxu0 0
  %254 = vmatpush.bf16.msra.mxu0 %v245
  %255 = vmatpush.bf16.msra.mxu0 %v244
  %256 = vmatmul.bf16.gmra.mxu0 %v216
  %v257 = vpop.f32.mrf.mxu0
  %v258 = vadd.f32 0.0, %v257
  %v259 = vpop.f32.mrf.mxu0
  %260 = vdwg.mxu0
  %v261 = vadd.f32 %v235, %v258
  %v262 = vxor.u32 %v231, 2147483648
  %v263 = vmul.f32 %v262, 1.442695
  %v264 = vpow.pop %v263
  %v265 = vadd.f32 %v264, 1.0
  %v266 = vrcp.pop %v265
  %v267 = vmul.f32 %v265, %v266
  %v268 = vsub.f32 1.0, %v267
  %v269 = vmul.f32 %v266, %v268
  %v270 = vadd.f32 %v266, %v269
  %vm271 = vweird.f32 %v265
  %vm272 = vweird.f32 %v266
  %vm273 = vmor %vm271, %vm272
  %v274 = vsel %vm273, %v266, %v270
  %v275 = vand.u32 2147483647, %v265
  %vm276 = vcmp.eq.f32.partialorder %v275, 8.507059e+37
  %v277 = vand.u32 %v265, 2147483648
  %v278 = vor.u32 1.1754944e-38, %v277
  %v279 = vsel %vm276, %v278, %v274
  %v280 = vmul.f32 1.0, %v279
  %v281 = vtanh.pop %v231
  %v282 = vxor.u32 %v261, 2147483648
  %v283 = vmul.f32 %v282, 1.442695
  %v284 = vpow.pop %v283
  %v285 = vadd.f32 %v284, 1.0
  %v286 = vrcp.pop %v285
  %v287 = vmul.f32 %v285, %v286
  %v288 = vsub.f32 1.0, %v287
  %v289 = vmul.f32 %v286, %v288
  %v290 = vadd.f32 %v286, %v289
  %vm291 = vweird.f32 %v285
  %vm292 = vweird.f32 %v286
  %vm293 = vmor %vm291, %vm292
  %v294 = vsel %vm293, %v286, %v290
  %v295 = vand.u32 2147483647, %v285
  %vm296 = vcmp.eq.f32.partialorder %v295, 8.507059e+37
  %v297 = vand.u32 %v285, 2147483648
  %v298 = vor.u32 1.1754944e-38, %v297
  %v299 = vsel %vm296, %v298, %v294
  %v300 = vmul.f32 1.0, %v299
  %v301 = vtanh.pop %v261
  %v302 = vmul.f32 %v280, 0.0
  %304 = vrot.lane.b32.xlu0 %v281, 32
  %v305 = vpop.permute.xlu0 %304
  %v307 = vmul.f32 %v280, %v305
  %309 = vrot.lane.b32.xlu0 %v307, 32
  %v310 = vpop.permute.xlu0 %309
  %v312 = vadd.f32 %v302, %v310
  %v313 = vmul.f32 %v300, 0.0
  %315 = vrot.lane.b32.xlu0 %v301, 32
  %v316 = vpop.permute.xlu0 %315
  %v318 = vmul.f32 %v300, %v316
  %320 = vrot.lane.b32.xlu0 %v318, 32
  %v321 = vpop.permute.xlu0 %320
  %v323 = vadd.f32 %v313, %v321
  %v324 = vtanh.pop %v312
  %326 = vrot.lane.b32.xlu0 %v324, 32
  %v327 = vpop.permute.xlu0 %326
  %v329 = vmul.f32 %v280, %v327
  %v330 = vtanh.pop %v323
  %332 = vrot.lane.b32.xlu0 %v330, 32
  %v333 = vpop.permute.xlu0 %332
  %v335 = vmul.f32 %v300, %v333
  %337 = vrot.lane.b32.xlu0 %v329, 64
  %v338 = vpop.permute.xlu0 %337
  %340 = vst.msk [vmem:[%s5] sm:$0xff] %vm214, %v338
  %342 = vrot.lane.b32.xlu0 %v335, 96
  %v343 = vpop.permute.xlu0 %342
  %s345 = scalar_lea.vmem %s5, 56
  %vm346 = vcmask 523520
  %347 = vst.msk [vmem:[%s345] sm:$0xff] %vm346, %v343
  %s348 = smul.u32 1, 2
  %s349 = smul.addr %s348, 8
  %s350 = scalar_lea.vmem [#allocation2], %s349
  %v351 = vld [vmem:[%s350] sm:$0xff]
  %v352 = vpack.c.bf16 %v329, %v329
  %354 = vrot.lane.b32.xlu0 %v352, 64
  %v355 = vpop.permute.xlu0 %354
  %v357 = vsel %vm214, %v355, 0
  %359 = vmatpush.bf16.msra.mxu0 0
  %360 = vmatpush.bf16.msra.mxu0 0
  %361 = vmatpush.bf16.msra.mxu0 0
  %362 = vmatpush.bf16.msra.mxu0 0
  %363 = vmatpush.bf16.msra.mxu0 0
  %364 = vmatpush.bf16.msra.mxu0 0
  %365 = vmatpush.bf16.msra.mxu0 %v211
  %366 = vmatpush.bf16.msra.mxu0 %v210
  %367 = vmatmul.bf16.gmra.mxu0 %v357
  %v368 = vpop.f32.mrf.mxu0
  %v369 = vadd.f32 0.0, %v368
  %v370 = vpop.f32.mrf.mxu0
  %371 = vdwg.mxu0
  %v372 = vadd.f32 %v351, %v369
  %s373 = smul.u32 6, 2
  %s374 = smul.addr %s373, 8
  %s375 = scalar_lea.vmem [#allocation2], %s374
  %v376 = vld [vmem:[%s375 + $0x8] sm:$0xff]
  %v377 = vpack.c.bf16 %v335, %v335
  %379 = vrot.lane.b32.xlu0 %v377, 64
  %v380 = vpop.permute.xlu0 %379
  %v382 = vsel %vm214, %v380, 0
  %384 = vmatpush.bf16.msra.mxu0 0
  %385 = vmatpush.bf16.msra.mxu0 0
  %386 = vmatpush.bf16.msra.mxu0 0
  %387 = vmatpush.bf16.msra.mxu0 0
  %388 = vmatpush.bf16.msra.mxu0 0
  %389 = vmatpush.bf16.msra.mxu0 0
  %390 = vmatpush.bf16.msra.mxu0 %v245
  %391 = vmatpush.bf16.msra.mxu0 %v244
  %392 = vmatmul.bf16.gmra.mxu0 %v382
  %v393 = vpop.f32.mrf.mxu0
  %v394 = vadd.f32 0.0, %v393
  %v395 = vpop.f32.mrf.mxu0
  %396 = vdwg.mxu0
  %v397 = vadd.f32 %v376, %v394
  %v398 = vxor.u32 %v372, 2147483648
  %v399 = vmul.f32 %v398, 1.442695
  %v400 = vpow.pop %v399
  %v401 = vadd.f32 %v400, 1.0
  %v402 = vrcp.pop %v401
  %v403 = vmul.f32 %v401, %v402
  %v404 = vsub.f32 1.0, %v403
  %v405 = vmul.f32 %v402, %v404
  %v406 = vadd.f32 %v402, %v405
  %vm407 = vweird.f32 %v401
  %vm408 = vweird.f32 %v402
  %vm409 = vmor %vm407, %vm408
  %v410 = vsel %vm409, %v402, %v406
  %v411 = vand.u32 2147483647, %v401
  %vm412 = vcmp.eq.f32.partialorder %v411, 8.507059e+37
  %v413 = vand.u32 %v401, 2147483648
  %v414 = vor.u32 1.1754944e-38, %v413
  %v415 = vsel %vm412, %v414, %v410
  %v416 = vmul.f32 1.0, %v415
  %v417 = vtanh.pop %v372
  %v418 = vxor.u32 %v397, 2147483648
  %v419 = vmul.f32 %v418, 1.442695
  %v420 = vpow.pop %v419
  %v421 = vadd.f32 %v420, 1.0
  %v422 = vrcp.pop %v421
  %v423 = vmul.f32 %v421, %v422
  %v424 = vsub.f32 1.0, %v423
  %v425 = vmul.f32 %v422, %v424
  %v426 = vadd.f32 %v422, %v425
  %vm427 = vweird.f32 %v421
  %vm428 = vweird.f32 %v422
  %vm429 = vmor %vm427, %vm428
  %v430 = vsel %vm429, %v422, %v426
  %v431 = vand.u32 2147483647, %v421
  %vm432 = vcmp.eq.f32.partialorder %v431, 8.507059e+37
  %v433 = vand.u32 %v421, 2147483648
  %v434 = vor.u32 1.1754944e-38, %v433
  %v435 = vsel %vm432, %v434, %v430
  %v436 = vmul.f32 1.0, %v435
  %v437 = vtanh.pop %v397
  %v438 = vmul.f32 %v416, %v312
  %440 = vrot.lane.b32.xlu0 %v417, 32
  %v441 = vpop.permute.xlu0 %440
  %v443 = vmul.f32 %v416, %v441
  %445 = vrot.lane.b32.xlu0 %v443, 32
  %v446 = vpop.permute.xlu0 %445
  %v448 = vadd.f32 %v438, %v446
  %v449 = vmul.f32 %v436, %v323
  %451 = vrot.lane.b32.xlu0 %v437, 32
  %v452 = vpop.permute.xlu0 %451
  %v454 = vmul.f32 %v436, %v452
  %456 = vrot.lane.b32.xlu0 %v454, 32
  %v457 = vpop.permute.xlu0 %456
  %v459 = vadd.f32 %v449, %v457
  %v460 = vtanh.pop %v448
  %462 = vrot.lane.b32.xlu0 %v460, 32
  %v463 = vpop.permute.xlu0 %462
  %v465 = vmul.f32 %v416, %v463
  %v466 = vtanh.pop %v459
  %468 = vrot.lane.b32.xlu0 %v466, 32
  %v469 = vpop.permute.xlu0 %468
  %v471 = vmul.f32 %v436, %v469
  %473 = vrot.lane.b32.xlu0 %v465, 64
  %v474 = vpop.permute.xlu0 %473
  %s476 = scalar_lea.vmem %s5, 8
  %477 = vst.msk [vmem:[%s476] sm:$0xff] %vm214, %v474
  %479 = vrot.lane.b32.xlu0 %v471, 96
  %v480 = vpop.permute.xlu0 %479
  %s482 = scalar_lea.vmem %s5, 48
  %483 = vst.msk [vmem:[%s482] sm:$0xff] %vm346, %v480
  %s484 = smul.u32 2, 2
  %s485 = smul.addr %s484, 8
  %s486 = scalar_lea.vmem [#allocation2], %s485
  %v487 = vld [vmem:[%s486] sm:$0xff]
  %v488 = vpack.c.bf16 %v465, %v465
  %490 = vrot.lane.b32.xlu0 %v488, 64
  %v491 = vpop.permute.xlu0 %490
  %v493 = vsel %vm214, %v491, 0
  %495 = vmatpush.bf16.msra.mxu0 0
  %496 = vmatpush.bf16.msra.mxu0 0
  %497 = vmatpush.bf16.msra.mxu0 0
  %498 = vmatpush.bf16.msra.mxu0 0
  %499 = vmatpush.bf16.msra.mxu0 0
  %500 = vmatpush.bf16.msra.mxu0 0
  %501 = vmatpush.bf16.msra.mxu0 %v211
  %502 = vmatpush.bf16.msra.mxu0 %v210
  %503 = vmatmul.bf16.gmra.mxu0 %v493
  %v504 = vpop.f32.mrf.mxu0
  %v505 = vadd.f32 0.0, %v504
  %v506 = vpop.f32.mrf.mxu0
  %507 = vdwg.mxu0
  %v508 = vadd.f32 %v487, %v505
  %s509 = smul.u32 5, 2
  %s510 = smul.addr %s509, 8
  %s511 = scalar_lea.vmem [#allocation2], %s510
  %v512 = vld [vmem:[%s511 + $0x8] sm:$0xff]
  %v513 = vpack.c.bf16 %v471, %v471
  %515 = vrot.lane.b32.xlu0 %v513, 64
  %v516 = vpop.permute.xlu0 %515
  %v518 = vsel %vm214, %v516, 0
  %520 = vmatpush.bf16.msra.mxu0 0
  %521 = vmatpush.bf16.msra.mxu0 0
  %522 = vmatpush.bf16.msra.mxu0 0
  %523 = vmatpush.bf16.msra.mxu0 0
  %524 = vmatpush.bf16.msra.mxu0 0
  %525 = vmatpush.bf16.msra.mxu0 0
  %526 = vmatpush.bf16.msra.mxu0 %v245
  %527 = vmatpush.bf16.msra.mxu0 %v244
  %528 = vmatmul.bf16.gmra.mxu0 %v518
  %v529 = vpop.f32.mrf.mxu0
  %v530 = vadd.f32 0.0, %v529
  %v531 = vpop.f32.mrf.mxu0
  %532 = vdwg.mxu0
  %v533 = vadd.f32 %v512, %v530
  %v534 = vxor.u32 %v508, 2147483648
  %v535 = vmul.f32 %v534, 1.442695
  %v536 = vpow.pop %v535
  %v537 = vadd.f32 %v536, 1.0
  %v538 = vrcp.pop %v537
  %v539 = vmul.f32 %v537, %v538
  %v540 = vsub.f32 1.0, %v539
  %v541 = vmul.f32 %v538, %v540
  %v542 = vadd.f32 %v538, %v541
  %vm543 = vweird.f32 %v537
  %vm544 = vweird.f32 %v538
  %vm545 = vmor %vm543, %vm544
  %v546 = vsel %vm545, %v538, %v542
  %v547 = vand.u32 2147483647, %v537
  %vm548 = vcmp.eq.f32.partialorder %v547, 8.507059e+37
  %v549 = vand.u32 %v537, 2147483648
  %v550 = vor.u32 1.1754944e-38, %v549
  %v551 = vsel %vm548, %v550, %v546
  %v552 = vmul.f32 1.0, %v551
  %v553 = vtanh.pop %v508
  %v554 = vxor.u32 %v533, 2147483648
  %v555 = vmul.f32 %v554, 1.442695
  %v556 = vpow.pop %v555
  %v557 = vadd.f32 %v556, 1.0
  %v558 = vrcp.pop %v557
  %v559 = vmul.f32 %v557, %v558
  %v560 = vsub.f32 1.0, %v559
  %v561 = vmul.f32 %v558, %v560
  %v562 = vadd.f32 %v558, %v561
  %vm563 = vweird.f32 %v557
  %vm564 = vweird.f32 %v558
  %vm565 = vmor %vm563, %vm564
  %v566 = vsel %vm565, %v558, %v562
  %v567 = vand.u32 2147483647, %v557
  %vm568 = vcmp.eq.f32.partialorder %v567, 8.507059e+37
  %v569 = vand.u32 %v557, 2147483648
  %v570 = vor.u32 1.1754944e-38, %v569
  %v571 = vsel %vm568, %v570, %v566
  %v572 = vmul.f32 1.0, %v571
  %v573 = vtanh.pop %v533
  %v574 = vmul.f32 %v552, %v448
  %576 = vrot.lane.b32.xlu0 %v553, 32
  %v577 = vpop.permute.xlu0 %576
  %v579 = vmul.f32 %v552, %v577
  %581 = vrot.lane.b32.xlu0 %v579, 32
  %v582 = vpop.permute.xlu0 %581
  %v584 = vadd.f32 %v574, %v582
  %v585 = vmul.f32 %v572, %v459
  %587 = vrot.lane.b32.xlu0 %v573, 32
  %v588 = vpop.permute.xlu0 %587
  %v590 = vmul.f32 %v572, %v588
  %592 = vrot.lane.b32.xlu0 %v590, 32
  %v593 = vpop.permute.xlu0 %592
  %v595 = vadd.f32 %v585, %v593
  %v596 = vtanh.pop %v584
  %598 = vrot.lane.b32.xlu0 %v596, 32
  %v599 = vpop.permute.xlu0 %598
  %v601 = vmul.f32 %v552, %v599
  %v602 = vtanh.pop %v595
  %604 = vrot.lane.b32.xlu0 %v602, 32
  %v605 = vpop.permute.xlu0 %604
  %v607 = vmul.f32 %v572, %v605
  %609 = vrot.lane.b32.xlu0 %v601, 64
  %v610 = vpop.permute.xlu0 %609
  %s612 = scalar_lea.vmem %s5, 16
  %613 = vst.msk [vmem:[%s612] sm:$0xff] %vm214, %v610
  %615 = vrot.lane.b32.xlu0 %v607, 96
  %v616 = vpop.permute.xlu0 %615
  %s618 = scalar_lea.vmem %s5, 40
  %619 = vst.msk [vmem:[%s618] sm:$0xff] %vm346, %v616
  %s620 = smul.u32 3, 2
  %s621 = smul.addr %s620, 8
  %s622 = scalar_lea.vmem [#allocation2], %s621
  %v623 = vld [vmem:[%s622] sm:$0xff]
  %v624 = vpack.c.bf16 %v601, %v601
  %626 = vrot.lane.b32.xlu0 %v624, 64
  %v627 = vpop.permute.xlu0 %626
  %v629 = vsel %vm214, %v627, 0
  %631 = vmatpush.bf16.msra.mxu0 0
  %632 = vmatpush.bf16.msra.mxu0 0
  %633 = vmatpush.bf16.msra.mxu0 0
  %634 = vmatpush.bf16.msra.mxu0 0
  %635 = vmatpush.bf16.msra.mxu0 0
  %636 = vmatpush.bf16.msra.mxu0 0
  %637 = vmatpush.bf16.msra.mxu0 %v211
  %638 = vmatpush.bf16.msra.mxu0 %v210
  %639 = vmatmul.bf16.gmra.mxu0 %v629
  %v640 = vpop.f32.mrf.mxu0
  %v641 = vadd.f32 0.0, %v640
  %v642 = vpop.f32.mrf.mxu0
  %643 = vdwg.mxu0
  %v644 = vadd.f32 %v623, %v641
  %s645 = smul.u32 4, 2
  %s646 = smul.addr %s645, 8
  %s647 = scalar_lea.vmem [#allocation2], %s646
  %v648 = vld [vmem:[%s647 + $0x8] sm:$0xff]
  %v649 = vpack.c.bf16 %v607, %v607
  %651 = vrot.lane.b32.xlu0 %v649, 64
  %v652 = vpop.permute.xlu0 %651
  %v654 = vsel %vm214, %v652, 0
  %656 = vmatpush.bf16.msra.mxu0 0
  %657 = vmatpush.bf16.msra.mxu0 0
  %658 = vmatpush.bf16.msra.mxu0 0
  %659 = vmatpush.bf16.msra.mxu0 0
  %660 = vmatpush.bf16.msra.mxu0 0
  %661 = vmatpush.bf16.msra.mxu0 0
  %662 = vmatpush.bf16.msra.mxu0 %v245
  %663 = vmatpush.bf16.msra.mxu0 %v244
  %664 = vmatmul.bf16.gmra.mxu0 %v654
  %v665 = vpop.f32.mrf.mxu0
  %v666 = vadd.f32 0.0, %v665
  %v667 = vpop.f32.mrf.mxu0
  %668 = vdwg.mxu0
  %v669 = vadd.f32 %v648, %v666
  %v670 = vxor.u32 %v644, 2147483648
  %v671 = vmul.f32 %v670, 1.442695
  %v672 = vpow.pop %v671
  %v673 = vadd.f32 %v672, 1.0
  %v674 = vrcp.pop %v673
  %v675 = vmul.f32 %v673, %v674
  %v676 = vsub.f32 1.0, %v675
  %v677 = vmul.f32 %v674, %v676
  %v678 = vadd.f32 %v674, %v677
  %vm679 = vweird.f32 %v673
  %vm680 = vweird.f32 %v674
  %vm681 = vmor %vm679, %vm680
  %v682 = vsel %vm681, %v674, %v678
  %v683 = vand.u32 2147483647, %v673
  %vm684 = vcmp.eq.f32.partialorder %v683, 8.507059e+37
  %v685 = vand.u32 %v673, 2147483648
  %v686 = vor.u32 1.1754944e-38, %v685
  %v687 = vsel %vm684, %v686, %v682
  %v688 = vmul.f32 1.0, %v687
  %v689 = vtanh.pop %v644
  %v690 = vxor.u32 %v669, 2147483648
  %v691 = vmul.f32 %v690, 1.442695
  %v692 = vpow.pop %v691
  %v693 = vadd.f32 %v692, 1.0
  %v694 = vrcp.pop %v693
  %v695 = vmul.f32 %v693, %v694
  %v696 = vsub.f32 1.0, %v695
  %v697 = vmul.f32 %v694, %v696
  %v698 = vadd.f32 %v694, %v697
  %vm699 = vweird.f32 %v693
  %vm700 = vweird.f32 %v694
  %vm701 = vmor %vm699, %vm700
  %v702 = vsel %vm701, %v694, %v698
  %v703 = vand.u32 2147483647, %v693
  %vm704 = vcmp.eq.f32.partialorder %v703, 8.507059e+37
  %v705 = vand.u32 %v693, 2147483648
  %v706 = vor.u32 1.1754944e-38, %v705
  %v707 = vsel %vm704, %v706, %v702
  %v708 = vmul.f32 1.0, %v707
  %v709 = vtanh.pop %v669
  %v710 = vmul.f32 %v688, %v584
  %712 = vrot.lane.b32.xlu0 %v689, 32
  %v713 = vpop.permute.xlu0 %712
  %v715 = vmul.f32 %v688, %v713
  %717 = vrot.lane.b32.xlu0 %v715, 32
  %v718 = vpop.permute.xlu0 %717
  %v720 = vadd.f32 %v710, %v718
  %v721 = vmul.f32 %v708, %v595
  %723 = vrot.lane.b32.xlu0 %v709, 32
  %v724 = vpop.permute.xlu0 %723
  %v726 = vmul.f32 %v708, %v724
  %728 = vrot.lane.b32.xlu0 %v726, 32
  %v729 = vpop.permute.xlu0 %728
  %v731 = vadd.f32 %v721, %v729
  %v732 = vtanh.pop %v720
  %734 = vrot.lane.b32.xlu0 %v732, 32
  %v735 = vpop.permute.xlu0 %734
  %v737 = vmul.f32 %v688, %v735
  %v738 = vtanh.pop %v731
  %740 = vrot.lane.b32.xlu0 %v738, 32
  %v741 = vpop.permute.xlu0 %740
  %v743 = vmul.f32 %v708, %v741
  %745 = vrot.lane.b32.xlu0 %v737, 64
  %v746 = vpop.permute.xlu0 %745
  %s748 = scalar_lea.vmem %s5, 24
  %749 = vst.msk [vmem:[%s748] sm:$0xff] %vm214, %v746
  %751 = vrot.lane.b32.xlu0 %v743, 96
  %v752 = vpop.permute.xlu0 %751
  %s754 = scalar_lea.vmem %s5, 32
  %755 = vst.msk [vmem:[%s754] sm:$0xff] %vm346, %v752
  %v756 = vld [vmem:[%s647] sm:$0xff]
  %v757 = vpack.c.bf16 %v737, %v737
  %759 = vrot.lane.b32.xlu0 %v757, 64
  %v760 = vpop.permute.xlu0 %759
  %v762 = vsel %vm214, %v760, 0
  %764 = vmatpush.bf16.msra.mxu0 0
  %765 = vmatpush.bf16.msra.mxu0 0
  %766 = vmatpush.bf16.msra.mxu0 0
  %767 = vmatpush.bf16.msra.mxu0 0
  %768 = vmatpush.bf16.msra.mxu0 0
  %769 = vmatpush.bf16.msra.mxu0 0
  %770 = vmatpush.bf16.msra.mxu0 %v211
  %771 = vmatpush.bf16.msra.mxu0 %v210
  %772 = vmatmul.bf16.gmra.mxu0 %v762
  %v773 = vpop.f32.mrf.mxu0
  %v774 = vadd.f32 0.0, %v773
  %v775 = vpop.f32.mrf.mxu0
  %776 = vdwg.mxu0
  %v777 = vadd.f32 %v756, %v774
  %v778 = vld [vmem:[%s622 + $0x8] sm:$0xff]
  %v779 = vpack.c.bf16 %v743, %v743
  %781 = vrot.lane.b32.xlu0 %v779, 64
  %v782 = vpop.permute.xlu0 %781
  %v784 = vsel %vm214, %v782, 0
  %786 = vmatpush.bf16.msra.mxu0 0
  %787 = vmatpush.bf16.msra.mxu0 0
  %788 = vmatpush.bf16.msra.mxu0 0
  %789 = vmatpush.bf16.msra.mxu0 0
  %790 = vmatpush.bf16.msra.mxu0 0
  %791 = vmatpush.bf16.msra.mxu0 0
  %792 = vmatpush.bf16.msra.mxu0 %v245
  %793 = vmatpush.bf16.msra.mxu0 %v244
  %794 = vmatmul.bf16.gmra.mxu0 %v784
  %v795 = vpop.f32.mrf.mxu0
  %v796 = vadd.f32 0.0, %v795
  %v797 = vpop.f32.mrf.mxu0
  %798 = vdwg.mxu0
  %v799 = vadd.f32 %v778, %v796
  %v800 = vxor.u32 %v777, 2147483648
  %v801 = vmul.f32 %v800, 1.442695
  %v802 = vpow.pop %v801
  %v803 = vadd.f32 %v802, 1.0
  %v804 = vrcp.pop %v803
  %v805 = vmul.f32 %v803, %v804
  %v806 = vsub.f32 1.0, %v805
  %v807 = vmul.f32 %v804, %v806
  %v808 = vadd.f32 %v804, %v807
  %vm809 = vweird.f32 %v803
  %vm810 = vweird.f32 %v804
  %vm811 = vmor %vm809, %vm810
  %v812 = vsel %vm811, %v804, %v808
  %v813 = vand.u32 2147483647, %v803
  %vm814 = vcmp.eq.f32.partialorder %v813, 8.507059e+37
  %v815 = vand.u32 %v803, 2147483648
  %v816 = vor.u32 1.1754944e-38, %v815
  %v817 = vsel %vm814, %v816, %v812
  %v818 = vmul.f32 1.0, %v817
  %v819 = vtanh.pop %v777
  %v820 = vxor.u32 %v799, 2147483648
  %v821 = vmul.f32 %v820, 1.442695
  %v822 = vpow.pop %v821
  %v823 = vadd.f32 %v822, 1.0
  %v824 = vrcp.pop %v823
  %v825 = vmul.f32 %v823, %v824
  %v826 = vsub.f32 1.0, %v825
  %v827 = vmul.f32 %v824, %v826
  %v828 = vadd.f32 %v824, %v827
  %vm829 = vweird.f32 %v823
  %vm830 = vweird.f32 %v824
  %vm831 = vmor %vm829, %vm830
  %v832 = vsel %vm831, %v824, %v828
  %v833 = vand.u32 2147483647, %v823
  %vm834 = vcmp.eq.f32.partialorder %v833, 8.507059e+37
  %v835 = vand.u32 %v823, 2147483648
  %v836 = vor.u32 1.1754944e-38, %v835
  %v837 = vsel %vm834, %v836, %v832
  %v838 = vmul.f32 1.0, %v837
  %v839 = vtanh.pop %v799
  %v840 = vmul.f32 %v818, %v720
  %842 = vrot.lane.b32.xlu0 %v819, 32
  %v843 = vpop.permute.xlu0 %842
  %v845 = vmul.f32 %v818, %v843
  %847 = vrot.lane.b32.xlu0 %v845, 32
  %v848 = vpop.permute.xlu0 %847
  %v850 = vadd.f32 %v840, %v848
  %v851 = vmul.f32 %v838, %v731
  %853 = vrot.lane.b32.xlu0 %v839, 32
  %v854 = vpop.permute.xlu0 %853
  %v856 = vmul.f32 %v838, %v854
  %858 = vrot.lane.b32.xlu0 %v856, 32
  %v859 = vpop.permute.xlu0 %858
  %v861 = vadd.f32 %v851, %v859
  %v862 = vtanh.pop %v850
  %864 = vrot.lane.b32.xlu0 %v862, 32
  %v865 = vpop.permute.xlu0 %864
  %v867 = vmul.f32 %v818, %v865
  %v868 = vtanh.pop %v861
  %870 = vrot.lane.b32.xlu0 %v868, 32
  %v871 = vpop.permute.xlu0 %870
  %v873 = vmul.f32 %v838, %v871
  %875 = vrot.lane.b32.xlu0 %v867, 64
  %v876 = vpop.permute.xlu0 %875
  %878 = vst.msk [vmem:[%s754] sm:$0xff] %vm214, %v876
  %880 = vrot.lane.b32.xlu0 %v873, 96
  %v881 = vpop.permute.xlu0 %880
  %883 = vst.msk [vmem:[%s748] sm:$0xff] %vm346, %v881
  %v884 = vld [vmem:[%s511] sm:$0xff]
  %v885 = vpack.c.bf16 %v867, %v867
  %887 = vrot.lane.b32.xlu0 %v885, 64
  %v888 = vpop.permute.xlu0 %887
  %v890 = vsel %vm214, %v888, 0
  %892 = vmatpush.bf16.msra.mxu0 0
  %893 = vmatpush.bf16.msra.mxu0 0
  %894 = vmatpush.bf16.msra.mxu0 0
  %895 = vmatpush.bf16.msra.mxu0 0
  %896 = vmatpush.bf16.msra.mxu0 0
  %897 = vmatpush.bf16.msra.mxu0 0
  %898 = vmatpush.bf16.msra.mxu0 %v211
  %899 = vmatpush.bf16.msra.mxu0 %v210
  %900 = vmatmul.bf16.gmra.mxu0 %v890
  %v901 = vpop.f32.mrf.mxu0
  %v902 = vadd.f32 0.0, %v901
  %v903 = vpop.f32.mrf.mxu0
  %904 = vdwg.mxu0
  %v905 = vadd.f32 %v884, %v902
  %v906 = vld [vmem:[%s486 + $0x8] sm:$0xff]
  %v907 = vpack.c.bf16 %v873, %v873
  %909 = vrot.lane.b32.xlu0 %v907, 64
  %v910 = vpop.permute.xlu0 %909
  %v912 = vsel %vm214, %v910, 0
  %914 = vmatpush.bf16.msra.mxu0 0
  %915 = vmatpush.bf16.msra.mxu0 0
  %916 = vmatpush.bf16.msra.mxu0 0
  %917 = vmatpush.bf16.msra.mxu0 0
  %918 = vmatpush.bf16.msra.mxu0 0
  %919 = vmatpush.bf16.msra.mxu0 0
  %920 = vmatpush.bf16.msra.mxu0 %v245
  %921 = vmatpush.bf16.msra.mxu0 %v244
  %922 = vmatmul.bf16.gmra.mxu0 %v912
  %v923 = vpop.f32.mrf.mxu0
  %v924 = vadd.f32 0.0, %v923
  %v925 = vpop.f32.mrf.mxu0
  %926 = vdwg.mxu0
  %v927 = vadd.f32 %v906, %v924
  %v928 = vxor.u32 %v905, 2147483648
  %v929 = vmul.f32 %v928, 1.442695
  %v930 = vpow.pop %v929
  %v931 = vadd.f32 %v930, 1.0
  %v932 = vrcp.pop %v931
  %v933 = vmul.f32 %v931, %v932
  %v934 = vsub.f32 1.0, %v933
  %v935 = vmul.f32 %v932, %v934
  %v936 = vadd.f32 %v932, %v935
  %vm937 = vweird.f32 %v931
  %vm938 = vweird.f32 %v932
  %vm939 = vmor %vm937, %vm938
  %v940 = vsel %vm939, %v932, %v936
  %v941 = vand.u32 2147483647, %v931
  %vm942 = vcmp.eq.f32.partialorder %v941, 8.507059e+37
  %v943 = vand.u32 %v931, 2147483648
  %v944 = vor.u32 1.1754944e-38, %v943
  %v945 = vsel %vm942, %v944, %v940
  %v946 = vmul.f32 1.0, %v945
  %v947 = vtanh.pop %v905
  %v948 = vxor.u32 %v927, 2147483648
  %v949 = vmul.f32 %v948, 1.442695
  %v950 = vpow.pop %v949
  %v951 = vadd.f32 %v950, 1.0
  %v952 = vrcp.pop %v951
  %v953 = vmul.f32 %v951, %v952
  %v954 = vsub.f32 1.0, %v953
  %v955 = vmul.f32 %v952, %v954
  %v956 = vadd.f32 %v952, %v955
  %vm957 = vweird.f32 %v951
  %vm958 = vweird.f32 %v952
  %vm959 = vmor %vm957, %vm958
  %v960 = vsel %vm959, %v952, %v956
  %v961 = vand.u32 2147483647, %v951
  %vm962 = vcmp.eq.f32.partialorder %v961, 8.507059e+37
  %v963 = vand.u32 %v951, 2147483648
  %v964 = vor.u32 1.1754944e-38, %v963
  %v965 = vsel %vm962, %v964, %v960
  %v966 = vmul.f32 1.0, %v965
  %v967 = vtanh.pop %v927
  %v968 = vmul.f32 %v946, %v850
  %970 = vrot.lane.b32.xlu0 %v947, 32
  %v971 = vpop.permute.xlu0 %970
  %v973 = vmul.f32 %v946, %v971
  %975 = vrot.lane.b32.xlu0 %v973, 32
  %v976 = vpop.permute.xlu0 %975
  %v978 = vadd.f32 %v968, %v976
  %v979 = vmul.f32 %v966, %v861
  %981 = vrot.lane.b32.xlu0 %v967, 32
  %v982 = vpop.permute.xlu0 %981
  %v984 = vmul.f32 %v966, %v982
  %986 = vrot.lane.b32.xlu0 %v984, 32
  %v987 = vpop.permute.xlu0 %986
  %v989 = vadd.f32 %v979, %v987
  %v990 = vtanh.pop %v978
  %992 = vrot.lane.b32.xlu0 %v990, 32
  %v993 = vpop.permute.xlu0 %992
  %v995 = vmul.f32 %v946, %v993
  %v996 = vtanh.pop %v989
  %998 = vrot.lane.b32.xlu0 %v996, 32
  %v999 = vpop.permute.xlu0 %998
  %v1001 = vmul.f32 %v966, %v999
  %1003 = vrot.lane.b32.xlu0 %v995, 64
  %v1004 = vpop.permute.xlu0 %1003
  %1006 = vst.msk [vmem:[%s618] sm:$0xff] %vm214, %v1004
  %1008 = vrot.lane.b32.xlu0 %v1001, 96
  %v1009 = vpop.permute.xlu0 %1008
  %1011 = vst.msk [vmem:[%s612] sm:$0xff] %vm346, %v1009
  %v1012 = vld [vmem:[%s375] sm:$0xff]
  %v1013 = vpack.c.bf16 %v995, %v995
  %1015 = vrot.lane.b32.xlu0 %v1013, 64
  %v1016 = vpop.permute.xlu0 %1015
  %v1018 = vsel %vm214, %v1016, 0
  %1020 = vmatpush.bf16.msra.mxu0 0
  %1021 = vmatpush.bf16.msra.mxu0 0
  %1022 = vmatpush.bf16.msra.mxu0 0
  %1023 = vmatpush.bf16.msra.mxu0 0
  %1024 = vmatpush.bf16.msra.mxu0 0
  %1025 = vmatpush.bf16.msra.mxu0 0
  %1026 = vmatpush.bf16.msra.mxu0 %v211
  %1027 = vmatpush.bf16.msra.mxu0 %v210
  %1028 = vmatmul.bf16.gmra.mxu0 %v1018
  %v1029 = vpop.f32.mrf.mxu0
  %v1030 = vadd.f32 0.0, %v1029
  %v1031 = vpop.f32.mrf.mxu0
  %1032 = vdwg.mxu0
  %v1033 = vadd.f32 %v1012, %v1030
  %v1034 = vld [vmem:[%s350 + $0x8] sm:$0xff]
  %v1035 = vpack.c.bf16 %v1001, %v1001
  %1037 = vrot.lane.b32.xlu0 %v1035, 64
  %v1038 = vpop.permute.xlu0 %1037
  %v1040 = vsel %vm214, %v1038, 0
  %1042 = vmatpush.bf16.msra.mxu0 0
  %1043 = vmatpush.bf16.msra.mxu0 0
  %1044 = vmatpush.bf16.msra.mxu0 0
  %1045 = vmatpush.bf16.msra.mxu0 0
  %1046 = vmatpush.bf16.msra.mxu0 0
  %1047 = vmatpush.bf16.msra.mxu0 0
  %1048 = vmatpush.bf16.msra.mxu0 %v245
  %1049 = vmatpush.bf16.msra.mxu0 %v244
  %1050 = vmatmul.bf16.gmra.mxu0 %v1040
  %v1051 = vpop.f32.mrf.mxu0
  %v1052 = vadd.f32 0.0, %v1051
  %v1053 = vpop.f32.mrf.mxu0
  %1054 = vdwg.mxu0
  %v1055 = vadd.f32 %v1034, %v1052
  %v1056 = vxor.u32 %v1033, 2147483648
  %v1057 = vmul.f32 %v1056, 1.442695
  %v1058 = vpow.pop %v1057
  %v1059 = vadd.f32 %v1058, 1.0
  %v1060 = vrcp.pop %v1059
  %v1061 = vmul.f32 %v1059, %v1060
  %v1062 = vsub.f32 1.0, %v1061
  %v1063 = vmul.f32 %v1060, %v1062
  %v1064 = vadd.f32 %v1060, %v1063
  %vm1065 = vweird.f32 %v1059
  %vm1066 = vweird.f32 %v1060
  %vm1067 = vmor %vm1065, %vm1066
  %v1068 = vsel %vm1067, %v1060, %v1064
  %v1069 = vand.u32 2147483647, %v1059
  %vm1070 = vcmp.eq.f32.partialorder %v1069, 8.507059e+37
  %v1071 = vand.u32 %v1059, 2147483648
  %v1072 = vor.u32 1.1754944e-38, %v1071
  %v1073 = vsel %vm1070, %v1072, %v1068
  %v1074 = vmul.f32 1.0, %v1073
  %v1075 = vtanh.pop %v1033
  %v1076 = vxor.u32 %v1055, 2147483648
  %v1077 = vmul.f32 %v1076, 1.442695
  %v1078 = vpow.pop %v1077
  %v1079 = vadd.f32 %v1078, 1.0
  %v1080 = vrcp.pop %v1079
  %v1081 = vmul.f32 %v1079, %v1080
  %v1082 = vsub.f32 1.0, %v1081
  %v1083 = vmul.f32 %v1080, %v1082
  %v1084 = vadd.f32 %v1080, %v1083
  %vm1085 = vweird.f32 %v1079
  %vm1086 = vweird.f32 %v1080
  %vm1087 = vmor %vm1085, %vm1086
  %v1088 = vsel %vm1087, %v1080, %v1084
  %v1089 = vand.u32 2147483647, %v1079
  %vm1090 = vcmp.eq.f32.partialorder %v1089, 8.507059e+37
  %v1091 = vand.u32 %v1079, 2147483648
  %v1092 = vor.u32 1.1754944e-38, %v1091
  %v1093 = vsel %vm1090, %v1092, %v1088
  %v1094 = vmul.f32 1.0, %v1093
  %v1095 = vtanh.pop %v1055
  %v1096 = vmul.f32 %v1074, %v978
  %1098 = vrot.lane.b32.xlu0 %v1075, 32
  %v1099 = vpop.permute.xlu0 %1098
  %v1101 = vmul.f32 %v1074, %v1099
  %1103 = vrot.lane.b32.xlu0 %v1101, 32
  %v1104 = vpop.permute.xlu0 %1103
  %v1106 = vadd.f32 %v1096, %v1104
  %v1107 = vmul.f32 %v1094, %v989
  %1109 = vrot.lane.b32.xlu0 %v1095, 32
  %v1110 = vpop.permute.xlu0 %1109
  %v1112 = vmul.f32 %v1094, %v1110
  %1114 = vrot.lane.b32.xlu0 %v1112, 32
  %v1115 = vpop.permute.xlu0 %1114
  %v1117 = vadd.f32 %v1107, %v1115
  %v1118 = vtanh.pop %v1106
  %1120 = vrot.lane.b32.xlu0 %v1118, 32
  %v1121 = vpop.permute.xlu0 %1120
  %v1123 = vmul.f32 %v1074, %v1121
  %v1124 = vtanh.pop %v1117
  %1126 = vrot.lane.b32.xlu0 %v1124, 32
  %v1127 = vpop.permute.xlu0 %1126
  %v1129 = vmul.f32 %v1094, %v1127
  %1131 = vrot.lane.b32.xlu0 %v1123, 64
  %v1132 = vpop.permute.xlu0 %1131
  %1134 = vst.msk [vmem:[%s482] sm:$0xff] %vm214, %v1132
  %1136 = vrot.lane.b32.xlu0 %v1129, 96
  %v1137 = vpop.permute.xlu0 %1136
  %1139 = vst.msk [vmem:[%s476] sm:$0xff] %vm346, %v1137
  %v1140 = vld [vmem:[%s234] sm:$0xff]
  %v1141 = vpack.c.bf16 %v1123, %v1123
  %1143 = vrot.lane.b32.xlu0 %v1141, 64
  %v1144 = vpop.permute.xlu0 %1143
  %v1146 = vsel %vm214, %v1144, 0
  %1148 = vmatpush.bf16.msra.mxu0 0
  %1149 = vmatpush.bf16.msra.mxu0 0
  %1150 = vmatpush.bf16.msra.mxu0 0
  %1151 = vmatpush.bf16.msra.mxu0 0
  %1152 = vmatpush.bf16.msra.mxu0 0
  %1153 = vmatpush.bf16.msra.mxu0 0
  %1154 = vmatpush.bf16.msra.mxu0 %v211
  %1155 = vmatpush.bf16.msra.mxu0 %v210
  %1156 = vmatmul.bf16.gmra.mxu0 %v1146
  %v1157 = vpop.f32.mrf.mxu0
  %v1158 = vadd.f32 0.0, %v1157
  %v1159 = vpop.f32.mrf.mxu0
  %1160 = vdwg.mxu0
  %v1161 = vadd.f32 %v1140, %v1158
  %v1162 = vld [vmem:[%s200 + $0x8] sm:$0xff]
  %v1163 = vpack.c.bf16 %v1129, %v1129
  %1165 = vrot.lane.b32.xlu0 %v1163, 64
  %v1166 = vpop.permute.xlu0 %1165
  %v1168 = vsel %vm214, %v1166, 0
  %1170 = vmatpush.bf16.msra.mxu0 0
  %1171 = vmatpush.bf16.msra.mxu0 0
  %1172 = vmatpush.bf16.msra.mxu0 0
  %1173 = vmatpush.bf16.msra.mxu0 0
  %1174 = vmatpush.bf16.msra.mxu0 0
  %1175 = vmatpush.bf16.msra.mxu0 0
  %1176 = vmatpush.bf16.msra.mxu0 %v245
  %1177 = vmatpush.bf16.msra.mxu0 %v244
  %1178 = vmatmul.bf16.gmra.mxu0 %v1168
  %v1179 = vpop.f32.mrf.mxu0
  %v1180 = vadd.f32 0.0, %v1179
  %v1181 = vpop.f32.mrf.mxu0
  %1182 = vdwg.mxu0
  %v1183 = vadd.f32 %v1162, %v1180
  %v1184 = vxor.u32 %v1161, 2147483648
  %v1185 = vmul.f32 %v1184, 1.442695
  %v1186 = vpow.pop %v1185
  %v1187 = vadd.f32 %v1186, 1.0
  %v1188 = vrcp.pop %v1187
  %v1189 = vmul.f32 %v1187, %v1188
  %v1190 = vsub.f32 1.0, %v1189
  %v1191 = vmul.f32 %v1188, %v1190
  %v1192 = vadd.f32 %v1188, %v1191
  %vm1193 = vweird.f32 %v1187
  %vm1194 = vweird.f32 %v1188
  %vm1195 = vmor %vm1193, %vm1194
  %v1196 = vsel %vm1195, %v1188, %v1192
  %v1197 = vand.u32 2147483647, %v1187
  %vm1198 = vcmp.eq.f32.partialorder %v1197, 8.507059e+37
  %v1199 = vand.u32 %v1187, 2147483648
  %v1200 = vor.u32 1.1754944e-38, %v1199
  %v1201 = vsel %vm1198, %v1200, %v1196
  %v1202 = vmul.f32 1.0, %v1201
  %v1203 = vtanh.pop %v1161
  %v1204 = vxor.u32 %v1183, 2147483648
  %v1205 = vmul.f32 %v1204, 1.442695
  %v1206 = vpow.pop %v1205
  %v1207 = vadd.f32 %v1206, 1.0
  %v1208 = vrcp.pop %v1207
  %v1209 = vmul.f32 %v1207, %v1208
  %v1210 = vsub.f32 1.0, %v1209
  %v1211 = vmul.f32 %v1208, %v1210
  %v1212 = vadd.f32 %v1208, %v1211
  %vm1213 = vweird.f32 %v1207
  %vm1214 = vweird.f32 %v1208
  %vm1215 = vmor %vm1213, %vm1214
  %v1216 = vsel %vm1215, %v1208, %v1212
  %v1217 = vand.u32 2147483647, %v1207
  %vm1218 = vcmp.eq.f32.partialorder %v1217, 8.507059e+37
  %v1219 = vand.u32 %v1207, 2147483648
  %v1220 = vor.u32 1.1754944e-38, %v1219
  %v1221 = vsel %vm1218, %v1220, %v1216
  %v1222 = vmul.f32 1.0, %v1221
  %v1223 = vtanh.pop %v1183
  %v1224 = vmul.f32 %v1202, %v1106
  %1226 = vrot.lane.b32.xlu0 %v1203, 32
  %v1227 = vpop.permute.xlu0 %1226
  %v1229 = vmul.f32 %v1202, %v1227
  %1231 = vrot.lane.b32.xlu0 %v1229, 32
  %v1232 = vpop.permute.xlu0 %1231
  %v1234 = vadd.f32 %v1224, %v1232
  %v1235 = vmul.f32 %v1222, %v1117
  %1237 = vrot.lane.b32.xlu0 %v1223, 32
  %v1238 = vpop.permute.xlu0 %1237
  %v1240 = vmul.f32 %v1222, %v1238
  %1242 = vrot.lane.b32.xlu0 %v1240, 32
  %v1243 = vpop.permute.xlu0 %1242
  %v1245 = vadd.f32 %v1235, %v1243
  %v1246 = vtanh.pop %v1234
  %1248 = vrot.lane.b32.xlu0 %v1246, 32
  %v1249 = vpop.permute.xlu0 %1248
  %v1251 = vmul.f32 %v1202, %v1249
  %v1252 = vtanh.pop %v1245
  %1254 = vrot.lane.b32.xlu0 %v1252, 32
  %v1255 = vpop.permute.xlu0 %1254
  %v1257 = vmul.f32 %v1222, %v1255
  %1259 = vrot.lane.b32.xlu0 %v1251, 64
  %v1260 = vpop.permute.xlu0 %1259
  %1262 = vst.msk [vmem:[%s345] sm:$0xff] %vm214, %v1260
  %1264 = vrot.lane.b32.xlu0 %v1257, 96
  %v1265 = vpop.permute.xlu0 %1264
  %1267 = vst.msk [vmem:[%s5] sm:$0xff] %vm346, %v1265
  // Predicated region
  $region22: #{bigru_attention_forward.4} parent=0 // pred_check
    _
  $region23: #{bigru_attention_forward.4} parent=0 // pred_check_branch
    %1269 = sbr.rel (0) target = $region25
  $region24: #{bigru_attention_forward.4} parent=0 // pred_region
    _
  $region25: #{bigru_attention_forward.4} parent=0 // pred_fallthru
    _
  // Predicated region
  $region26: #{bigru_attention_forward.4} parent=0 // pred_check
    _
  $region27: #{bigru_attention_forward.4} parent=0 // pred_check_branch
    %1271 = sbr.rel (0) target = $region29
  $region28: #{bigru_attention_forward.4} parent=0 // pred_region
    _
  $region29: #{bigru_attention_forward.4} parent=0 // pred_fallthru
    _

</llo_original>
